<compile_context>
chip_gen: v7x
topology: tpu7x:2x2x1
jax: 0.10.0
libtpu: 0.0.40
codegen_flags: <defaults>
</compile_context>

<pallas_src>
import functools

import jax
import jax.numpy as jnp
from jax import lax
from jax.experimental import pallas as pl
from jax.experimental.pallas import tpu as pltpu

# ---------------- configuration (small, consistent with the module) -----------
N = 2            # batch
LX = 8           # target (decoder) sequence length
LK = 16          # source (encoder) sequence length
EMBED = 32       # embed_size
HEADS = 4        # heads
HEAD_DIM = EMBED // HEADS
FWD_EXP = 4
HFF = FWD_EXP * EMBED
EPS = 1e-5


# ------------------------------- Pallas kernel --------------------------------
def decoder_block_kernel(B, x_ref, v_ref, k_ref, trg_mask_ref, src_mask_ref,
                         wattn_ref, vecs_ref, wffs_ref, bff1_ref, out_ref):
    E, H, D = EMBED, HEADS, HEAD_DIM
    inv_sqrt_e = jnp.float32(1.0 / (E ** 0.5))
    NEG = jnp.float32(-1e20)
    ZERO = jnp.float32(0.0)

    # Packed parameters (one DMA each) -> static in-kernel views (cheap).
    vecs = vecs_ref[...]                              # (9, E)
    bo1, gn, bn = vecs[0:1], vecs[1:2], vecs[2:3]
    bo2, g1, b1 = vecs[3:4], vecs[4:5], vecs[5:6]
    bff2, g2, b2 = vecs[6:7], vecs[7:8], vecs[8:9]
    wv1, wk1, wo1 = wattn_ref[0], wattn_ref[1], wattn_ref[2]
    wv2, wk2, wo2 = wattn_ref[3], wattn_ref[4], wattn_ref[5]
    wff1, wff2t = wffs_ref[0], wffs_ref[1]            # (E,HFF); wff2 pre-transposed
    bff1 = bff1_ref[...]                              # (1, HFF)

    def layer_norm(h, g, b):
        mu = jnp.mean(h, axis=-1, keepdims=True)
        var = jnp.mean((h - mu) ** 2, axis=-1, keepdims=True)
        return (h - mu) * lax.rsqrt(var + EPS) * g + b

    def mha(q_all, k_all, v_all, lq, lk, wv, wk, wo, bo, mbias):
        # q_all: (B*lq, E) RAW queries (reference query-projection bug reproduced).
        v_p = jnp.dot(v_all, wv, preferred_element_type=jnp.float32)
        k_p = jnp.dot(k_all, wk, preferred_element_type=jnp.float32)
        outs = []
        for b in range(B):                            # static batch loop
            q_b = q_all[b * lq:(b + 1) * lq]
            k_b = k_p[b * lk:(b + 1) * lk]
            v_b = v_p[b * lk:(b + 1) * lk]
            mb = mbias[b]                             # hoisted additive mask bias
            acc = jnp.zeros((lq, E), jnp.float32)
            for h in range(H):                        # static head loop
                lo, hi = h * D, (h + 1) * D
                # energy: contract on last dims (no explicit transpose)
                e = lax.dot_general(q_b[:, lo:hi], k_b[:, lo:hi],
                                    (((1,), (1,)), ((), ())),
                                    preferred_element_type=jnp.float32)  # (lq, lk)
                e = (e + mb) * inv_sqrt_e             # masked_fill(-1e20) / sqrt(E)
                e = e - jnp.max(e, axis=-1, keepdims=True)
                p = jnp.exp(e)
                p = p / jnp.sum(p, axis=-1, keepdims=True)
                oh = jnp.dot(p, v_b[:, lo:hi], preferred_element_type=jnp.float32)
                # fuse the output projection per head (no lane-axis concat)
                acc = acc + jnp.dot(oh, wo[lo:hi, :],
                                    preferred_element_type=jnp.float32)
            outs.append(acc + bo)
        return jnp.concatenate(outs, axis=0) if B > 1 else outs[0]

    # Batch-stacked activations: (B*L, E)
    xb = x_ref[...].reshape(B * LX, E)
    vb = v_ref[...].reshape(B * LK, E)
    kb = k_ref[...].reshape(B * LK, E)

    # Hoisted mask biases: 2 per batch element instead of 1 per head per batch.
    trg_bias = [jnp.where(trg_mask_ref[b, 0] == 0, NEG, ZERO) for b in range(B)]
    src_bias = [jnp.where(src_mask_ref[b, 0] == 0, NEG, ZERO) for b in range(B)]

    # --- DecoderBlock: masked self-attention + add & norm (dropout == identity) ---
    a1 = mha(xb, xb, xb, LX, LX, wv1, wk1, wo1, bo1, trg_bias)
    query = layer_norm(a1 + xb, gn, bn)

    # --- TransformerBlock: cross-attention + add & norm ---
    a2 = mha(query, kb, vb, LX, LK, wv2, wk2, wo2, bo2, src_bias)
    x2 = layer_norm(a2 + query, g1, b1)

    # --- feed-forward + add & norm ---
    hidden = jnp.maximum(
        jnp.dot(x2, wff1, preferred_element_type=jnp.float32) + bff1, 0.0)
    ff = lax.dot_general(hidden, wff2t, (((1,), (1,)), ((), ())),
                         preferred_element_type=jnp.float32) + bff2
    out_ref[...] = layer_norm(ff + x2, g2, b2).reshape(B, LX, E)


# ------------------------------ wrapper ----------------------------------------
def _batch_block():
    # v7x has 2 TensorCores/chip: keep a batch-parallel grid (one batch per core).
    # Single-TC chips (v5e/v6e): collapse the grid and stack the batch instead
    # (avoids serial grid-step overhead and doubles sublane occupancy).
    try:
        kind = jax.devices()[0].device_kind.lower()
    except Exception:
        kind = ""
    if ("v7" in kind or "7x" in kind) and N > 1:
        return 1
    return N


def decoder_block(x, value, key, src_mask, trg_mask, p):
    # Pack parameters so the kernel pulls a handful of DMAs instead of ~22.
    wattn = jnp.stack([p["wv1"], p["wk1"], p["wo1"],
                       p["wv2"], p["wk2"], p["wo2"]])              # (6, E, E)
    vecs = jnp.concatenate([p["bo1"], p["gn"], p["bn"],
                            p["bo2"], p["g1"], p["b1"],
                            p["bff2"], p["g2"], p["b2"]], axis=0)  # (9, E)
    wffs = jnp.stack([p["wff1"], p["wff2"].T])                     # (2, E, HFF)
    bff1 = p["bff1"]                                               # (1, HFF)

    B = _batch_block()
    grid = (N // B,)
    kernel = functools.partial(decoder_block_kernel, B)

    in_specs = [
        pl.BlockSpec((B, LX, EMBED), lambda b: (b, 0, 0)),         # x
        pl.BlockSpec((B, LK, EMBED), lambda b: (b, 0, 0)),         # value
        pl.BlockSpec((B, LK, EMBED), lambda b: (b, 0, 0)),         # key
        pl.BlockSpec((B, 1, LX, LX), lambda b: (b, 0, 0, 0)),      # trg_mask
        pl.BlockSpec((B, 1, 1, LK), lambda b: (b, 0, 0, 0)),       # src_mask
        pl.BlockSpec((6, EMBED, EMBED), lambda b: (0, 0, 0)),      # packed attention weights
        pl.BlockSpec((9, EMBED), lambda b: (0, 0)),                # packed bias/gain vectors
        pl.BlockSpec((2, EMBED, HFF), lambda b: (0, 0, 0)),        # packed FFN weights
        pl.BlockSpec((1, HFF), lambda b: (0, 0)),                  # bff1
    ]

    return pl.pallas_call(
        kernel,
        out_shape=jax.ShapeDtypeStruct((N, LX, EMBED), jnp.float32),
        grid_spec=pltpu.PrefetchScalarGridSpec(
            num_scalar_prefetch=0,
            grid=grid,
            in_specs=in_specs,
            out_specs=pl.BlockSpec((B, LX, EMBED), lambda b: (b, 0, 0)),
        ),
        compiler_params=pltpu.CompilerParams(dimension_semantics=("parallel",)),
    )(x, value, key, trg_mask, src_mask, wattn, vecs, wffs, bff1)


# --------------------------- pure-JAX reference ---------------------------------
def reference(x, value, key, src_mask, trg_mask, p):
    def ln(h, g, b):
        mu = h.mean(-1, keepdims=True)
        var = ((h - mu) ** 2).mean(-1, keepdims=True)
        return (h - mu) / jnp.sqrt(var + EPS) * g + b

    def attn(values, keys, query, mask, wv, wk, wo, bo):
        n, lq, e = query.shape
        lk = keys.shape[1]
        v = (values @ wv).reshape(n, lk, HEADS, HEAD_DIM)
        k = (keys @ wk).reshape(n, lk, HEADS, HEAD_DIM)
        q = query.reshape(n, lq, HEADS, HEAD_DIM)          # raw query (bug reproduced)
        en = jnp.einsum("nqhd,nkhd->nhqk", q, k)
        en = jnp.where(mask == 0, -1e20, en)
        a = jax.nn.softmax(en / (e ** 0.5), axis=3)
        o = jnp.einsum("nhql,nlhd->nqhd", a, v).reshape(n, lq, e)
        return o @ wo + bo

    a1 = attn(x, x, x, trg_mask, p["wv1"], p["wk1"], p["wo1"], p["bo1"])
    query = ln(a1 + x, p["gn"], p["bn"])
    a2 = attn(value, key, query, src_mask, p["wv2"], p["wk2"], p["wo2"], p["bo2"])
    x2 = ln(a2 + query, p["g1"], p["b1"])
    ff = jnp.maximum(x2 @ p["wff1"] + p["bff1"], 0.0) @ p["wff2"] + p["bff2"]
    return ln(ff + x2, p["g2"], p["b2"])


# ------------------------------------ main ---------------------------------------
if __name__ == "__main__":
    root = jax.random.PRNGKey(0)
    keys = jax.random.split(root, 20)

    def w(k, shape, scale=0.05):
        return (scale * jax.random.normal(k, shape)).astype(jnp.float32)

    params = {
        "wv1": w(keys[0], (EMBED, EMBED)), "wk1": w(keys[1], (EMBED, EMBED)),
        "wo1": w(keys[2], (EMBED, EMBED)), "bo1": w(keys[3], (1, EMBED)),
        "gn": jnp.ones((1, EMBED), jnp.float32) + w(keys[4], (1, EMBED), 0.01),
        "bn": w(keys[5], (1, EMBED), 0.01),
        "wv2": w(keys[6], (EMBED, EMBED)), "wk2": w(keys[7], (EMBED, EMBED)),
        "wo2": w(keys[8], (EMBED, EMBED)), "bo2": w(keys[9], (1, EMBED)),
        "g1": jnp.ones((1, EMBED), jnp.float32) + w(keys[10], (1, EMBED), 0.01),
        "b1": w(keys[11], (1, EMBED), 0.01),
        "wff1": w(keys[12], (EMBED, HFF)), "bff1": w(keys[13], (1, HFF)),
        "wff2": w(keys[14], (HFF, EMBED)), "bff2": w(keys[15], (1, EMBED)),
        "g2": jnp.ones((1, EMBED), jnp.float32) + w(keys[16], (1, EMBED), 0.01),
        "b2": w(keys[17], (1, EMBED), 0.01),
    }

    x = jax.random.normal(keys[18], (N, LX, EMBED), jnp.float32)
    enc = jax.random.normal(keys[19], (N, LK, EMBED), jnp.float32)
    value = enc
    key = enc
    # causal target mask, fully-visible source mask (Transformer.make_src_mask is None)
    trg_mask = jnp.tril(jnp.ones((LX, LX), jnp.float32))[None, None].repeat(N, 0)
    src_mask = jnp.ones((N, 1, 1, LK), jnp.float32)

    out = decoder_block(x, value, key, src_mask, trg_mask, params)
    out = jax.block_until_ready(out)

    ref = reference(x, value, key, src_mask, trg_mask, params)
    assert out.shape == (N, LX, EMBED)
    assert jnp.allclose(out, ref, rtol=1e-4, atol=1e-5), float(jnp.max(jnp.abs(out - ref)))

    print("KERNEL_OK")
</pallas_src>

<mosaic_0001>
module attributes {stable_mosaic.version = 11 : i64} {
  func.func @decoder_block_kernel(%arg0: i32, %arg1: memref<2x8x32xf32, #tpu.memory_space<vmem>>, %arg2: memref<2x16x32xf32, #tpu.memory_space<vmem>>, %arg3: memref<2x16x32xf32, #tpu.memory_space<vmem>>, %arg4: memref<2x1x8x8xf32, #tpu.memory_space<vmem>>, %arg5: memref<2x1x1x16xf32, #tpu.memory_space<vmem>>, %arg6: memref<6x32x32xf32, #tpu.memory_space<vmem>>, %arg7: memref<9x32xf32, #tpu.memory_space<vmem>>, %arg8: memref<2x32x128xf32, #tpu.memory_space<vmem>>, %arg9: memref<1x128xf32, #tpu.memory_space<vmem>>, %arg10: memref<2x8x32xf32, #tpu.memory_space<vmem>>) attributes {dimension_semantics = [#tpu.dimension_semantics<parallel>], iteration_bounds = array<i64: 1>, scalar_prefetch = 0 : i64, scratch_operands = 0 : i64, tpu.core_type = #tpu.core_type<tc>, window_params = [{transform_indices = @transform_0, window_bounds = array<i64: 2, 8, 32>}, {transform_indices = @transform_1, window_bounds = array<i64: 2, 16, 32>}, {transform_indices = @transform_2, window_bounds = array<i64: 2, 16, 32>}, {transform_indices = @transform_3, window_bounds = array<i64: 2, 1, 8, 8>}, {transform_indices = @transform_4, window_bounds = array<i64: 2, 1, 1, 16>}, {pipeline_mode = #tpu.pipeline_mode<synchronous>, transform_indices = @transform_5, window_bounds = array<i64: 6, 32, 32>}, {pipeline_mode = #tpu.pipeline_mode<synchronous>, transform_indices = @transform_6, window_bounds = array<i64: 9, 32>}, {pipeline_mode = #tpu.pipeline_mode<synchronous>, transform_indices = @transform_7, window_bounds = array<i64: 2, 32, 128>}, {pipeline_mode = #tpu.pipeline_mode<synchronous>, transform_indices = @transform_8, window_bounds = array<i64: 1, 128>}, {transform_indices = @transform_9, window_bounds = array<i64: 2, 8, 32>}]} {
    %c0 = arith.constant 0 : index
    %c0_0 = arith.constant 0 : index
    %0 = vector.load %arg7[%c0, %c0_0] : memref<9x32xf32, #tpu.memory_space<vmem>>, vector<9x32xf32>
    %1 = vector.extract_strided_slice %0 {offsets = [0, 0], sizes = [1, 32], strides = [1, 1]} : vector<9x32xf32> to vector<1x32xf32>
    %2 = vector.extract_strided_slice %0 {offsets = [1, 0], sizes = [1, 32], strides = [1, 1]} : vector<9x32xf32> to vector<1x32xf32>
    %3 = vector.extract_strided_slice %0 {offsets = [2, 0], sizes = [1, 32], strides = [1, 1]} : vector<9x32xf32> to vector<1x32xf32>
    %4 = vector.extract_strided_slice %0 {offsets = [3, 0], sizes = [1, 32], strides = [1, 1]} : vector<9x32xf32> to vector<1x32xf32>
    %5 = vector.extract_strided_slice %0 {offsets = [4, 0], sizes = [1, 32], strides = [1, 1]} : vector<9x32xf32> to vector<1x32xf32>
    %6 = vector.extract_strided_slice %0 {offsets = [5, 0], sizes = [1, 32], strides = [1, 1]} : vector<9x32xf32> to vector<1x32xf32>
    %7 = vector.extract_strided_slice %0 {offsets = [6, 0], sizes = [1, 32], strides = [1, 1]} : vector<9x32xf32> to vector<1x32xf32>
    %8 = vector.extract_strided_slice %0 {offsets = [7, 0], sizes = [1, 32], strides = [1, 1]} : vector<9x32xf32> to vector<1x32xf32>
    %9 = vector.extract_strided_slice %0 {offsets = [8, 0], sizes = [1, 32], strides = [1, 1]} : vector<9x32xf32> to vector<1x32xf32>
    %c0_1 = arith.constant 0 : index
    %c0_2 = arith.constant 0 : index
    %c0_3 = arith.constant 0 : index
    %10 = vector.load %arg6[%c0_1, %c0_2, %c0_3] : memref<6x32x32xf32, #tpu.memory_space<vmem>>, vector<1x32x32xf32>
    %11 = vector.shape_cast %10 : vector<1x32x32xf32> to vector<32x32xf32>
    %c1 = arith.constant 1 : index
    %c0_4 = arith.constant 0 : index
    %c0_5 = arith.constant 0 : index
    %12 = vector.load %arg6[%c1, %c0_4, %c0_5] : memref<6x32x32xf32, #tpu.memory_space<vmem>>, vector<1x32x32xf32>
    %13 = vector.shape_cast %12 : vector<1x32x32xf32> to vector<32x32xf32>
    %c2 = arith.constant 2 : index
    %c0_6 = arith.constant 0 : index
    %c0_7 = arith.constant 0 : index
    %14 = vector.load %arg6[%c2, %c0_6, %c0_7] : memref<6x32x32xf32, #tpu.memory_space<vmem>>, vector<1x32x32xf32>
    %15 = vector.shape_cast %14 : vector<1x32x32xf32> to vector<32x32xf32>
    %c3 = arith.constant 3 : index
    %c0_8 = arith.constant 0 : index
    %c0_9 = arith.constant 0 : index
    %16 = vector.load %arg6[%c3, %c0_8, %c0_9] : memref<6x32x32xf32, #tpu.memory_space<vmem>>, vector<1x32x32xf32>
    %17 = vector.shape_cast %16 : vector<1x32x32xf32> to vector<32x32xf32>
    %c4 = arith.constant 4 : index
    %c0_10 = arith.constant 0 : index
    %c0_11 = arith.constant 0 : index
    %18 = vector.load %arg6[%c4, %c0_10, %c0_11] : memref<6x32x32xf32, #tpu.memory_space<vmem>>, vector<1x32x32xf32>
    %19 = vector.shape_cast %18 : vector<1x32x32xf32> to vector<32x32xf32>
    %c5 = arith.constant 5 : index
    %c0_12 = arith.constant 0 : index
    %c0_13 = arith.constant 0 : index
    %20 = vector.load %arg6[%c5, %c0_12, %c0_13] : memref<6x32x32xf32, #tpu.memory_space<vmem>>, vector<1x32x32xf32>
    %21 = vector.shape_cast %20 : vector<1x32x32xf32> to vector<32x32xf32>
    %c0_14 = arith.constant 0 : index
    %c0_15 = arith.constant 0 : index
    %c0_16 = arith.constant 0 : index
    %22 = vector.load %arg8[%c0_14, %c0_15, %c0_16] : memref<2x32x128xf32, #tpu.memory_space<vmem>>, vector<1x32x128xf32>
    %23 = vector.shape_cast %22 : vector<1x32x128xf32> to vector<32x128xf32>
    %c1_17 = arith.constant 1 : index
    %c0_18 = arith.constant 0 : index
    %c0_19 = arith.constant 0 : index
    %24 = vector.load %arg8[%c1_17, %c0_18, %c0_19] : memref<2x32x128xf32, #tpu.memory_space<vmem>>, vector<1x32x128xf32>
    %25 = vector.shape_cast %24 : vector<1x32x128xf32> to vector<32x128xf32>
    %c0_20 = arith.constant 0 : index
    %c0_21 = arith.constant 0 : index
    %26 = vector.load %arg9[%c0_20, %c0_21] : memref<1x128xf32, #tpu.memory_space<vmem>>, vector<1x128xf32>
    %c0_22 = arith.constant 0 : index
    %c0_23 = arith.constant 0 : index
    %c0_24 = arith.constant 0 : index
    %27 = vector.load %arg1[%c0_22, %c0_23, %c0_24] : memref<2x8x32xf32, #tpu.memory_space<vmem>>, vector<2x8x32xf32>
    %28 = vector.shape_cast %27 : vector<2x8x32xf32> to vector<16x32xf32>
    %c0_25 = arith.constant 0 : index
    %c0_26 = arith.constant 0 : index
    %c0_27 = arith.constant 0 : index
    %29 = vector.load %arg2[%c0_25, %c0_26, %c0_27] : memref<2x16x32xf32, #tpu.memory_space<vmem>>, vector<2x16x32xf32>
    %30 = vector.shape_cast %29 : vector<2x16x32xf32> to vector<32x32xf32>
    %c0_28 = arith.constant 0 : index
    %c0_29 = arith.constant 0 : index
    %c0_30 = arith.constant 0 : index
    %31 = vector.load %arg3[%c0_28, %c0_29, %c0_30] : memref<2x16x32xf32, #tpu.memory_space<vmem>>, vector<2x16x32xf32>
    %32 = vector.shape_cast %31 : vector<2x16x32xf32> to vector<32x32xf32>
    %c0_31 = arith.constant 0 : index
    %c0_32 = arith.constant 0 : index
    %c0_33 = arith.constant 0 : index
    %c0_34 = arith.constant 0 : index
    %33 = vector.load %arg4[%c0_31, %c0_32, %c0_33, %c0_34] : memref<2x1x8x8xf32, #tpu.memory_space<vmem>>, vector<1x1x8x8xf32>
    %34 = vector.shape_cast %33 : vector<1x1x8x8xf32> to vector<8x8xf32>
    %cst = arith.constant 0.000000e+00 : f32
    %35 = vector.broadcast %cst : f32 to vector<8x8xf32>
    %36 = arith.cmpf oeq, %34, %35 : vector<8x8xf32>
    %cst_35 = arith.constant -1.000000e+20 : f32
    %cst_36 = arith.constant 0.000000e+00 : f32
    %37 = vector.broadcast %cst_35 : f32 to vector<8x8xf32>
    %38 = vector.broadcast %cst_36 : f32 to vector<8x8xf32>
    %39 = arith.select %36, %37, %38 : vector<8x8xi1>, vector<8x8xf32>
    %c1_37 = arith.constant 1 : index
    %c0_38 = arith.constant 0 : index
    %c0_39 = arith.constant 0 : index
    %c0_40 = arith.constant 0 : index
    %40 = vector.load %arg4[%c1_37, %c0_38, %c0_39, %c0_40] : memref<2x1x8x8xf32, #tpu.memory_space<vmem>>, vector<1x1x8x8xf32>
    %41 = vector.shape_cast %40 : vector<1x1x8x8xf32> to vector<8x8xf32>
    %cst_41 = arith.constant 0.000000e+00 : f32
    %42 = vector.broadcast %cst_41 : f32 to vector<8x8xf32>
    %43 = arith.cmpf oeq, %41, %42 : vector<8x8xf32>
    %cst_42 = arith.constant -1.000000e+20 : f32
    %cst_43 = arith.constant 0.000000e+00 : f32
    %44 = vector.broadcast %cst_42 : f32 to vector<8x8xf32>
    %45 = vector.broadcast %cst_43 : f32 to vector<8x8xf32>
    %46 = arith.select %43, %44, %45 : vector<8x8xi1>, vector<8x8xf32>
    %c0_44 = arith.constant 0 : index
    %c0_45 = arith.constant 0 : index
    %c0_46 = arith.constant 0 : index
    %c0_47 = arith.constant 0 : index
    %47 = vector.load %arg5[%c0_44, %c0_45, %c0_46, %c0_47] : memref<2x1x1x16xf32, #tpu.memory_space<vmem>>, vector<1x1x1x16xf32>
    %48 = vector.shape_cast %47 : vector<1x1x1x16xf32> to vector<1x16xf32>
    %cst_48 = arith.constant 0.000000e+00 : f32
    %49 = vector.broadcast %cst_48 : f32 to vector<1x16xf32>
    %50 = arith.cmpf oeq, %48, %49 : vector<1x16xf32>
    %cst_49 = arith.constant -1.000000e+20 : f32
    %cst_50 = arith.constant 0.000000e+00 : f32
    %51 = vector.broadcast %cst_49 : f32 to vector<1x16xf32>
    %52 = vector.broadcast %cst_50 : f32 to vector<1x16xf32>
    %53 = arith.select %50, %51, %52 : vector<1x16xi1>, vector<1x16xf32>
    %c1_51 = arith.constant 1 : index
    %c0_52 = arith.constant 0 : index
    %c0_53 = arith.constant 0 : index
    %c0_54 = arith.constant 0 : index
    %54 = vector.load %arg5[%c1_51, %c0_52, %c0_53, %c0_54] : memref<2x1x1x16xf32, #tpu.memory_space<vmem>>, vector<1x1x1x16xf32>
    %55 = vector.shape_cast %54 : vector<1x1x1x16xf32> to vector<1x16xf32>
    %cst_55 = arith.constant 0.000000e+00 : f32
    %56 = vector.broadcast %cst_55 : f32 to vector<1x16xf32>
    %57 = arith.cmpf oeq, %55, %56 : vector<1x16xf32>
    %cst_56 = arith.constant -1.000000e+20 : f32
    %cst_57 = arith.constant 0.000000e+00 : f32
    %58 = vector.broadcast %cst_56 : f32 to vector<1x16xf32>
    %59 = vector.broadcast %cst_57 : f32 to vector<1x16xf32>
    %60 = arith.select %57, %58, %59 : vector<1x16xi1>, vector<1x16xf32>
    %cst_58 = arith.constant dense<0.000000e+00> : vector<16x32xf32>
    %61 = tpu.matmul %28, %11, %cst_58 {dimension_numbers = #tpu.dot_dimension_numbers<[1], [0], [0], [1], [0, 0, 1, 1], [], []>} : vector<16x32xf32>, vector<32x32xf32>, vector<16x32xf32> -> vector<16x32xf32>
    %cst_59 = arith.constant dense<0.000000e+00> : vector<16x32xf32>
    %62 = tpu.matmul %28, %13, %cst_59 {dimension_numbers = #tpu.dot_dimension_numbers<[1], [0], [0], [1], [0, 0, 1, 1], [], []>} : vector<16x32xf32>, vector<32x32xf32>, vector<16x32xf32> -> vector<16x32xf32>
    %63 = vector.extract_strided_slice %28 {offsets = [0, 0], sizes = [8, 32], strides = [1, 1]} : vector<16x32xf32> to vector<8x32xf32>
    %64 = vector.extract_strided_slice %62 {offsets = [0, 0], sizes = [8, 32], strides = [1, 1]} : vector<16x32xf32> to vector<8x32xf32>
    %65 = vector.extract_strided_slice %61 {offsets = [0, 0], sizes = [8, 32], strides = [1, 1]} : vector<16x32xf32> to vector<8x32xf32>
    %cst_60 = arith.constant 0.000000e+00 : f32
    %66 = vector.broadcast %cst_60 : f32 to vector<8x32xf32>
    %67 = vector.extract_strided_slice %63 {offsets = [0, 0], sizes = [8, 8], strides = [1, 1]} : vector<8x32xf32> to vector<8x8xf32>
    %68 = vector.extract_strided_slice %64 {offsets = [0, 0], sizes = [8, 8], strides = [1, 1]} : vector<8x32xf32> to vector<8x8xf32>
    %cst_61 = arith.constant dense<0.000000e+00> : vector<8x8xf32>
    %69 = tpu.matmul %67, %68, %cst_61 {dimension_numbers = #tpu.dot_dimension_numbers<[1], [1], [0], [0], [0, 0, 1, 0], [], []>} : vector<8x8xf32>, vector<8x8xf32>, vector<8x8xf32> -> vector<8x8xf32>
    %70 = arith.addf %69, %39 : vector<8x8xf32>
    %cst_62 = arith.constant 0.176776692 : f32
    %71 = vector.broadcast %cst_62 : f32 to vector<8x8xf32>
    %72 = arith.mulf %70, %71 : vector<8x8xf32>
    %cst_63 = arith.constant dense<0xFF800000> : vector<8xf32>
    %73 = vector.multi_reduction <maximumf>, %72, %cst_63 [1] : vector<8x8xf32> to vector<8xf32>
    %74 = vector.shape_cast %73 : vector<8xf32> to vector<8x1xf32>
    %75 = vector.broadcast %74 : vector<8x1xf32> to vector<8x8xf32>
    %76 = arith.subf %72, %75 : vector<8x8xf32>
    %77 = math.exp %76 : vector<8x8xf32>
    %cst_64 = arith.constant dense<0.000000e+00> : vector<8xf32>
    %78 = vector.multi_reduction <add>, %77, %cst_64 [1] : vector<8x8xf32> to vector<8xf32>
    %79 = vector.shape_cast %78 : vector<8xf32> to vector<8x1xf32>
    %80 = vector.broadcast %79 : vector<8x1xf32> to vector<8x8xf32>
    %81 = arith.divf %77, %80 : vector<8x8xf32>
    %82 = vector.extract_strided_slice %65 {offsets = [0, 0], sizes = [8, 8], strides = [1, 1]} : vector<8x32xf32> to vector<8x8xf32>
    %cst_65 = arith.constant dense<0.000000e+00> : vector<8x8xf32>
    %83 = tpu.matmul %81, %82, %cst_65 {dimension_numbers = #tpu.dot_dimension_numbers<[1], [0], [0], [1], [0, 0, 1, 1], [], []>} : vector<8x8xf32>, vector<8x8xf32>, vector<8x8xf32> -> vector<8x8xf32>
    %84 = vector.extract_strided_slice %15 {offsets = [0, 0], sizes = [8, 32], strides = [1, 1]} : vector<32x32xf32> to vector<8x32xf32>
    %cst_66 = arith.constant dense<0.000000e+00> : vector<8x32xf32>
    %85 = tpu.matmul %83, %84, %cst_66 {dimension_numbers = #tpu.dot_dimension_numbers<[1], [0], [0], [1], [0, 0, 1, 1], [], []>} : vector<8x8xf32>, vector<8x32xf32>, vector<8x32xf32> -> vector<8x32xf32>
    %86 = arith.addf %66, %85 : vector<8x32xf32>
    %87 = vector.extract_strided_slice %63 {offsets = [0, 8], sizes = [8, 8], strides = [1, 1]} : vector<8x32xf32> to vector<8x8xf32>
    %88 = vector.extract_strided_slice %64 {offsets = [0, 8], sizes = [8, 8], strides = [1, 1]} : vector<8x32xf32> to vector<8x8xf32>
    %cst_67 = arith.constant dense<0.000000e+00> : vector<8x8xf32>
    %89 = tpu.matmul %87, %88, %cst_67 {dimension_numbers = #tpu.dot_dimension_numbers<[1], [1], [0], [0], [0, 0, 1, 0], [], []>} : vector<8x8xf32>, vector<8x8xf32>, vector<8x8xf32> -> vector<8x8xf32>
    %90 = arith.addf %89, %39 : vector<8x8xf32>
    %cst_68 = arith.constant 0.176776692 : f32
    %91 = vector.broadcast %cst_68 : f32 to vector<8x8xf32>
    %92 = arith.mulf %90, %91 : vector<8x8xf32>
    %cst_69 = arith.constant dense<0xFF800000> : vector<8xf32>
    %93 = vector.multi_reduction <maximumf>, %92, %cst_69 [1] : vector<8x8xf32> to vector<8xf32>
    %94 = vector.shape_cast %93 : vector<8xf32> to vector<8x1xf32>
    %95 = vector.broadcast %94 : vector<8x1xf32> to vector<8x8xf32>
    %96 = arith.subf %92, %95 : vector<8x8xf32>
    %97 = math.exp %96 : vector<8x8xf32>
    %cst_70 = arith.constant dense<0.000000e+00> : vector<8xf32>
    %98 = vector.multi_reduction <add>, %97, %cst_70 [1] : vector<8x8xf32> to vector<8xf32>
    %99 = vector.shape_cast %98 : vector<8xf32> to vector<8x1xf32>
    %100 = vector.broadcast %99 : vector<8x1xf32> to vector<8x8xf32>
    %101 = arith.divf %97, %100 : vector<8x8xf32>
    %102 = vector.extract_strided_slice %65 {offsets = [0, 8], sizes = [8, 8], strides = [1, 1]} : vector<8x32xf32> to vector<8x8xf32>
    %cst_71 = arith.constant dense<0.000000e+00> : vector<8x8xf32>
    %103 = tpu.matmul %101, %102, %cst_71 {dimension_numbers = #tpu.dot_dimension_numbers<[1], [0], [0], [1], [0, 0, 1, 1], [], []>} : vector<8x8xf32>, vector<8x8xf32>, vector<8x8xf32> -> vector<8x8xf32>
    %104 = vector.extract_strided_slice %15 {offsets = [8, 0], sizes = [8, 32], strides = [1, 1]} : vector<32x32xf32> to vector<8x32xf32>
    %cst_72 = arith.constant dense<0.000000e+00> : vector<8x32xf32>
    %105 = tpu.matmul %103, %104, %cst_72 {dimension_numbers = #tpu.dot_dimension_numbers<[1], [0], [0], [1], [0, 0, 1, 1], [], []>} : vector<8x8xf32>, vector<8x32xf32>, vector<8x32xf32> -> vector<8x32xf32>
    %106 = arith.addf %86, %105 : vector<8x32xf32>
    %107 = vector.extract_strided_slice %63 {offsets = [0, 16], sizes = [8, 8], strides = [1, 1]} : vector<8x32xf32> to vector<8x8xf32>
    %108 = vector.extract_strided_slice %64 {offsets = [0, 16], sizes = [8, 8], strides = [1, 1]} : vector<8x32xf32> to vector<8x8xf32>
    %cst_73 = arith.constant dense<0.000000e+00> : vector<8x8xf32>
    %109 = tpu.matmul %107, %108, %cst_73 {dimension_numbers = #tpu.dot_dimension_numbers<[1], [1], [0], [0], [0, 0, 1, 0], [], []>} : vector<8x8xf32>, vector<8x8xf32>, vector<8x8xf32> -> vector<8x8xf32>
    %110 = arith.addf %109, %39 : vector<8x8xf32>
    %cst_74 = arith.constant 0.176776692 : f32
    %111 = vector.broadcast %cst_74 : f32 to vector<8x8xf32>
    %112 = arith.mulf %110, %111 : vector<8x8xf32>
    %cst_75 = arith.constant dense<0xFF800000> : vector<8xf32>
    %113 = vector.multi_reduction <maximumf>, %112, %cst_75 [1] : vector<8x8xf32> to vector<8xf32>
    %114 = vector.shape_cast %113 : vector<8xf32> to vector<8x1xf32>
    %115 = vector.broadcast %114 : vector<8x1xf32> to vector<8x8xf32>
    %116 = arith.subf %112, %115 : vector<8x8xf32>
    %117 = math.exp %116 : vector<8x8xf32>
    %cst_76 = arith.constant dense<0.000000e+00> : vector<8xf32>
    %118 = vector.multi_reduction <add>, %117, %cst_76 [1] : vector<8x8xf32> to vector<8xf32>
    %119 = vector.shape_cast %118 : vector<8xf32> to vector<8x1xf32>
    %120 = vector.broadcast %119 : vector<8x1xf32> to vector<8x8xf32>
    %121 = arith.divf %117, %120 : vector<8x8xf32>
    %122 = vector.extract_strided_slice %65 {offsets = [0, 16], sizes = [8, 8], strides = [1, 1]} : vector<8x32xf32> to vector<8x8xf32>
    %cst_77 = arith.constant dense<0.000000e+00> : vector<8x8xf32>
    %123 = tpu.matmul %121, %122, %cst_77 {dimension_numbers = #tpu.dot_dimension_numbers<[1], [0], [0], [1], [0, 0, 1, 1], [], []>} : vector<8x8xf32>, vector<8x8xf32>, vector<8x8xf32> -> vector<8x8xf32>
    %124 = vector.extract_strided_slice %15 {offsets = [16, 0], sizes = [8, 32], strides = [1, 1]} : vector<32x32xf32> to vector<8x32xf32>
    %cst_78 = arith.constant dense<0.000000e+00> : vector<8x32xf32>
    %125 = tpu.matmul %123, %124, %cst_78 {dimension_numbers = #tpu.dot_dimension_numbers<[1], [0], [0], [1], [0, 0, 1, 1], [], []>} : vector<8x8xf32>, vector<8x32xf32>, vector<8x32xf32> -> vector<8x32xf32>
    %126 = arith.addf %106, %125 : vector<8x32xf32>
    %127 = vector.extract_strided_slice %63 {offsets = [0, 24], sizes = [8, 8], strides = [1, 1]} : vector<8x32xf32> to vector<8x8xf32>
    %128 = vector.extract_strided_slice %64 {offsets = [0, 24], sizes = [8, 8], strides = [1, 1]} : vector<8x32xf32> to vector<8x8xf32>
    %cst_79 = arith.constant dense<0.000000e+00> : vector<8x8xf32>
    %129 = tpu.matmul %127, %128, %cst_79 {dimension_numbers = #tpu.dot_dimension_numbers<[1], [1], [0], [0], [0, 0, 1, 0], [], []>} : vector<8x8xf32>, vector<8x8xf32>, vector<8x8xf32> -> vector<8x8xf32>
    %130 = arith.addf %129, %39 : vector<8x8xf32>
    %cst_80 = arith.constant 0.176776692 : f32
    %131 = vector.broadcast %cst_80 : f32 to vector<8x8xf32>
    %132 = arith.mulf %130, %131 : vector<8x8xf32>
    %cst_81 = arith.constant dense<0xFF800000> : vector<8xf32>
    %133 = vector.multi_reduction <maximumf>, %132, %cst_81 [1] : vector<8x8xf32> to vector<8xf32>
    %134 = vector.shape_cast %133 : vector<8xf32> to vector<8x1xf32>
    %135 = vector.broadcast %134 : vector<8x1xf32> to vector<8x8xf32>
    %136 = arith.subf %132, %135 : vector<8x8xf32>
    %137 = math.exp %136 : vector<8x8xf32>
    %cst_82 = arith.constant dense<0.000000e+00> : vector<8xf32>
    %138 = vector.multi_reduction <add>, %137, %cst_82 [1] : vector<8x8xf32> to vector<8xf32>
    %139 = vector.shape_cast %138 : vector<8xf32> to vector<8x1xf32>
    %140 = vector.broadcast %139 : vector<8x1xf32> to vector<8x8xf32>
    %141 = arith.divf %137, %140 : vector<8x8xf32>
    %142 = vector.extract_strided_slice %65 {offsets = [0, 24], sizes = [8, 8], strides = [1, 1]} : vector<8x32xf32> to vector<8x8xf32>
    %cst_83 = arith.constant dense<0.000000e+00> : vector<8x8xf32>
    %143 = tpu.matmul %141, %142, %cst_83 {dimension_numbers = #tpu.dot_dimension_numbers<[1], [0], [0], [1], [0, 0, 1, 1], [], []>} : vector<8x8xf32>, vector<8x8xf32>, vector<8x8xf32> -> vector<8x8xf32>
    %144 = vector.extract_strided_slice %15 {offsets = [24, 0], sizes = [8, 32], strides = [1, 1]} : vector<32x32xf32> to vector<8x32xf32>
    %cst_84 = arith.constant dense<0.000000e+00> : vector<8x32xf32>
    %145 = tpu.matmul %143, %144, %cst_84 {dimension_numbers = #tpu.dot_dimension_numbers<[1], [0], [0], [1], [0, 0, 1, 1], [], []>} : vector<8x8xf32>, vector<8x32xf32>, vector<8x32xf32> -> vector<8x32xf32>
    %146 = arith.addf %126, %145 : vector<8x32xf32>
    %147 = vector.broadcast %1 : vector<1x32xf32> to vector<8x32xf32>
    %148 = arith.addf %146, %147 : vector<8x32xf32>
    %149 = vector.extract_strided_slice %28 {offsets = [8, 0], sizes = [8, 32], strides = [1, 1]} : vector<16x32xf32> to vector<8x32xf32>
    %150 = vector.extract_strided_slice %62 {offsets = [8, 0], sizes = [8, 32], strides = [1, 1]} : vector<16x32xf32> to vector<8x32xf32>
    %151 = vector.extract_strided_slice %61 {offsets = [8, 0], sizes = [8, 32], strides = [1, 1]} : vector<16x32xf32> to vector<8x32xf32>
    %cst_85 = arith.constant 0.000000e+00 : f32
    %152 = vector.broadcast %cst_85 : f32 to vector<8x32xf32>
    %153 = vector.extract_strided_slice %149 {offsets = [0, 0], sizes = [8, 8], strides = [1, 1]} : vector<8x32xf32> to vector<8x8xf32>
    %154 = vector.extract_strided_slice %150 {offsets = [0, 0], sizes = [8, 8], strides = [1, 1]} : vector<8x32xf32> to vector<8x8xf32>
    %cst_86 = arith.constant dense<0.000000e+00> : vector<8x8xf32>
    %155 = tpu.matmul %153, %154, %cst_86 {dimension_numbers = #tpu.dot_dimension_numbers<[1], [1], [0], [0], [0, 0, 1, 0], [], []>} : vector<8x8xf32>, vector<8x8xf32>, vector<8x8xf32> -> vector<8x8xf32>
    %156 = arith.addf %155, %46 : vector<8x8xf32>
    %cst_87 = arith.constant 0.176776692 : f32
    %157 = vector.broadcast %cst_87 : f32 to vector<8x8xf32>
    %158 = arith.mulf %156, %157 : vector<8x8xf32>
    %cst_88 = arith.constant dense<0xFF800000> : vector<8xf32>
    %159 = vector.multi_reduction <maximumf>, %158, %cst_88 [1] : vector<8x8xf32> to vector<8xf32>
    %160 = vector.shape_cast %159 : vector<8xf32> to vector<8x1xf32>
    %161 = vector.broadcast %160 : vector<8x1xf32> to vector<8x8xf32>
    %162 = arith.subf %158, %161 : vector<8x8xf32>
    %163 = math.exp %162 : vector<8x8xf32>
    %cst_89 = arith.constant dense<0.000000e+00> : vector<8xf32>
    %164 = vector.multi_reduction <add>, %163, %cst_89 [1] : vector<8x8xf32> to vector<8xf32>
    %165 = vector.shape_cast %164 : vector<8xf32> to vector<8x1xf32>
    %166 = vector.broadcast %165 : vector<8x1xf32> to vector<8x8xf32>
    %167 = arith.divf %163, %166 : vector<8x8xf32>
    %168 = vector.extract_strided_slice %151 {offsets = [0, 0], sizes = [8, 8], strides = [1, 1]} : vector<8x32xf32> to vector<8x8xf32>
    %cst_90 = arith.constant dense<0.000000e+00> : vector<8x8xf32>
    %169 = tpu.matmul %167, %168, %cst_90 {dimension_numbers = #tpu.dot_dimension_numbers<[1], [0], [0], [1], [0, 0, 1, 1], [], []>} : vector<8x8xf32>, vector<8x8xf32>, vector<8x8xf32> -> vector<8x8xf32>
    %170 = vector.extract_strided_slice %15 {offsets = [0, 0], sizes = [8, 32], strides = [1, 1]} : vector<32x32xf32> to vector<8x32xf32>
    %cst_91 = arith.constant dense<0.000000e+00> : vector<8x32xf32>
    %171 = tpu.matmul %169, %170, %cst_91 {dimension_numbers = #tpu.dot_dimension_numbers<[1], [0], [0], [1], [0, 0, 1, 1], [], []>} : vector<8x8xf32>, vector<8x32xf32>, vector<8x32xf32> -> vector<8x32xf32>
    %172 = arith.addf %152, %171 : vector<8x32xf32>
    %173 = vector.extract_strided_slice %149 {offsets = [0, 8], sizes = [8, 8], strides = [1, 1]} : vector<8x32xf32> to vector<8x8xf32>
    %174 = vector.extract_strided_slice %150 {offsets = [0, 8], sizes = [8, 8], strides = [1, 1]} : vector<8x32xf32> to vector<8x8xf32>
    %cst_92 = arith.constant dense<0.000000e+00> : vector<8x8xf32>
    %175 = tpu.matmul %173, %174, %cst_92 {dimension_numbers = #tpu.dot_dimension_numbers<[1], [1], [0], [0], [0, 0, 1, 0], [], []>} : vector<8x8xf32>, vector<8x8xf32>, vector<8x8xf32> -> vector<8x8xf32>
    %176 = arith.addf %175, %46 : vector<8x8xf32>
    %cst_93 = arith.constant 0.176776692 : f32
    %177 = vector.broadcast %cst_93 : f32 to vector<8x8xf32>
    %178 = arith.mulf %176, %177 : vector<8x8xf32>
    %cst_94 = arith.constant dense<0xFF800000> : vector<8xf32>
    %179 = vector.multi_reduction <maximumf>, %178, %cst_94 [1] : vector<8x8xf32> to vector<8xf32>
    %180 = vector.shape_cast %179 : vector<8xf32> to vector<8x1xf32>
    %181 = vector.broadcast %180 : vector<8x1xf32> to vector<8x8xf32>
    %182 = arith.subf %178, %181 : vector<8x8xf32>
    %183 = math.exp %182 : vector<8x8xf32>
    %cst_95 = arith.constant dense<0.000000e+00> : vector<8xf32>
    %184 = vector.multi_reduction <add>, %183, %cst_95 [1] : vector<8x8xf32> to vector<8xf32>
    %185 = vector.shape_cast %184 : vector<8xf32> to vector<8x1xf32>
    %186 = vector.broadcast %185 : vector<8x1xf32> to vector<8x8xf32>
    %187 = arith.divf %183, %186 : vector<8x8xf32>
    %188 = vector.extract_strided_slice %151 {offsets = [0, 8], sizes = [8, 8], strides = [1, 1]} : vector<8x32xf32> to vector<8x8xf32>
    %cst_96 = arith.constant dense<0.000000e+00> : vector<8x8xf32>
    %189 = tpu.matmul %187, %188, %cst_96 {dimension_numbers = #tpu.dot_dimension_numbers<[1], [0], [0], [1], [0, 0, 1, 1], [], []>} : vector<8x8xf32>, vector<8x8xf32>, vector<8x8xf32> -> vector<8x8xf32>
    %190 = vector.extract_strided_slice %15 {offsets = [8, 0], sizes = [8, 32], strides = [1, 1]} : vector<32x32xf32> to vector<8x32xf32>
    %cst_97 = arith.constant dense<0.000000e+00> : vector<8x32xf32>
    %191 = tpu.matmul %189, %190, %cst_97 {dimension_numbers = #tpu.dot_dimension_numbers<[1], [0], [0], [1], [0, 0, 1, 1], [], []>} : vector<8x8xf32>, vector<8x32xf32>, vector<8x32xf32> -> vector<8x32xf32>
    %192 = arith.addf %172, %191 : vector<8x32xf32>
    %193 = vector.extract_strided_slice %149 {offsets = [0, 16], sizes = [8, 8], strides = [1, 1]} : vector<8x32xf32> to vector<8x8xf32>
    %194 = vector.extract_strided_slice %150 {offsets = [0, 16], sizes = [8, 8], strides = [1, 1]} : vector<8x32xf32> to vector<8x8xf32>
    %cst_98 = arith.constant dense<0.000000e+00> : vector<8x8xf32>
    %195 = tpu.matmul %193, %194, %cst_98 {dimension_numbers = #tpu.dot_dimension_numbers<[1], [1], [0], [0], [0, 0, 1, 0], [], []>} : vector<8x8xf32>, vector<8x8xf32>, vector<8x8xf32> -> vector<8x8xf32>
    %196 = arith.addf %195, %46 : vector<8x8xf32>
    %cst_99 = arith.constant 0.176776692 : f32
    %197 = vector.broadcast %cst_99 : f32 to vector<8x8xf32>
    %198 = arith.mulf %196, %197 : vector<8x8xf32>
    %cst_100 = arith.constant dense<0xFF800000> : vector<8xf32>
    %199 = vector.multi_reduction <maximumf>, %198, %cst_100 [1] : vector<8x8xf32> to vector<8xf32>
    %200 = vector.shape_cast %199 : vector<8xf32> to vector<8x1xf32>
    %201 = vector.broadcast %200 : vector<8x1xf32> to vector<8x8xf32>
    %202 = arith.subf %198, %201 : vector<8x8xf32>
    %203 = math.exp %202 : vector<8x8xf32>
    %cst_101 = arith.constant dense<0.000000e+00> : vector<8xf32>
    %204 = vector.multi_reduction <add>, %203, %cst_101 [1] : vector<8x8xf32> to vector<8xf32>
    %205 = vector.shape_cast %204 : vector<8xf32> to vector<8x1xf32>
    %206 = vector.broadcast %205 : vector<8x1xf32> to vector<8x8xf32>
    %207 = arith.divf %203, %206 : vector<8x8xf32>
    %208 = vector.extract_strided_slice %151 {offsets = [0, 16], sizes = [8, 8], strides = [1, 1]} : vector<8x32xf32> to vector<8x8xf32>
    %cst_102 = arith.constant dense<0.000000e+00> : vector<8x8xf32>
    %209 = tpu.matmul %207, %208, %cst_102 {dimension_numbers = #tpu.dot_dimension_numbers<[1], [0], [0], [1], [0, 0, 1, 1], [], []>} : vector<8x8xf32>, vector<8x8xf32>, vector<8x8xf32> -> vector<8x8xf32>
    %210 = vector.extract_strided_slice %15 {offsets = [16, 0], sizes = [8, 32], strides = [1, 1]} : vector<32x32xf32> to vector<8x32xf32>
    %cst_103 = arith.constant dense<0.000000e+00> : vector<8x32xf32>
    %211 = tpu.matmul %209, %210, %cst_103 {dimension_numbers = #tpu.dot_dimension_numbers<[1], [0], [0], [1], [0, 0, 1, 1], [], []>} : vector<8x8xf32>, vector<8x32xf32>, vector<8x32xf32> -> vector<8x32xf32>
    %212 = arith.addf %192, %211 : vector<8x32xf32>
    %213 = vector.extract_strided_slice %149 {offsets = [0, 24], sizes = [8, 8], strides = [1, 1]} : vector<8x32xf32> to vector<8x8xf32>
    %214 = vector.extract_strided_slice %150 {offsets = [0, 24], sizes = [8, 8], strides = [1, 1]} : vector<8x32xf32> to vector<8x8xf32>
    %cst_104 = arith.constant dense<0.000000e+00> : vector<8x8xf32>
    %215 = tpu.matmul %213, %214, %cst_104 {dimension_numbers = #tpu.dot_dimension_numbers<[1], [1], [0], [0], [0, 0, 1, 0], [], []>} : vector<8x8xf32>, vector<8x8xf32>, vector<8x8xf32> -> vector<8x8xf32>
    %216 = arith.addf %215, %46 : vector<8x8xf32>
    %cst_105 = arith.constant 0.176776692 : f32
    %217 = vector.broadcast %cst_105 : f32 to vector<8x8xf32>
    %218 = arith.mulf %216, %217 : vector<8x8xf32>
    %cst_106 = arith.constant dense<0xFF800000> : vector<8xf32>
    %219 = vector.multi_reduction <maximumf>, %218, %cst_106 [1] : vector<8x8xf32> to vector<8xf32>
    %220 = vector.shape_cast %219 : vector<8xf32> to vector<8x1xf32>
    %221 = vector.broadcast %220 : vector<8x1xf32> to vector<8x8xf32>
    %222 = arith.subf %218, %221 : vector<8x8xf32>
    %223 = math.exp %222 : vector<8x8xf32>
    %cst_107 = arith.constant dense<0.000000e+00> : vector<8xf32>
    %224 = vector.multi_reduction <add>, %223, %cst_107 [1] : vector<8x8xf32> to vector<8xf32>
    %225 = vector.shape_cast %224 : vector<8xf32> to vector<8x1xf32>
    %226 = vector.broadcast %225 : vector<8x1xf32> to vector<8x8xf32>
    %227 = arith.divf %223, %226 : vector<8x8xf32>
    %228 = vector.extract_strided_slice %151 {offsets = [0, 24], sizes = [8, 8], strides = [1, 1]} : vector<8x32xf32> to vector<8x8xf32>
    %cst_108 = arith.constant dense<0.000000e+00> : vector<8x8xf32>
    %229 = tpu.matmul %227, %228, %cst_108 {dimension_numbers = #tpu.dot_dimension_numbers<[1], [0], [0], [1], [0, 0, 1, 1], [], []>} : vector<8x8xf32>, vector<8x8xf32>, vector<8x8xf32> -> vector<8x8xf32>
    %230 = vector.extract_strided_slice %15 {offsets = [24, 0], sizes = [8, 32], strides = [1, 1]} : vector<32x32xf32> to vector<8x32xf32>
    %cst_109 = arith.constant dense<0.000000e+00> : vector<8x32xf32>
    %231 = tpu.matmul %229, %230, %cst_109 {dimension_numbers = #tpu.dot_dimension_numbers<[1], [0], [0], [1], [0, 0, 1, 1], [], []>} : vector<8x8xf32>, vector<8x32xf32>, vector<8x32xf32> -> vector<8x32xf32>
    %232 = arith.addf %212, %231 : vector<8x32xf32>
    %233 = vector.broadcast %1 : vector<1x32xf32> to vector<8x32xf32>
    %234 = arith.addf %232, %233 : vector<8x32xf32>
    %235 = tpu.concatenate %148, %234 in 0 : vector<8x32xf32>, vector<8x32xf32> -> vector<16x32xf32>
    %236 = arith.addf %235, %28 : vector<16x32xf32>
    %cst_110 = arith.constant dense<0.000000e+00> : vector<16xf32>
    %237 = vector.multi_reduction <add>, %236, %cst_110 [1] : vector<16x32xf32> to vector<16xf32>
    %238 = vector.shape_cast %237 : vector<16xf32> to vector<16x1xf32>
    %cst_111 = arith.constant 3.200000e+01 : f32
    %239 = vector.broadcast %cst_111 : f32 to vector<16x1xf32>
    %240 = arith.divf %238, %239 : vector<16x1xf32>
    %241 = vector.broadcast %240 : vector<16x1xf32> to vector<16x32xf32>
    %242 = arith.subf %236, %241 : vector<16x32xf32>
    %243 = arith.mulf %242, %242 : vector<16x32xf32>
    %cst_112 = arith.constant dense<0.000000e+00> : vector<16xf32>
    %244 = vector.multi_reduction <add>, %243, %cst_112 [1] : vector<16x32xf32> to vector<16xf32>
    %245 = vector.shape_cast %244 : vector<16xf32> to vector<16x1xf32>
    %cst_113 = arith.constant 3.200000e+01 : f32
    %246 = vector.broadcast %cst_113 : f32 to vector<16x1xf32>
    %247 = arith.divf %245, %246 : vector<16x1xf32>
    %248 = vector.broadcast %240 : vector<16x1xf32> to vector<16x32xf32>
    %249 = arith.subf %236, %248 : vector<16x32xf32>
    %cst_114 = arith.constant 9.99999974E-6 : f32
    %250 = vector.broadcast %cst_114 : f32 to vector<16x1xf32>
    %251 = arith.addf %247, %250 : vector<16x1xf32>
    %252 = math.rsqrt %251 : vector<16x1xf32>
    %253 = vector.broadcast %252 : vector<16x1xf32> to vector<16x32xf32>
    %254 = arith.mulf %249, %253 : vector<16x32xf32>
    %255 = vector.broadcast %2 : vector<1x32xf32> to vector<16x32xf32>
    %256 = arith.mulf %254, %255 : vector<16x32xf32>
    %257 = vector.broadcast %3 : vector<1x32xf32> to vector<16x32xf32>
    %258 = arith.addf %256, %257 : vector<16x32xf32>
    %cst_115 = arith.constant dense<0.000000e+00> : vector<32x32xf32>
    %259 = tpu.matmul %30, %17, %cst_115 {dimension_numbers = #tpu.dot_dimension_numbers<[1], [0], [0], [1], [0, 0, 1, 1], [], []>} : vector<32x32xf32>, vector<32x32xf32>, vector<32x32xf32> -> vector<32x32xf32>
    %cst_116 = arith.constant dense<0.000000e+00> : vector<32x32xf32>
    %260 = tpu.matmul %32, %19, %cst_116 {dimension_numbers = #tpu.dot_dimension_numbers<[1], [0], [0], [1], [0, 0, 1, 1], [], []>} : vector<32x32xf32>, vector<32x32xf32>, vector<32x32xf32> -> vector<32x32xf32>
    %261 = vector.extract_strided_slice %258 {offsets = [0, 0], sizes = [8, 32], strides = [1, 1]} : vector<16x32xf32> to vector<8x32xf32>
    %262 = vector.extract_strided_slice %260 {offsets = [0, 0], sizes = [16, 32], strides = [1, 1]} : vector<32x32xf32> to vector<16x32xf32>
    %263 = vector.extract_strided_slice %259 {offsets = [0, 0], sizes = [16, 32], strides = [1, 1]} : vector<32x32xf32> to vector<16x32xf32>
    %cst_117 = arith.constant 0.000000e+00 : f32
    %264 = vector.broadcast %cst_117 : f32 to vector<8x32xf32>
    %265 = vector.extract_strided_slice %261 {offsets = [0, 0], sizes = [8, 8], strides = [1, 1]} : vector<8x32xf32> to vector<8x8xf32>
    %266 = vector.extract_strided_slice %262 {offsets = [0, 0], sizes = [16, 8], strides = [1, 1]} : vector<16x32xf32> to vector<16x8xf32>
    %cst_118 = arith.constant dense<0.000000e+00> : vector<8x16xf32>
    %267 = tpu.matmul %265, %266, %cst_118 {dimension_numbers = #tpu.dot_dimension_numbers<[1], [1], [0], [0], [0, 0, 1, 0], [], []>} : vector<8x8xf32>, vector<16x8xf32>, vector<8x16xf32> -> vector<8x16xf32>
    %268 = vector.broadcast %53 : vector<1x16xf32> to vector<8x16xf32>
    %269 = arith.addf %267, %268 : vector<8x16xf32>
    %cst_119 = arith.constant 0.176776692 : f32
    %270 = vector.broadcast %cst_119 : f32 to vector<8x16xf32>
    %271 = arith.mulf %269, %270 : vector<8x16xf32>
    %cst_120 = arith.constant dense<0xFF800000> : vector<8xf32>
    %272 = vector.multi_reduction <maximumf>, %271, %cst_120 [1] : vector<8x16xf32> to vector<8xf32>
    %273 = vector.shape_cast %272 : vector<8xf32> to vector<8x1xf32>
    %274 = vector.broadcast %273 : vector<8x1xf32> to vector<8x16xf32>
    %275 = arith.subf %271, %274 : vector<8x16xf32>
    %276 = math.exp %275 : vector<8x16xf32>
    %cst_121 = arith.constant dense<0.000000e+00> : vector<8xf32>
    %277 = vector.multi_reduction <add>, %276, %cst_121 [1] : vector<8x16xf32> to vector<8xf32>
    %278 = vector.shape_cast %277 : vector<8xf32> to vector<8x1xf32>
    %279 = vector.broadcast %278 : vector<8x1xf32> to vector<8x16xf32>
    %280 = arith.divf %276, %279 : vector<8x16xf32>
    %281 = vector.extract_strided_slice %263 {offsets = [0, 0], sizes = [16, 8], strides = [1, 1]} : vector<16x32xf32> to vector<16x8xf32>
    %cst_122 = arith.constant dense<0.000000e+00> : vector<8x8xf32>
    %282 = tpu.matmul %280, %281, %cst_122 {dimension_numbers = #tpu.dot_dimension_numbers<[1], [0], [0], [1], [0, 0, 1, 1], [], []>} : vector<8x16xf32>, vector<16x8xf32>, vector<8x8xf32> -> vector<8x8xf32>
    %283 = vector.extract_strided_slice %21 {offsets = [0, 0], sizes = [8, 32], strides = [1, 1]} : vector<32x32xf32> to vector<8x32xf32>
    %cst_123 = arith.constant dense<0.000000e+00> : vector<8x32xf32>
    %284 = tpu.matmul %282, %283, %cst_123 {dimension_numbers = #tpu.dot_dimension_numbers<[1], [0], [0], [1], [0, 0, 1, 1], [], []>} : vector<8x8xf32>, vector<8x32xf32>, vector<8x32xf32> -> vector<8x32xf32>
    %285 = arith.addf %264, %284 : vector<8x32xf32>
    %286 = vector.extract_strided_slice %261 {offsets = [0, 8], sizes = [8, 8], strides = [1, 1]} : vector<8x32xf32> to vector<8x8xf32>
    %287 = vector.extract_strided_slice %262 {offsets = [0, 8], sizes = [16, 8], strides = [1, 1]} : vector<16x32xf32> to vector<16x8xf32>
    %cst_124 = arith.constant dense<0.000000e+00> : vector<8x16xf32>
    %288 = tpu.matmul %286, %287, %cst_124 {dimension_numbers = #tpu.dot_dimension_numbers<[1], [1], [0], [0], [0, 0, 1, 0], [], []>} : vector<8x8xf32>, vector<16x8xf32>, vector<8x16xf32> -> vector<8x16xf32>
    %289 = vector.broadcast %53 : vector<1x16xf32> to vector<8x16xf32>
    %290 = arith.addf %288, %289 : vector<8x16xf32>
    %cst_125 = arith.constant 0.176776692 : f32
    %291 = vector.broadcast %cst_125 : f32 to vector<8x16xf32>
    %292 = arith.mulf %290, %291 : vector<8x16xf32>
    %cst_126 = arith.constant dense<0xFF800000> : vector<8xf32>
    %293 = vector.multi_reduction <maximumf>, %292, %cst_126 [1] : vector<8x16xf32> to vector<8xf32>
    %294 = vector.shape_cast %293 : vector<8xf32> to vector<8x1xf32>
    %295 = vector.broadcast %294 : vector<8x1xf32> to vector<8x16xf32>
    %296 = arith.subf %292, %295 : vector<8x16xf32>
    %297 = math.exp %296 : vector<8x16xf32>
    %cst_127 = arith.constant dense<0.000000e+00> : vector<8xf32>
    %298 = vector.multi_reduction <add>, %297, %cst_127 [1] : vector<8x16xf32> to vector<8xf32>
    %299 = vector.shape_cast %298 : vector<8xf32> to vector<8x1xf32>
    %300 = vector.broadcast %299 : vector<8x1xf32> to vector<8x16xf32>
    %301 = arith.divf %297, %300 : vector<8x16xf32>
    %302 = vector.extract_strided_slice %263 {offsets = [0, 8], sizes = [16, 8], strides = [1, 1]} : vector<16x32xf32> to vector<16x8xf32>
    %cst_128 = arith.constant dense<0.000000e+00> : vector<8x8xf32>
    %303 = tpu.matmul %301, %302, %cst_128 {dimension_numbers = #tpu.dot_dimension_numbers<[1], [0], [0], [1], [0, 0, 1, 1], [], []>} : vector<8x16xf32>, vector<16x8xf32>, vector<8x8xf32> -> vector<8x8xf32>
    %304 = vector.extract_strided_slice %21 {offsets = [8, 0], sizes = [8, 32], strides = [1, 1]} : vector<32x32xf32> to vector<8x32xf32>
    %cst_129 = arith.constant dense<0.000000e+00> : vector<8x32xf32>
    %305 = tpu.matmul %303, %304, %cst_129 {dimension_numbers = #tpu.dot_dimension_numbers<[1], [0], [0], [1], [0, 0, 1, 1], [], []>} : vector<8x8xf32>, vector<8x32xf32>, vector<8x32xf32> -> vector<8x32xf32>
    %306 = arith.addf %285, %305 : vector<8x32xf32>
    %307 = vector.extract_strided_slice %261 {offsets = [0, 16], sizes = [8, 8], strides = [1, 1]} : vector<8x32xf32> to vector<8x8xf32>
    %308 = vector.extract_strided_slice %262 {offsets = [0, 16], sizes = [16, 8], strides = [1, 1]} : vector<16x32xf32> to vector<16x8xf32>
    %cst_130 = arith.constant dense<0.000000e+00> : vector<8x16xf32>
    %309 = tpu.matmul %307, %308, %cst_130 {dimension_numbers = #tpu.dot_dimension_numbers<[1], [1], [0], [0], [0, 0, 1, 0], [], []>} : vector<8x8xf32>, vector<16x8xf32>, vector<8x16xf32> -> vector<8x16xf32>
    %310 = vector.broadcast %53 : vector<1x16xf32> to vector<8x16xf32>
    %311 = arith.addf %309, %310 : vector<8x16xf32>
    %cst_131 = arith.constant 0.176776692 : f32
    %312 = vector.broadcast %cst_131 : f32 to vector<8x16xf32>
    %313 = arith.mulf %311, %312 : vector<8x16xf32>
    %cst_132 = arith.constant dense<0xFF800000> : vector<8xf32>
    %314 = vector.multi_reduction <maximumf>, %313, %cst_132 [1] : vector<8x16xf32> to vector<8xf32>
    %315 = vector.shape_cast %314 : vector<8xf32> to vector<8x1xf32>
    %316 = vector.broadcast %315 : vector<8x1xf32> to vector<8x16xf32>
    %317 = arith.subf %313, %316 : vector<8x16xf32>
    %318 = math.exp %317 : vector<8x16xf32>
    %cst_133 = arith.constant dense<0.000000e+00> : vector<8xf32>
    %319 = vector.multi_reduction <add>, %318, %cst_133 [1] : vector<8x16xf32> to vector<8xf32>
    %320 = vector.shape_cast %319 : vector<8xf32> to vector<8x1xf32>
    %321 = vector.broadcast %320 : vector<8x1xf32> to vector<8x16xf32>
    %322 = arith.divf %318, %321 : vector<8x16xf32>
    %323 = vector.extract_strided_slice %263 {offsets = [0, 16], sizes = [16, 8], strides = [1, 1]} : vector<16x32xf32> to vector<16x8xf32>
    %cst_134 = arith.constant dense<0.000000e+00> : vector<8x8xf32>
    %324 = tpu.matmul %322, %323, %cst_134 {dimension_numbers = #tpu.dot_dimension_numbers<[1], [0], [0], [1], [0, 0, 1, 1], [], []>} : vector<8x16xf32>, vector<16x8xf32>, vector<8x8xf32> -> vector<8x8xf32>
    %325 = vector.extract_strided_slice %21 {offsets = [16, 0], sizes = [8, 32], strides = [1, 1]} : vector<32x32xf32> to vector<8x32xf32>
    %cst_135 = arith.constant dense<0.000000e+00> : vector<8x32xf32>
    %326 = tpu.matmul %324, %325, %cst_135 {dimension_numbers = #tpu.dot_dimension_numbers<[1], [0], [0], [1], [0, 0, 1, 1], [], []>} : vector<8x8xf32>, vector<8x32xf32>, vector<8x32xf32> -> vector<8x32xf32>
    %327 = arith.addf %306, %326 : vector<8x32xf32>
    %328 = vector.extract_strided_slice %261 {offsets = [0, 24], sizes = [8, 8], strides = [1, 1]} : vector<8x32xf32> to vector<8x8xf32>
    %329 = vector.extract_strided_slice %262 {offsets = [0, 24], sizes = [16, 8], strides = [1, 1]} : vector<16x32xf32> to vector<16x8xf32>
    %cst_136 = arith.constant dense<0.000000e+00> : vector<8x16xf32>
    %330 = tpu.matmul %328, %329, %cst_136 {dimension_numbers = #tpu.dot_dimension_numbers<[1], [1], [0], [0], [0, 0, 1, 0], [], []>} : vector<8x8xf32>, vector<16x8xf32>, vector<8x16xf32> -> vector<8x16xf32>
    %331 = vector.broadcast %53 : vector<1x16xf32> to vector<8x16xf32>
    %332 = arith.addf %330, %331 : vector<8x16xf32>
    %cst_137 = arith.constant 0.176776692 : f32
    %333 = vector.broadcast %cst_137 : f32 to vector<8x16xf32>
    %334 = arith.mulf %332, %333 : vector<8x16xf32>
    %cst_138 = arith.constant dense<0xFF800000> : vector<8xf32>
    %335 = vector.multi_reduction <maximumf>, %334, %cst_138 [1] : vector<8x16xf32> to vector<8xf32>
    %336 = vector.shape_cast %335 : vector<8xf32> to vector<8x1xf32>
    %337 = vector.broadcast %336 : vector<8x1xf32> to vector<8x16xf32>
    %338 = arith.subf %334, %337 : vector<8x16xf32>
    %339 = math.exp %338 : vector<8x16xf32>
    %cst_139 = arith.constant dense<0.000000e+00> : vector<8xf32>
    %340 = vector.multi_reduction <add>, %339, %cst_139 [1] : vector<8x16xf32> to vector<8xf32>
    %341 = vector.shape_cast %340 : vector<8xf32> to vector<8x1xf32>
    %342 = vector.broadcast %341 : vector<8x1xf32> to vector<8x16xf32>
    %343 = arith.divf %339, %342 : vector<8x16xf32>
    %344 = vector.extract_strided_slice %263 {offsets = [0, 24], sizes = [16, 8], strides = [1, 1]} : vector<16x32xf32> to vector<16x8xf32>
    %cst_140 = arith.constant dense<0.000000e+00> : vector<8x8xf32>
    %345 = tpu.matmul %343, %344, %cst_140 {dimension_numbers = #tpu.dot_dimension_numbers<[1], [0], [0], [1], [0, 0, 1, 1], [], []>} : vector<8x16xf32>, vector<16x8xf32>, vector<8x8xf32> -> vector<8x8xf32>
    %346 = vector.extract_strided_slice %21 {offsets = [24, 0], sizes = [8, 32], strides = [1, 1]} : vector<32x32xf32> to vector<8x32xf32>
    %cst_141 = arith.constant dense<0.000000e+00> : vector<8x32xf32>
    %347 = tpu.matmul %345, %346, %cst_141 {dimension_numbers = #tpu.dot_dimension_numbers<[1], [0], [0], [1], [0, 0, 1, 1], [], []>} : vector<8x8xf32>, vector<8x32xf32>, vector<8x32xf32> -> vector<8x32xf32>
    %348 = arith.addf %327, %347 : vector<8x32xf32>
    %349 = vector.broadcast %4 : vector<1x32xf32> to vector<8x32xf32>
    %350 = arith.addf %348, %349 : vector<8x32xf32>
    %351 = vector.extract_strided_slice %258 {offsets = [8, 0], sizes = [8, 32], strides = [1, 1]} : vector<16x32xf32> to vector<8x32xf32>
    %352 = vector.extract_strided_slice %260 {offsets = [16, 0], sizes = [16, 32], strides = [1, 1]} : vector<32x32xf32> to vector<16x32xf32>
    %353 = vector.extract_strided_slice %259 {offsets = [16, 0], sizes = [16, 32], strides = [1, 1]} : vector<32x32xf32> to vector<16x32xf32>
    %cst_142 = arith.constant 0.000000e+00 : f32
    %354 = vector.broadcast %cst_142 : f32 to vector<8x32xf32>
    %355 = vector.extract_strided_slice %351 {offsets = [0, 0], sizes = [8, 8], strides = [1, 1]} : vector<8x32xf32> to vector<8x8xf32>
    %356 = vector.extract_strided_slice %352 {offsets = [0, 0], sizes = [16, 8], strides = [1, 1]} : vector<16x32xf32> to vector<16x8xf32>
    %cst_143 = arith.constant dense<0.000000e+00> : vector<8x16xf32>
    %357 = tpu.matmul %355, %356, %cst_143 {dimension_numbers = #tpu.dot_dimension_numbers<[1], [1], [0], [0], [0, 0, 1, 0], [], []>} : vector<8x8xf32>, vector<16x8xf32>, vector<8x16xf32> -> vector<8x16xf32>
    %358 = vector.broadcast %60 : vector<1x16xf32> to vector<8x16xf32>
    %359 = arith.addf %357, %358 : vector<8x16xf32>
    %cst_144 = arith.constant 0.176776692 : f32
    %360 = vector.broadcast %cst_144 : f32 to vector<8x16xf32>
    %361 = arith.mulf %359, %360 : vector<8x16xf32>
    %cst_145 = arith.constant dense<0xFF800000> : vector<8xf32>
    %362 = vector.multi_reduction <maximumf>, %361, %cst_145 [1] : vector<8x16xf32> to vector<8xf32>
    %363 = vector.shape_cast %362 : vector<8xf32> to vector<8x1xf32>
    %364 = vector.broadcast %363 : vector<8x1xf32> to vector<8x16xf32>
    %365 = arith.subf %361, %364 : vector<8x16xf32>
    %366 = math.exp %365 : vector<8x16xf32>
    %cst_146 = arith.constant dense<0.000000e+00> : vector<8xf32>
    %367 = vector.multi_reduction <add>, %366, %cst_146 [1] : vector<8x16xf32> to vector<8xf32>
    %368 = vector.shape_cast %367 : vector<8xf32> to vector<8x1xf32>
    %369 = vector.broadcast %368 : vector<8x1xf32> to vector<8x16xf32>
    %370 = arith.divf %366, %369 : vector<8x16xf32>
    %371 = vector.extract_strided_slice %353 {offsets = [0, 0], sizes = [16, 8], strides = [1, 1]} : vector<16x32xf32> to vector<16x8xf32>
    %cst_147 = arith.constant dense<0.000000e+00> : vector<8x8xf32>
    %372 = tpu.matmul %370, %371, %cst_147 {dimension_numbers = #tpu.dot_dimension_numbers<[1], [0], [0], [1], [0, 0, 1, 1], [], []>} : vector<8x16xf32>, vector<16x8xf32>, vector<8x8xf32> -> vector<8x8xf32>
    %373 = vector.extract_strided_slice %21 {offsets = [0, 0], sizes = [8, 32], strides = [1, 1]} : vector<32x32xf32> to vector<8x32xf32>
    %cst_148 = arith.constant dense<0.000000e+00> : vector<8x32xf32>
    %374 = tpu.matmul %372, %373, %cst_148 {dimension_numbers = #tpu.dot_dimension_numbers<[1], [0], [0], [1], [0, 0, 1, 1], [], []>} : vector<8x8xf32>, vector<8x32xf32>, vector<8x32xf32> -> vector<8x32xf32>
    %375 = arith.addf %354, %374 : vector<8x32xf32>
    %376 = vector.extract_strided_slice %351 {offsets = [0, 8], sizes = [8, 8], strides = [1, 1]} : vector<8x32xf32> to vector<8x8xf32>
    %377 = vector.extract_strided_slice %352 {offsets = [0, 8], sizes = [16, 8], strides = [1, 1]} : vector<16x32xf32> to vector<16x8xf32>
    %cst_149 = arith.constant dense<0.000000e+00> : vector<8x16xf32>
    %378 = tpu.matmul %376, %377, %cst_149 {dimension_numbers = #tpu.dot_dimension_numbers<[1], [1], [0], [0], [0, 0, 1, 0], [], []>} : vector<8x8xf32>, vector<16x8xf32>, vector<8x16xf32> -> vector<8x16xf32>
    %379 = vector.broadcast %60 : vector<1x16xf32> to vector<8x16xf32>
    %380 = arith.addf %378, %379 : vector<8x16xf32>
    %cst_150 = arith.constant 0.176776692 : f32
    %381 = vector.broadcast %cst_150 : f32 to vector<8x16xf32>
    %382 = arith.mulf %380, %381 : vector<8x16xf32>
    %cst_151 = arith.constant dense<0xFF800000> : vector<8xf32>
    %383 = vector.multi_reduction <maximumf>, %382, %cst_151 [1] : vector<8x16xf32> to vector<8xf32>
    %384 = vector.shape_cast %383 : vector<8xf32> to vector<8x1xf32>
    %385 = vector.broadcast %384 : vector<8x1xf32> to vector<8x16xf32>
    %386 = arith.subf %382, %385 : vector<8x16xf32>
    %387 = math.exp %386 : vector<8x16xf32>
    %cst_152 = arith.constant dense<0.000000e+00> : vector<8xf32>
    %388 = vector.multi_reduction <add>, %387, %cst_152 [1] : vector<8x16xf32> to vector<8xf32>
    %389 = vector.shape_cast %388 : vector<8xf32> to vector<8x1xf32>
    %390 = vector.broadcast %389 : vector<8x1xf32> to vector<8x16xf32>
    %391 = arith.divf %387, %390 : vector<8x16xf32>
    %392 = vector.extract_strided_slice %353 {offsets = [0, 8], sizes = [16, 8], strides = [1, 1]} : vector<16x32xf32> to vector<16x8xf32>
    %cst_153 = arith.constant dense<0.000000e+00> : vector<8x8xf32>
    %393 = tpu.matmul %391, %392, %cst_153 {dimension_numbers = #tpu.dot_dimension_numbers<[1], [0], [0], [1], [0, 0, 1, 1], [], []>} : vector<8x16xf32>, vector<16x8xf32>, vector<8x8xf32> -> vector<8x8xf32>
    %394 = vector.extract_strided_slice %21 {offsets = [8, 0], sizes = [8, 32], strides = [1, 1]} : vector<32x32xf32> to vector<8x32xf32>
    %cst_154 = arith.constant dense<0.000000e+00> : vector<8x32xf32>
    %395 = tpu.matmul %393, %394, %cst_154 {dimension_numbers = #tpu.dot_dimension_numbers<[1], [0], [0], [1], [0, 0, 1, 1], [], []>} : vector<8x8xf32>, vector<8x32xf32>, vector<8x32xf32> -> vector<8x32xf32>
    %396 = arith.addf %375, %395 : vector<8x32xf32>
    %397 = vector.extract_strided_slice %351 {offsets = [0, 16], sizes = [8, 8], strides = [1, 1]} : vector<8x32xf32> to vector<8x8xf32>
    %398 = vector.extract_strided_slice %352 {offsets = [0, 16], sizes = [16, 8], strides = [1, 1]} : vector<16x32xf32> to vector<16x8xf32>
    %cst_155 = arith.constant dense<0.000000e+00> : vector<8x16xf32>
    %399 = tpu.matmul %397, %398, %cst_155 {dimension_numbers = #tpu.dot_dimension_numbers<[1], [1], [0], [0], [0, 0, 1, 0], [], []>} : vector<8x8xf32>, vector<16x8xf32>, vector<8x16xf32> -> vector<8x16xf32>
    %400 = vector.broadcast %60 : vector<1x16xf32> to vector<8x16xf32>
    %401 = arith.addf %399, %400 : vector<8x16xf32>
    %cst_156 = arith.constant 0.176776692 : f32
    %402 = vector.broadcast %cst_156 : f32 to vector<8x16xf32>
    %403 = arith.mulf %401, %402 : vector<8x16xf32>
    %cst_157 = arith.constant dense<0xFF800000> : vector<8xf32>
    %404 = vector.multi_reduction <maximumf>, %403, %cst_157 [1] : vector<8x16xf32> to vector<8xf32>
    %405 = vector.shape_cast %404 : vector<8xf32> to vector<8x1xf32>
    %406 = vector.broadcast %405 : vector<8x1xf32> to vector<8x16xf32>
    %407 = arith.subf %403, %406 : vector<8x16xf32>
    %408 = math.exp %407 : vector<8x16xf32>
    %cst_158 = arith.constant dense<0.000000e+00> : vector<8xf32>
    %409 = vector.multi_reduction <add>, %408, %cst_158 [1] : vector<8x16xf32> to vector<8xf32>
    %410 = vector.shape_cast %409 : vector<8xf32> to vector<8x1xf32>
    %411 = vector.broadcast %410 : vector<8x1xf32> to vector<8x16xf32>
    %412 = arith.divf %408, %411 : vector<8x16xf32>
    %413 = vector.extract_strided_slice %353 {offsets = [0, 16], sizes = [16, 8], strides = [1, 1]} : vector<16x32xf32> to vector<16x8xf32>
    %cst_159 = arith.constant dense<0.000000e+00> : vector<8x8xf32>
    %414 = tpu.matmul %412, %413, %cst_159 {dimension_numbers = #tpu.dot_dimension_numbers<[1], [0], [0], [1], [0, 0, 1, 1], [], []>} : vector<8x16xf32>, vector<16x8xf32>, vector<8x8xf32> -> vector<8x8xf32>
    %415 = vector.extract_strided_slice %21 {offsets = [16, 0], sizes = [8, 32], strides = [1, 1]} : vector<32x32xf32> to vector<8x32xf32>
    %cst_160 = arith.constant dense<0.000000e+00> : vector<8x32xf32>
    %416 = tpu.matmul %414, %415, %cst_160 {dimension_numbers = #tpu.dot_dimension_numbers<[1], [0], [0], [1], [0, 0, 1, 1], [], []>} : vector<8x8xf32>, vector<8x32xf32>, vector<8x32xf32> -> vector<8x32xf32>
    %417 = arith.addf %396, %416 : vector<8x32xf32>
    %418 = vector.extract_strided_slice %351 {offsets = [0, 24], sizes = [8, 8], strides = [1, 1]} : vector<8x32xf32> to vector<8x8xf32>
    %419 = vector.extract_strided_slice %352 {offsets = [0, 24], sizes = [16, 8], strides = [1, 1]} : vector<16x32xf32> to vector<16x8xf32>
    %cst_161 = arith.constant dense<0.000000e+00> : vector<8x16xf32>
    %420 = tpu.matmul %418, %419, %cst_161 {dimension_numbers = #tpu.dot_dimension_numbers<[1], [1], [0], [0], [0, 0, 1, 0], [], []>} : vector<8x8xf32>, vector<16x8xf32>, vector<8x16xf32> -> vector<8x16xf32>
    %421 = vector.broadcast %60 : vector<1x16xf32> to vector<8x16xf32>
    %422 = arith.addf %420, %421 : vector<8x16xf32>
    %cst_162 = arith.constant 0.176776692 : f32
    %423 = vector.broadcast %cst_162 : f32 to vector<8x16xf32>
    %424 = arith.mulf %422, %423 : vector<8x16xf32>
    %cst_163 = arith.constant dense<0xFF800000> : vector<8xf32>
    %425 = vector.multi_reduction <maximumf>, %424, %cst_163 [1] : vector<8x16xf32> to vector<8xf32>
    %426 = vector.shape_cast %425 : vector<8xf32> to vector<8x1xf32>
    %427 = vector.broadcast %426 : vector<8x1xf32> to vector<8x16xf32>
    %428 = arith.subf %424, %427 : vector<8x16xf32>
    %429 = math.exp %428 : vector<8x16xf32>
    %cst_164 = arith.constant dense<0.000000e+00> : vector<8xf32>
    %430 = vector.multi_reduction <add>, %429, %cst_164 [1] : vector<8x16xf32> to vector<8xf32>
    %431 = vector.shape_cast %430 : vector<8xf32> to vector<8x1xf32>
    %432 = vector.broadcast %431 : vector<8x1xf32> to vector<8x16xf32>
    %433 = arith.divf %429, %432 : vector<8x16xf32>
    %434 = vector.extract_strided_slice %353 {offsets = [0, 24], sizes = [16, 8], strides = [1, 1]} : vector<16x32xf32> to vector<16x8xf32>
    %cst_165 = arith.constant dense<0.000000e+00> : vector<8x8xf32>
    %435 = tpu.matmul %433, %434, %cst_165 {dimension_numbers = #tpu.dot_dimension_numbers<[1], [0], [0], [1], [0, 0, 1, 1], [], []>} : vector<8x16xf32>, vector<16x8xf32>, vector<8x8xf32> -> vector<8x8xf32>
    %436 = vector.extract_strided_slice %21 {offsets = [24, 0], sizes = [8, 32], strides = [1, 1]} : vector<32x32xf32> to vector<8x32xf32>
    %cst_166 = arith.constant dense<0.000000e+00> : vector<8x32xf32>
    %437 = tpu.matmul %435, %436, %cst_166 {dimension_numbers = #tpu.dot_dimension_numbers<[1], [0], [0], [1], [0, 0, 1, 1], [], []>} : vector<8x8xf32>, vector<8x32xf32>, vector<8x32xf32> -> vector<8x32xf32>
    %438 = arith.addf %417, %437 : vector<8x32xf32>
    %439 = vector.broadcast %4 : vector<1x32xf32> to vector<8x32xf32>
    %440 = arith.addf %438, %439 : vector<8x32xf32>
    %441 = tpu.concatenate %350, %440 in 0 : vector<8x32xf32>, vector<8x32xf32> -> vector<16x32xf32>
    %442 = arith.addf %441, %258 : vector<16x32xf32>
    %cst_167 = arith.constant dense<0.000000e+00> : vector<16xf32>
    %443 = vector.multi_reduction <add>, %442, %cst_167 [1] : vector<16x32xf32> to vector<16xf32>
    %444 = vector.shape_cast %443 : vector<16xf32> to vector<16x1xf32>
    %cst_168 = arith.constant 3.200000e+01 : f32
    %445 = vector.broadcast %cst_168 : f32 to vector<16x1xf32>
    %446 = arith.divf %444, %445 : vector<16x1xf32>
    %447 = vector.broadcast %446 : vector<16x1xf32> to vector<16x32xf32>
    %448 = arith.subf %442, %447 : vector<16x32xf32>
    %449 = arith.mulf %448, %448 : vector<16x32xf32>
    %cst_169 = arith.constant dense<0.000000e+00> : vector<16xf32>
    %450 = vector.multi_reduction <add>, %449, %cst_169 [1] : vector<16x32xf32> to vector<16xf32>
    %451 = vector.shape_cast %450 : vector<16xf32> to vector<16x1xf32>
    %cst_170 = arith.constant 3.200000e+01 : f32
    %452 = vector.broadcast %cst_170 : f32 to vector<16x1xf32>
    %453 = arith.divf %451, %452 : vector<16x1xf32>
    %454 = vector.broadcast %446 : vector<16x1xf32> to vector<16x32xf32>
    %455 = arith.subf %442, %454 : vector<16x32xf32>
    %cst_171 = arith.constant 9.99999974E-6 : f32
    %456 = vector.broadcast %cst_171 : f32 to vector<16x1xf32>
    %457 = arith.addf %453, %456 : vector<16x1xf32>
    %458 = math.rsqrt %457 : vector<16x1xf32>
    %459 = vector.broadcast %458 : vector<16x1xf32> to vector<16x32xf32>
    %460 = arith.mulf %455, %459 : vector<16x32xf32>
    %461 = vector.broadcast %5 : vector<1x32xf32> to vector<16x32xf32>
    %462 = arith.mulf %460, %461 : vector<16x32xf32>
    %463 = vector.broadcast %6 : vector<1x32xf32> to vector<16x32xf32>
    %464 = arith.addf %462, %463 : vector<16x32xf32>
    %cst_172 = arith.constant dense<0.000000e+00> : vector<16x128xf32>
    %465 = tpu.matmul %464, %23, %cst_172 {dimension_numbers = #tpu.dot_dimension_numbers<[1], [0], [0], [1], [0, 0, 1, 1], [], []>} : vector<16x32xf32>, vector<32x128xf32>, vector<16x128xf32> -> vector<16x128xf32>
    %466 = vector.broadcast %26 : vector<1x128xf32> to vector<16x128xf32>
    %467 = arith.addf %465, %466 : vector<16x128xf32>
    %cst_173 = arith.constant 0.000000e+00 : f32
    %468 = vector.broadcast %cst_173 : f32 to vector<16x128xf32>
    %469 = arith.maximumf %467, %468 : vector<16x128xf32>
    %cst_174 = arith.constant dense<0.000000e+00> : vector<16x32xf32>
    %470 = tpu.matmul %469, %25, %cst_174 {dimension_numbers = #tpu.dot_dimension_numbers<[1], [1], [0], [0], [0, 0, 1, 0], [], []>} : vector<16x128xf32>, vector<32x128xf32>, vector<16x32xf32> -> vector<16x32xf32>
    %471 = vector.broadcast %7 : vector<1x32xf32> to vector<16x32xf32>
    %472 = arith.addf %470, %471 : vector<16x32xf32>
    %473 = arith.addf %472, %464 : vector<16x32xf32>
    %cst_175 = arith.constant dense<0.000000e+00> : vector<16xf32>
    %474 = vector.multi_reduction <add>, %473, %cst_175 [1] : vector<16x32xf32> to vector<16xf32>
    %475 = vector.shape_cast %474 : vector<16xf32> to vector<16x1xf32>
    %cst_176 = arith.constant 3.200000e+01 : f32
    %476 = vector.broadcast %cst_176 : f32 to vector<16x1xf32>
    %477 = arith.divf %475, %476 : vector<16x1xf32>
    %478 = vector.broadcast %477 : vector<16x1xf32> to vector<16x32xf32>
    %479 = arith.subf %473, %478 : vector<16x32xf32>
    %480 = arith.mulf %479, %479 : vector<16x32xf32>
    %cst_177 = arith.constant dense<0.000000e+00> : vector<16xf32>
    %481 = vector.multi_reduction <add>, %480, %cst_177 [1] : vector<16x32xf32> to vector<16xf32>
    %482 = vector.shape_cast %481 : vector<16xf32> to vector<16x1xf32>
    %cst_178 = arith.constant 3.200000e+01 : f32
    %483 = vector.broadcast %cst_178 : f32 to vector<16x1xf32>
    %484 = arith.divf %482, %483 : vector<16x1xf32>
    %485 = vector.broadcast %477 : vector<16x1xf32> to vector<16x32xf32>
    %486 = arith.subf %473, %485 : vector<16x32xf32>
    %cst_179 = arith.constant 9.99999974E-6 : f32
    %487 = vector.broadcast %cst_179 : f32 to vector<16x1xf32>
    %488 = arith.addf %484, %487 : vector<16x1xf32>
    %489 = math.rsqrt %488 : vector<16x1xf32>
    %490 = vector.broadcast %489 : vector<16x1xf32> to vector<16x32xf32>
    %491 = arith.mulf %486, %490 : vector<16x32xf32>
    %492 = vector.broadcast %8 : vector<1x32xf32> to vector<16x32xf32>
    %493 = arith.mulf %491, %492 : vector<16x32xf32>
    %494 = vector.broadcast %9 : vector<1x32xf32> to vector<16x32xf32>
    %495 = arith.addf %493, %494 : vector<16x32xf32>
    %496 = vector.shape_cast %495 : vector<16x32xf32> to vector<2x8x32xf32>
    %c0_180 = arith.constant 0 : index
    %c0_181 = arith.constant 0 : index
    %c0_182 = arith.constant 0 : index
    %497 = vector.load %arg10[%c0_180, %c0_181, %c0_182] : memref<2x8x32xf32, #tpu.memory_space<vmem>>, vector<2x8x32xf32>
    tpu.vector_store %arg10[%c0_180, %c0_181, %c0_182], %496 {strides = array<i32>} : memref<2x8x32xf32, #tpu.memory_space<vmem>>, vector<2x8x32xf32>,
    return
  }
  func.func @transform_0(%arg0: i32) -> (i32, i32, i32) {
    %c0_i32 = arith.constant 0 : i32
    %c0_i32_0 = arith.constant 0 : i32
    %c0_i32_1 = arith.constant 0 : i32
    return %arg0, %c0_i32, %c0_i32_0 : i32, i32, i32
  }
  func.func @transform_1(%arg0: i32) -> (i32, i32, i32) {
    %c0_i32 = arith.constant 0 : i32
    %c0_i32_0 = arith.constant 0 : i32
    %c0_i32_1 = arith.constant 0 : i32
    return %arg0, %c0_i32, %c0_i32_0 : i32, i32, i32
  }
  func.func @transform_2(%arg0: i32) -> (i32, i32, i32) {
    %c0_i32 = arith.constant 0 : i32
    %c0_i32_0 = arith.constant 0 : i32
    %c0_i32_1 = arith.constant 0 : i32
    return %arg0, %c0_i32, %c0_i32_0 : i32, i32, i32
  }
  func.func @transform_3(%arg0: i32) -> (i32, i32, i32, i32) {
    %c0_i32 = arith.constant 0 : i32
    %c0_i32_0 = arith.constant 0 : i32
    %c0_i32_1 = arith.constant 0 : i32
    %c0_i32_2 = arith.constant 0 : i32
    return %arg0, %c0_i32, %c0_i32_0, %c0_i32_1 : i32, i32, i32, i32
  }
  func.func @transform_4(%arg0: i32) -> (i32, i32, i32, i32) {
    %c0_i32 = arith.constant 0 : i32
    %c0_i32_0 = arith.constant 0 : i32
    %c0_i32_1 = arith.constant 0 : i32
    %c0_i32_2 = arith.constant 0 : i32
    return %arg0, %c0_i32, %c0_i32_0, %c0_i32_1 : i32, i32, i32, i32
  }
  func.func @transform_5(%arg0: i32) -> (i32, i32, i32) {
    %c0_i32 = arith.constant 0 : i32
    %c0_i32_0 = arith.constant 0 : i32
    %c0_i32_1 = arith.constant 0 : i32
    %c0_i32_2 = arith.constant 0 : i32
    return %c0_i32, %c0_i32_0, %c0_i32_1 : i32, i32, i32
  }
  func.func @transform_6(%arg0: i32) -> (i32, i32) {
    %c0_i32 = arith.constant 0 : i32
    %c0_i32_0 = arith.constant 0 : i32
    %c0_i32_1 = arith.constant 0 : i32
    return %c0_i32, %c0_i32_0 : i32, i32
  }
  func.func @transform_7(%arg0: i32) -> (i32, i32, i32) {
    %c0_i32 = arith.constant 0 : i32
    %c0_i32_0 = arith.constant 0 : i32
    %c0_i32_1 = arith.constant 0 : i32
    %c0_i32_2 = arith.constant 0 : i32
    return %c0_i32, %c0_i32_0, %c0_i32_1 : i32, i32, i32
  }
  func.func @transform_8(%arg0: i32) -> (i32, i32) {
    %c0_i32 = arith.constant 0 : i32
    %c0_i32_0 = arith.constant 0 : i32
    %c0_i32_1 = arith.constant 0 : i32
    return %c0_i32, %c0_i32_0 : i32, i32
  }
  func.func @transform_9(%arg0: i32) -> (i32, i32, i32) {
    %c0_i32 = arith.constant 0 : i32
    %c0_i32_0 = arith.constant 0 : i32
    %c0_i32_1 = arith.constant 0 : i32
    return %arg0, %c0_i32, %c0_i32_0 : i32, i32, i32
  }
}

</mosaic_0001>

<llo_original>
// kernel: tpu_custom_call.1
$region0: #{tpu_custom_call.1}
  #allocation0 [shape = 'u32[]', space=smem, size = 0x4, offset = 0x4, fixed_abs, tag = 'smem constant byte address 0x4 - core index']
  #allocation1 [shape = 'u32[144,128]{1,0:T(1,128)}', space=vmem, size = 0x12000, scoped, tag = 'internal scratch']
  %s0 = inlined_call_operand.hbm [shape: f32[2,8,32], index: 0, kind: input, shape index: {}]
  %s1 = inlined_call_operand.hbm [shape: f32[2,16,32], index: 1, kind: input, shape index: {}]
  %s2 = inlined_call_operand.hbm [shape: f32[2,16,32], index: 2, kind: input, shape index: {}]
  %s3 = inlined_call_operand.hbm [shape: f32[2,1,8,8], index: 3, kind: input, shape index: {}]
  %s4 = inlined_call_operand.vmem [shape: f32[2,1,1,16], index: 4, kind: input, shape index: {}]
  %s5 = inlined_call_operand.hbm [shape: f32[6,32,32], index: 5, kind: input, shape index: {}]
  %s6 = inlined_call_operand.vmem [shape: f32[9,32], index: 6, kind: input, shape index: {}]
  %s7 = inlined_call_operand.hbm [shape: f32[2,32,128], index: 7, kind: input, shape index: {}]
  %s8 = inlined_call_operand.vmem [shape: f32[1,128], index: 8, kind: input, shape index: {}]
  %s9 = inlined_call_operand.hbm [shape: f32[2,8,32], index: 9, kind: output, shape index: {}]
  %s10 = sld [smem:[#allocation0]]
  $region70: #{tpu_custom_call.1} parent=0
    _
  %s12 = ssub.s32 1, %s10
  %s13 = scalar_select 0, %s12, %s10
  $region1: #{tpu_custom_call.1} parent=0
    #allocation2 [shape = 'u8[8192]{0}', space=vmem, size = 0x2000, scoped, tag = 'input window, operand 0, single buffered']
    #allocation3 [shape = 's32[1]{0}', space=sflag, size = 0x4, scoped, tag = 'scoped memory for tpu_custom_call.1']
    #allocation4 [shape = 's32[1]{0}', space=sflag, size = 0x4, scoped, tag = 'scoped memory for tpu_custom_call.1']
    #allocation5 [shape = 'u8[16384]{0}', space=vmem, size = 0x4000, scoped, tag = 'input window, operand 1, single buffered']
    #allocation6 [shape = 's32[1]{0}', space=sflag, size = 0x4, scoped, tag = 'scoped memory for tpu_custom_call.1']
    #allocation7 [shape = 'u8[16384]{0}', space=vmem, size = 0x4000, scoped, tag = 'input window, operand 2, single buffered']
    #allocation8 [shape = 'u8[8192]{0}', space=vmem, size = 0x2000, scoped, tag = 'input window, operand 3, single buffered']
    #allocation9 [shape = 's32[1]{0}', space=sflag, size = 0x4, scoped, tag = 'scoped memory for tpu_custom_call.1']
    #allocation10 [shape = 'u8[98304]{0}', space=vmem, size = 0x18000, scoped, tag = 'input window, operand 5, single buffered']
    #allocation11 [shape = 'u8[32768]{0}', space=vmem, size = 0x8000, scoped, tag = 'input window, operand 7, single buffered']
    #allocation12 [shape = 's32[1]{0}', space=sflag, size = 0x4, scoped, tag = 'scoped memory for tpu_custom_call.1']
    #allocation13 [shape = 'u8[8192]{0}', space=vmem, size = 0x2000, scoped, tag = 'output window, operand 0, single buffered']
    %14 = vsyncpa [#allocation3], 0
    %15 = vsyncpa [#allocation6], 0
    %16 = vsyncpa [#allocation9], 0
    %17 = vsyncpa [#allocation12], 0
    %18 = vsyncpa [#allocation4], 0
    // Predicated region
    $region2: #{tpu_custom_call.1} parent=1 // pred_check
      _
    $region3: #{tpu_custom_call.1} parent=1 // pred_check_branch
      %20 = sbr.rel (0) target = $region5
    $region4: #{tpu_custom_call.1} parent=1 // pred_region
      %s22 = ssub.s32 256, 256
      %23 = vsyncadd [#allocation3], %s22
      %s24 = sshll.u32 [#allocation2], 4
      %s25 = int_to_ptr.vmem [resolvable:$true] %s24
      %30 = dma.hbm_to_vmem [thread:$0]  %s0, 256, %s25, [#allocation3], 128, 128, 8
    $region5: #{tpu_custom_call.1} parent=1 // pred_fallthru
      _
    // Predicated region
    $region6: #{tpu_custom_call.1} parent=1 // pred_check
      _
    $region7: #{tpu_custom_call.1} parent=1 // pred_check_branch
      %32 = sbr.rel (0) target = $region9
    $region8: #{tpu_custom_call.1} parent=1 // pred_region
      %s34 = ssub.s32 512, 512
      %35 = vsyncadd [#allocation6], %s34
      %s36 = sshll.u32 [#allocation5], 4
      %s37 = int_to_ptr.vmem [resolvable:$true] %s36
      %42 = dma.hbm_to_vmem [thread:$0]  %s1, 512, %s37, [#allocation6], 128, 128, 8
    $region9: #{tpu_custom_call.1} parent=1 // pred_fallthru
      _
    // Predicated region
    $region10: #{tpu_custom_call.1} parent=1 // pred_check
      _
    $region11: #{tpu_custom_call.1} parent=1 // pred_check_branch
      %44 = sbr.rel (0) target = $region13
    $region12: #{tpu_custom_call.1} parent=1 // pred_region
      %s46 = ssub.s32 512, 512
      %47 = vsyncadd [#allocation6], %s46
      %s48 = sshll.u32 [#allocation7], 4
      %s49 = int_to_ptr.vmem [resolvable:$true] %s48
      %54 = dma.hbm_to_vmem [thread:$0]  %s2, 512, %s49, [#allocation6], 128, 128, 8
    $region13: #{tpu_custom_call.1} parent=1 // pred_fallthru
      _
    // Predicated region
    $region14: #{tpu_custom_call.1} parent=1 // pred_check
      _
    $region15: #{tpu_custom_call.1} parent=1 // pred_check_branch
      %56 = sbr.rel (0) target = $region17
    $region16: #{tpu_custom_call.1} parent=1 // pred_region
      %s58 = ssub.s32 256, 256
      %59 = vsyncadd [#allocation9], %s58
      %s60 = sshll.u32 [#allocation8], 4
      %s61 = int_to_ptr.vmem [resolvable:$true] %s60
      %66 = dma.hbm_to_vmem [thread:$0]  %s3, 256, %s61, [#allocation9], 128, 128, 8
    $region17: #{tpu_custom_call.1} parent=1 // pred_fallthru
      _
    // Predicated region
    $region18: #{tpu_custom_call.1} parent=1 // pred_check
      _
    $region19: #{tpu_custom_call.1} parent=1 // pred_check_branch
      %68 = sbr.rel (0) target = $region21
    $region20: #{tpu_custom_call.1} parent=1 // pred_region
      _
    $region21: #{tpu_custom_call.1} parent=1 // pred_fallthru
      _
    // Predicated region
    $region22: #{tpu_custom_call.1} parent=1 // pred_check
      _
    $region23: #{tpu_custom_call.1} parent=1 // pred_check_branch
      %70 = sbr.rel (0) target = $region25
    $region24: #{tpu_custom_call.1} parent=1 // pred_region
      %s72 = ssub.s32 3072, 3072
      %73 = vsyncadd [#allocation9], %s72
      %s74 = sshll.u32 [#allocation10], 4
      %s75 = int_to_ptr.vmem [resolvable:$true] %s74
      %80 = dma.hbm_to_vmem [thread:$0]  %s5, 3072, %s75, [#allocation9], 128, 128, 8
    $region25: #{tpu_custom_call.1} parent=1 // pred_fallthru
      _
    // Predicated region
    $region26: #{tpu_custom_call.1} parent=1 // pred_check
      _
    $region27: #{tpu_custom_call.1} parent=1 // pred_check_branch
      %82 = sbr.rel (0) target = $region29
    $region28: #{tpu_custom_call.1} parent=1 // pred_region
      _
    $region29: #{tpu_custom_call.1} parent=1 // pred_fallthru
      _
    // Predicated region
    $region30: #{tpu_custom_call.1} parent=1 // pred_check
      _
    $region31: #{tpu_custom_call.1} parent=1 // pred_check_branch
      %84 = sbr.rel (0) target = $region33
    $region32: #{tpu_custom_call.1} parent=1 // pred_region
      %s86 = ssub.s32 1024, 1024
      %87 = vsyncadd [#allocation12], %s86
      %s88 = sshll.u32 [#allocation11], 4
      %s89 = int_to_ptr.vmem [resolvable:$true] %s88
      %94 = dma.hbm_to_vmem [thread:$0]  %s7, 1024, %s89, [#allocation12], 128, 128, 8
    $region33: #{tpu_custom_call.1} parent=1 // pred_fallthru
      _
    // Predicated region
    $region34: #{tpu_custom_call.1} parent=1 // pred_check
      _
    $region35: #{tpu_custom_call.1} parent=1 // pred_check_branch
      %96 = sbr.rel (0) target = $region37
    $region36: #{tpu_custom_call.1} parent=1 // pred_region
      _
    $region37: #{tpu_custom_call.1} parent=1 // pred_fallthru
      _
    // Predicated region
    $region38: #{tpu_custom_call.1} parent=1 // pred_check
      _
    $region39: #{tpu_custom_call.1} parent=1 // pred_check_branch
      %98 = sbr.rel (0) target = $region41
    $region40: #{tpu_custom_call.1} parent=1 // pred_region
      %99 = dma.done [#allocation3], 256
    $region41: #{tpu_custom_call.1} parent=1 // pred_fallthru
      _
    // Predicated region
    $region42: #{tpu_custom_call.1} parent=1 // pred_check
      _
    $region43: #{tpu_custom_call.1} parent=1 // pred_check_branch
      %101 = sbr.rel (0) target = $region45
    $region44: #{tpu_custom_call.1} parent=1 // pred_region
      %102 = dma.done [#allocation6], 512
    $region45: #{tpu_custom_call.1} parent=1 // pred_fallthru
      _
    // Predicated region
    $region46: #{tpu_custom_call.1} parent=1 // pred_check
      _
    $region47: #{tpu_custom_call.1} parent=1 // pred_check_branch
      %104 = sbr.rel (0) target = $region49
    $region48: #{tpu_custom_call.1} parent=1 // pred_region
      %105 = dma.done [#allocation6], 512
    $region49: #{tpu_custom_call.1} parent=1 // pred_fallthru
      _
    // Predicated region
    $region50: #{tpu_custom_call.1} parent=1 // pred_check
      _
    $region51: #{tpu_custom_call.1} parent=1 // pred_check_branch
      %107 = sbr.rel (0) target = $region53
    $region52: #{tpu_custom_call.1} parent=1 // pred_region
      %108 = dma.done [#allocation9], 256
    $region53: #{tpu_custom_call.1} parent=1 // pred_fallthru
      _
    // Predicated region
    $region54: #{tpu_custom_call.1} parent=1 // pred_check
      _
    $region55: #{tpu_custom_call.1} parent=1 // pred_check_branch
      %110 = sbr.rel (0) target = $region57
    $region56: #{tpu_custom_call.1} parent=1 // pred_region
      %111 = dma.done [#allocation9], 3072
    $region57: #{tpu_custom_call.1} parent=1 // pred_fallthru
      _
    // Predicated region
    $region58: #{tpu_custom_call.1} parent=1 // pred_check
      _
    $region59: #{tpu_custom_call.1} parent=1 // pred_check_branch
      %113 = sbr.rel (0) target = $region61
    $region60: #{tpu_custom_call.1} parent=1 // pred_region
      %114 = dma.done [#allocation12], 1024
    $region61: #{tpu_custom_call.1} parent=1 // pred_fallthru
      _
    %v115 = vld [vmem:[%s6] sm:$0xff]
    %v116 = vld [vmem:[%s6 + $0x8] sm:$0x1]
    %v117 = vld [vmem:[#allocation10] sm:$0xff]
    %v118 = vld [vmem:[#allocation10 + $0x8] sm:$0xff]
    %v119 = vld [vmem:[#allocation10 + $0x10] sm:$0xff]
    %v120 = vld [vmem:[#allocation10 + $0x18] sm:$0xff]
    %s121 = scalar_lea.vmem [#allocation10], 32
    %v122 = vld [vmem:[%s121] sm:$0xff]
    %v123 = vld [vmem:[%s121 + $0x8] sm:$0xff]
    %v124 = vld [vmem:[%s121 + $0x10] sm:$0xff]
    %v125 = vld [vmem:[%s121 + $0x18] sm:$0xff]
    %s126 = scalar_lea.vmem [#allocation10], 64
    %v127 = vld [vmem:[%s126] sm:$0xff]
    %v128 = vld [vmem:[%s126 + $0x8] sm:$0xff]
    %v129 = vld [vmem:[%s126 + $0x10] sm:$0xff]
    %v130 = vld [vmem:[%s126 + $0x18] sm:$0xff]
    %s131 = scalar_lea.vmem [#allocation10], 96
    %v132 = vld [vmem:[%s131] sm:$0xff]
    %v133 = vld [vmem:[%s131 + $0x8] sm:$0xff]
    %v134 = vld [vmem:[%s131 + $0x10] sm:$0xff]
    %v135 = vld [vmem:[%s131 + $0x18] sm:$0xff]
    %s136 = scalar_lea.vmem [#allocation10], 128
    %v137 = vld [vmem:[%s136] sm:$0xff]
    %v138 = vld [vmem:[%s136 + $0x8] sm:$0xff]
    %v139 = vld [vmem:[%s136 + $0x10] sm:$0xff]
    %v140 = vld [vmem:[%s136 + $0x18] sm:$0xff]
    %s141 = scalar_lea.vmem [#allocation10], 160
    %v142 = vld [vmem:[%s141] sm:$0xff]
    %v143 = vld [vmem:[%s141 + $0x8] sm:$0xff]
    %v144 = vld [vmem:[%s141 + $0x10] sm:$0xff]
    %v145 = vld [vmem:[%s141 + $0x18] sm:$0xff]
    %v146 = vld [vmem:[#allocation11] sm:$0xff]
    %v147 = vld [vmem:[#allocation11 + $0x8] sm:$0xff]
    %v148 = vld [vmem:[#allocation11 + $0x10] sm:$0xff]
    %v149 = vld [vmem:[#allocation11 + $0x18] sm:$0xff]
    %s150 = scalar_lea.vmem [#allocation11], 32
    %v151 = vld [vmem:[%s150] sm:$0xff]
    %v152 = vld [vmem:[%s150 + $0x8] sm:$0xff]
    %v153 = vld [vmem:[%s150 + $0x10] sm:$0xff]
    %v154 = vld [vmem:[%s150 + $0x18] sm:$0xff]
    %v155 = vld [vmem:[%s8] sm:$0x1]
    %v156 = vld [vmem:[#allocation2] sm:$0xff]
    %v157 = vld [vmem:[#allocation2 + $0x8] sm:$0xff]
    %v158 = vld [vmem:[#allocation5] sm:$0xff]
    %v159 = vld [vmem:[#allocation5 + $0x8] sm:$0xff]
    %v160 = vld [vmem:[#allocation5 + $0x10] sm:$0xff]
    %v161 = vld [vmem:[#allocation5 + $0x18] sm:$0xff]
    %v162 = vld [vmem:[#allocation7] sm:$0xff]
    %v163 = vld [vmem:[#allocation7 + $0x8] sm:$0xff]
    %v164 = vld [vmem:[#allocation7 + $0x10] sm:$0xff]
    %v165 = vld [vmem:[#allocation7 + $0x18] sm:$0xff]
    %v166 = vld [vmem:[#allocation8] sm:$0xff]
    %vm167 = vcmp.eq.f32.partialorder %v166, 0.0
    %v168 = vsel %vm167, -1e+20, 0.0
    %s169 = scalar_lea.vmem [#allocation8], 8
    %v170 = vld [vmem:[%s169] sm:$0xff]
    %vm171 = vcmp.eq.f32.partialorder %v170, 0.0
    %v172 = vsel %vm171, -1e+20, 0.0
    %v173 = vld [vmem:[%s4] sm:$0x1]
    %vm174 = vcmp.eq.f32.partialorder %v173, 0.0
    %v175 = vsel %vm174, -1e+20, 0.0
    %s176 = scalar_lea.vmem %s4, 1
    %v177 = vld [vmem:[%s176] sm:$0x1]
    %vm178 = vcmp.eq.f32.partialorder %v177, 0.0
    %v179 = vsel %vm178, -1e+20, 0.0
    %vm180 = vcmask 261120
    %v182 = vsel %vm180, %v156, 0
    %v185 = vsel %vm180, %v157, 0
    %187 = vmatprep.subr.mxu0 0.0
    %188 = vmatpush1.msra.mxu0 %v117
    %189 = vmatprep.subr.mxu0 0.0
    %190 = vmatpush1.msra.mxu0 %v118
    %191 = vmatprep.subr.mxu0 0.0
    %192 = vmatpush1.msra.mxu0 %v119
    %193 = vmatprep.subr.mxu0 0.0
    %194 = vmatpush1.msra.mxu0 %v120
    %195 = vmatprep.subr.mxu0 0.0
    %196 = vmatpush1.msra.mxu0 0.0
    %197 = vmatprep.subr.mxu0 0.0
    %198 = vmatpush1.msra.mxu0 0.0
    %199 = vmatprep.subr.mxu0 0.0
    %200 = vmatpush1.msra.mxu0 0.0
    %201 = vmatprep.subr.mxu0 0.0
    %202 = vmatpush1.msra.mxu0 0.0
    %203 = vmatprep.subr.mxu0 0.0
    %204 = vmatpush1.msra.mxu0 0.0
    %205 = vmatprep.subr.mxu0 0.0
    %206 = vmatpush1.msra.mxu0 0.0
    %207 = vmatprep.subr.mxu0 0.0
    %208 = vmatpush1.msra.mxu0 0.0
    %209 = vmatprep.subr.mxu0 0.0
    %210 = vmatpush1.msra.mxu0 0.0
    %211 = vmatprep.subr.mxu0 0.0
    %212 = vmatpush1.msra.mxu0 0.0
    %213 = vmatprep.subr.mxu0 0.0
    %214 = vmatpush1.msra.mxu0 0.0
    %215 = vmatprep.subr.mxu0 0.0
    %216 = vmatpush1.msra.mxu0 0.0
    %217 = vmatprep.subr.mxu0 0.0
    %218 = vmatpush1.msra.mxu0 0.0
    %219 = vmatprep.subr.mxu0 0.0
    %220 = vmatpush1.msra.mxu0 0.0
    %221 = vmatprep.subr.mxu0 0.0
    %222 = vmatpush1.msra.mxu0 0.0
    %223 = vmatprep.subr.mxu0 0.0
    %224 = vmatpush1.msra.mxu0 0.0
    %225 = vmatprep.subr.mxu0 0.0
    %226 = vmatpush1.msra.mxu0 0.0
    %227 = vmatprep.subr.mxu0 0.0
    %228 = vmatpush1.msra.mxu0 0.0
    %229 = vmatprep.subr.mxu0 0.0
    %230 = vmatpush1.msra.mxu0 0.0
    %231 = vmatprep.subr.mxu0 0.0
    %232 = vmatpush1.msra.mxu0 0.0
    %233 = vmatprep.subr.mxu0 0.0
    %234 = vmatpush1.msra.mxu0 0.0
    %235 = vmatprep.subr.mxu0 0.0
    %236 = vmatpush1.msra.mxu0 0.0
    %237 = vmatprep.subr.mxu0 0.0
    %238 = vmatpush1.msra.mxu0 0.0
    %239 = vmatprep.subr.mxu0 0.0
    %240 = vmatpush1.msra.mxu0 0.0
    %241 = vmatprep.subr.mxu0 0.0
    %242 = vmatpush1.msra.mxu0 0.0
    %243 = vmatprep.subr.mxu0 0.0
    %244 = vmatpush1.msra.mxu0 0.0
    %245 = vmatprep.subr.mxu0 0.0
    %246 = vmatpush1.msra.mxu0 0.0
    %247 = vmatprep.subr.mxu0 0.0
    %248 = vmatpush1.msra.mxu0 0.0
    %249 = vmatprep.subr.mxu0 0.0
    %250 = vmatpush1.msra.mxu0 0.0
    %251 = vmatprep.mubr.f32.mxu0 0.0
    %252 = vmatmul.mubr.f32.gmra.mrb[0].mxu0 %v182
    %v253 = vpop.f32.mrb[0].mxu0
    %v254 = vadd.f32 0.0, %v253
    %v255 = vpop.f32.mrb[0].mxu0
    %256 = vmatprep.mubr.f32.mxu0 0.0
    %257 = vmatmul.mubr.f32.gmra.mrb[0].mxu0 %v185
    %v258 = vpop.f32.mrb[0].mxu0
    %v259 = vadd.f32 0.0, %v258
    %v260 = vpop.f32.mrb[0].mxu0
    %261 = vdwg.mxu0
    %262 = vmatprep.subr.mxu0 0.0
    %263 = vmatpush1.msra.mxu0 %v122
    %264 = vmatprep.subr.mxu0 0.0
    %265 = vmatpush1.msra.mxu0 %v123
    %266 = vmatprep.subr.mxu0 0.0
    %267 = vmatpush1.msra.mxu0 %v124
    %268 = vmatprep.subr.mxu0 0.0
    %269 = vmatpush1.msra.mxu0 %v125
    %270 = vmatprep.subr.mxu0 0.0
    %271 = vmatpush1.msra.mxu0 0.0
    %272 = vmatprep.subr.mxu0 0.0
    %273 = vmatpush1.msra.mxu0 0.0
    %274 = vmatprep.subr.mxu0 0.0
    %275 = vmatpush1.msra.mxu0 0.0
    %276 = vmatprep.subr.mxu0 0.0
    %277 = vmatpush1.msra.mxu0 0.0
    %278 = vmatprep.subr.mxu0 0.0
    %279 = vmatpush1.msra.mxu0 0.0
    %280 = vmatprep.subr.mxu0 0.0
    %281 = vmatpush1.msra.mxu0 0.0
    %282 = vmatprep.subr.mxu0 0.0
    %283 = vmatpush1.msra.mxu0 0.0
    %284 = vmatprep.subr.mxu0 0.0
    %285 = vmatpush1.msra.mxu0 0.0
    %286 = vmatprep.subr.mxu0 0.0
    %287 = vmatpush1.msra.mxu0 0.0
    %288 = vmatprep.subr.mxu0 0.0
    %289 = vmatpush1.msra.mxu0 0.0
    %290 = vmatprep.subr.mxu0 0.0
    %291 = vmatpush1.msra.mxu0 0.0
    %292 = vmatprep.subr.mxu0 0.0
    %293 = vmatpush1.msra.mxu0 0.0
    %294 = vmatprep.subr.mxu0 0.0
    %295 = vmatpush1.msra.mxu0 0.0
    %296 = vmatprep.subr.mxu0 0.0
    %297 = vmatpush1.msra.mxu0 0.0
    %298 = vmatprep.subr.mxu0 0.0
    %299 = vmatpush1.msra.mxu0 0.0
    %300 = vmatprep.subr.mxu0 0.0
    %301 = vmatpush1.msra.mxu0 0.0
    %302 = vmatprep.subr.mxu0 0.0
    %303 = vmatpush1.msra.mxu0 0.0
    %304 = vmatprep.subr.mxu0 0.0
    %305 = vmatpush1.msra.mxu0 0.0
    %306 = vmatprep.subr.mxu0 0.0
    %307 = vmatpush1.msra.mxu0 0.0
    %308 = vmatprep.subr.mxu0 0.0
    %309 = vmatpush1.msra.mxu0 0.0
    %310 = vmatprep.subr.mxu0 0.0
    %311 = vmatpush1.msra.mxu0 0.0
    %312 = vmatprep.subr.mxu0 0.0
    %313 = vmatpush1.msra.mxu0 0.0
    %314 = vmatprep.subr.mxu0 0.0
    %315 = vmatpush1.msra.mxu0 0.0
    %316 = vmatprep.subr.mxu0 0.0
    %317 = vmatpush1.msra.mxu0 0.0
    %318 = vmatprep.subr.mxu0 0.0
    %319 = vmatpush1.msra.mxu0 0.0
    %320 = vmatprep.subr.mxu0 0.0
    %321 = vmatpush1.msra.mxu0 0.0
    %322 = vmatprep.subr.mxu0 0.0
    %323 = vmatpush1.msra.mxu0 0.0
    %324 = vmatprep.subr.mxu0 0.0
    %325 = vmatpush1.msra.mxu0 0.0
    %326 = vmatprep.mubr.f32.mxu0 0.0
    %327 = vmatmul.mubr.f32.gmra.mrb[0].mxu0 %v182
    %v328 = vpop.f32.mrb[0].mxu0
    %v329 = vadd.f32 0.0, %v328
    %v330 = vpop.f32.mrb[0].mxu0
    %331 = vmatprep.mubr.f32.mxu0 0.0
    %332 = vmatmul.mubr.f32.gmra.mrb[0].mxu0 %v185
    %v333 = vpop.f32.mrb[0].mxu0
    %v334 = vadd.f32 0.0, %v333
    %v335 = vpop.f32.mrb[0].mxu0
    %336 = vdwg.mxu0
    %vm337 = vcmask 64512
    %v338 = vsel %vm337, %v156, 0
    %v341 = vsel %vm337, %v329, 0
    %343 = vmatprep.subr.mxu0 0.0
    %344 = vmatpush1.xpose.msra.mxu0 %v341
    %345 = vmatprep.subr.mxu0 0.0
    %346 = vmatpush1.xpose.msra.mxu0 0.0
    %347 = vmatprep.subr.mxu0 0.0
    %348 = vmatpush1.xpose.msra.mxu0 0.0
    %349 = vmatprep.subr.mxu0 0.0
    %350 = vmatpush1.xpose.msra.mxu0 0.0
    %351 = vmatprep.subr.mxu0 0.0
    %352 = vmatpush1.xpose.msra.mxu0 0.0
    %353 = vmatprep.subr.mxu0 0.0
    %354 = vmatpush1.xpose.msra.mxu0 0.0
    %355 = vmatprep.subr.mxu0 0.0
    %356 = vmatpush1.xpose.msra.mxu0 0.0
    %357 = vmatprep.subr.mxu0 0.0
    %358 = vmatpush1.xpose.msra.mxu0 0.0
    %359 = vmatprep.subr.mxu0 0.0
    %360 = vmatpush1.xpose.msra.mxu0 0.0
    %361 = vmatprep.subr.mxu0 0.0
    %362 = vmatpush1.xpose.msra.mxu0 0.0
    %363 = vmatprep.subr.mxu0 0.0
    %364 = vmatpush1.xpose.msra.mxu0 0.0
    %365 = vmatprep.subr.mxu0 0.0
    %366 = vmatpush1.xpose.msra.mxu0 0.0
    %367 = vmatprep.subr.mxu0 0.0
    %368 = vmatpush1.xpose.msra.mxu0 0.0
    %369 = vmatprep.subr.mxu0 0.0
    %370 = vmatpush1.xpose.msra.mxu0 0.0
    %371 = vmatprep.subr.mxu0 0.0
    %372 = vmatpush1.xpose.msra.mxu0 0.0
    %373 = vmatprep.subr.mxu0 0.0
    %374 = vmatpush1.xpose.msra.mxu0 0.0
    %375 = vmatprep.subr.mxu0 0.0
    %376 = vmatpush1.xpose.msra.mxu0 0.0
    %377 = vmatprep.subr.mxu0 0.0
    %378 = vmatpush1.xpose.msra.mxu0 0.0
    %379 = vmatprep.subr.mxu0 0.0
    %380 = vmatpush1.xpose.msra.mxu0 0.0
    %381 = vmatprep.subr.mxu0 0.0
    %382 = vmatpush1.xpose.msra.mxu0 0.0
    %383 = vmatprep.subr.mxu0 0.0
    %384 = vmatpush1.xpose.msra.mxu0 0.0
    %385 = vmatprep.subr.mxu0 0.0
    %386 = vmatpush1.xpose.msra.mxu0 0.0
    %387 = vmatprep.subr.mxu0 0.0
    %388 = vmatpush1.xpose.msra.mxu0 0.0
    %389 = vmatprep.subr.mxu0 0.0
    %390 = vmatpush1.xpose.msra.mxu0 0.0
    %391 = vmatprep.subr.mxu0 0.0
    %392 = vmatpush1.xpose.msra.mxu0 0.0
    %393 = vmatprep.subr.mxu0 0.0
    %394 = vmatpush1.xpose.msra.mxu0 0.0
    %395 = vmatprep.subr.mxu0 0.0
    %396 = vmatpush1.xpose.msra.mxu0 0.0
    %397 = vmatprep.subr.mxu0 0.0
    %398 = vmatpush1.xpose.msra.mxu0 0.0
    %399 = vmatprep.subr.mxu0 0.0
    %400 = vmatpush1.xpose.msra.mxu0 0.0
    %401 = vmatprep.subr.mxu0 0.0
    %402 = vmatpush1.xpose.msra.mxu0 0.0
    %403 = vmatprep.subr.mxu0 0.0
    %404 = vmatpush1.xpose.msra.mxu0 0.0
    %405 = vmatprep.subr.mxu0 0.0
    %406 = vmatpush1.xpose.msra.mxu0 0.0
    %407 = vmatprep.mubr.f32.mxu0 0.0
    %408 = vmatmul.mubr.f32.gmra.mrb[0].mxu0 %v338
    %v409 = vpop.f32.mrb[0].mxu0
    %v410 = vadd.f32 %v168, %v409
    %v411 = vpop.f32.mrb[0].mxu0
    %412 = vdwg.mxu0
    %v413 = vmul.f32 %v410, 0.17677669
    %v414 = vsel %vm337, %v413, -inf
    %415 = vmax.xlane.f32.xlu0 %v414
    %v416 = vpop.xlane.xlu0 %415
    %v417 = vsub.f32 %v413, %v416
    %v418 = vmul.f32 %v417, 1.442695
    %v419 = vpow.pop %v418
    %v420 = vsel %vm337, %v419, 0.0
    %421 = vadd.xlane.f32.xlu0 %v420
    %v422 = vpop.xlane.xlu0 %421
    %v423 = vrcp.pop %v422
    %v424 = vmul.f32 %v419, %v423
    %v426 = vsel %vm337, %v424, 0
    %428 = vmatprep.subr.mxu0 0.0
    %429 = vmatpush1.msra.mxu0 %v254
    %430 = vmatprep.subr.mxu0 0.0
    %431 = vmatpush1.msra.mxu0 0.0
    %432 = vmatprep.subr.mxu0 0.0
    %433 = vmatpush1.msra.mxu0 0.0
    %434 = vmatprep.subr.mxu0 0.0
    %435 = vmatpush1.msra.mxu0 0.0
    %436 = vmatprep.subr.mxu0 0.0
    %437 = vmatpush1.msra.mxu0 0.0
    %438 = vmatprep.subr.mxu0 0.0
    %439 = vmatpush1.msra.mxu0 0.0
    %440 = vmatprep.subr.mxu0 0.0
    %441 = vmatpush1.msra.mxu0 0.0
    %442 = vmatprep.subr.mxu0 0.0
    %443 = vmatpush1.msra.mxu0 0.0
    %444 = vmatprep.subr.mxu0 0.0
    %445 = vmatpush1.msra.mxu0 0.0
    %446 = vmatprep.subr.mxu0 0.0
    %447 = vmatpush1.msra.mxu0 0.0
    %448 = vmatprep.subr.mxu0 0.0
    %449 = vmatpush1.msra.mxu0 0.0
    %450 = vmatprep.subr.mxu0 0.0
    %451 = vmatpush1.msra.mxu0 0.0
    %452 = vmatprep.subr.mxu0 0.0
    %453 = vmatpush1.msra.mxu0 0.0
    %454 = vmatprep.subr.mxu0 0.0
    %455 = vmatpush1.msra.mxu0 0.0
    %456 = vmatprep.subr.mxu0 0.0
    %457 = vmatpush1.msra.mxu0 0.0
    %458 = vmatprep.subr.mxu0 0.0
    %459 = vmatpush1.msra.mxu0 0.0
    %460 = vmatprep.subr.mxu0 0.0
    %461 = vmatpush1.msra.mxu0 0.0
    %462 = vmatprep.subr.mxu0 0.0
    %463 = vmatpush1.msra.mxu0 0.0
    %464 = vmatprep.subr.mxu0 0.0
    %465 = vmatpush1.msra.mxu0 0.0
    %466 = vmatprep.subr.mxu0 0.0
    %467 = vmatpush1.msra.mxu0 0.0
    %468 = vmatprep.subr.mxu0 0.0
    %469 = vmatpush1.msra.mxu0 0.0
    %470 = vmatprep.subr.mxu0 0.0
    %471 = vmatpush1.msra.mxu0 0.0
    %472 = vmatprep.subr.mxu0 0.0
    %473 = vmatpush1.msra.mxu0 0.0
    %474 = vmatprep.subr.mxu0 0.0
    %475 = vmatpush1.msra.mxu0 0.0
    %476 = vmatprep.subr.mxu0 0.0
    %477 = vmatpush1.msra.mxu0 0.0
    %478 = vmatprep.subr.mxu0 0.0
    %479 = vmatpush1.msra.mxu0 0.0
    %480 = vmatprep.subr.mxu0 0.0
    %481 = vmatpush1.msra.mxu0 0.0
    %482 = vmatprep.subr.mxu0 0.0
    %483 = vmatpush1.msra.mxu0 0.0
    %484 = vmatprep.subr.mxu0 0.0
    %485 = vmatpush1.msra.mxu0 0.0
    %486 = vmatprep.subr.mxu0 0.0
    %487 = vmatpush1.msra.mxu0 0.0
    %488 = vmatprep.subr.mxu0 0.0
    %489 = vmatpush1.msra.mxu0 0.0
    %490 = vmatprep.subr.mxu0 0.0
    %491 = vmatpush1.msra.mxu0 0.0
    %492 = vmatprep.mubr.f32.mxu0 0.0
    %493 = vmatmul.mubr.f32.gmra.mrb[0].mxu0 %v426
    %v494 = vpop.f32.mrb[0].mxu0
    %v495 = vadd.f32 0.0, %v494
    %v496 = vpop.f32.mrb[0].mxu0
    %497 = vdwg.mxu0
    %498 = vrot.lane.b32.xlu0 %v156, 120
    %v499 = vpop.permute.xlu0 %498
    %500 = vrot.lane.b32.xlu0 %v329, 120
    %v501 = vpop.permute.xlu0 %500
    %v502 = vsel %vm337, %v499, 0
    %v504 = vsel %vm337, %v501, 0
    %506 = vmatprep.subr.mxu0 0.0
    %507 = vmatpush1.xpose.msra.mxu0 %v504
    %508 = vmatprep.subr.mxu0 0.0
    %509 = vmatpush1.xpose.msra.mxu0 0.0
    %510 = vmatprep.subr.mxu0 0.0
    %511 = vmatpush1.xpose.msra.mxu0 0.0
    %512 = vmatprep.subr.mxu0 0.0
    %513 = vmatpush1.xpose.msra.mxu0 0.0
    %514 = vmatprep.subr.mxu0 0.0
    %515 = vmatpush1.xpose.msra.mxu0 0.0
    %516 = vmatprep.subr.mxu0 0.0
    %517 = vmatpush1.xpose.msra.mxu0 0.0
    %518 = vmatprep.subr.mxu0 0.0
    %519 = vmatpush1.xpose.msra.mxu0 0.0
    %520 = vmatprep.subr.mxu0 0.0
    %521 = vmatpush1.xpose.msra.mxu0 0.0
    %522 = vmatprep.subr.mxu0 0.0
    %523 = vmatpush1.xpose.msra.mxu0 0.0
    %524 = vmatprep.subr.mxu0 0.0
    %525 = vmatpush1.xpose.msra.mxu0 0.0
    %526 = vmatprep.subr.mxu0 0.0
    %527 = vmatpush1.xpose.msra.mxu0 0.0
    %528 = vmatprep.subr.mxu0 0.0
    %529 = vmatpush1.xpose.msra.mxu0 0.0
    %530 = vmatprep.subr.mxu0 0.0
    %531 = vmatpush1.xpose.msra.mxu0 0.0
    %532 = vmatprep.subr.mxu0 0.0
    %533 = vmatpush1.xpose.msra.mxu0 0.0
    %534 = vmatprep.subr.mxu0 0.0
    %535 = vmatpush1.xpose.msra.mxu0 0.0
    %536 = vmatprep.subr.mxu0 0.0
    %537 = vmatpush1.xpose.msra.mxu0 0.0
    %538 = vmatprep.subr.mxu0 0.0
    %539 = vmatpush1.xpose.msra.mxu0 0.0
    %540 = vmatprep.subr.mxu0 0.0
    %541 = vmatpush1.xpose.msra.mxu0 0.0
    %542 = vmatprep.subr.mxu0 0.0
    %543 = vmatpush1.xpose.msra.mxu0 0.0
    %544 = vmatprep.subr.mxu0 0.0
    %545 = vmatpush1.xpose.msra.mxu0 0.0
    %546 = vmatprep.subr.mxu0 0.0
    %547 = vmatpush1.xpose.msra.mxu0 0.0
    %548 = vmatprep.subr.mxu0 0.0
    %549 = vmatpush1.xpose.msra.mxu0 0.0
    %550 = vmatprep.subr.mxu0 0.0
    %551 = vmatpush1.xpose.msra.mxu0 0.0
    %552 = vmatprep.subr.mxu0 0.0
    %553 = vmatpush1.xpose.msra.mxu0 0.0
    %554 = vmatprep.subr.mxu0 0.0
    %555 = vmatpush1.xpose.msra.mxu0 0.0
    %556 = vmatprep.subr.mxu0 0.0
    %557 = vmatpush1.xpose.msra.mxu0 0.0
    %558 = vmatprep.subr.mxu0 0.0
    %559 = vmatpush1.xpose.msra.mxu0 0.0
    %560 = vmatprep.subr.mxu0 0.0
    %561 = vmatpush1.xpose.msra.mxu0 0.0
    %562 = vmatprep.subr.mxu0 0.0
    %563 = vmatpush1.xpose.msra.mxu0 0.0
    %564 = vmatprep.subr.mxu0 0.0
    %565 = vmatpush1.xpose.msra.mxu0 0.0
    %566 = vmatprep.subr.mxu0 0.0
    %567 = vmatpush1.xpose.msra.mxu0 0.0
    %568 = vmatprep.subr.mxu0 0.0
    %569 = vmatpush1.xpose.msra.mxu0 0.0
    %570 = vmatprep.mubr.f32.mxu0 0.0
    %571 = vmatmul.mubr.f32.gmra.mrb[0].mxu0 %v502
    %v572 = vpop.f32.mrb[0].mxu0
    %v573 = vadd.f32 %v168, %v572
    %v574 = vpop.f32.mrb[0].mxu0
    %575 = vdwg.mxu0
    %v576 = vmul.f32 %v573, 0.17677669
    %v577 = vsel %vm337, %v576, -inf
    %578 = vmax.xlane.f32.xlu0 %v577
    %v579 = vpop.xlane.xlu0 %578
    %v580 = vsub.f32 %v576, %v579
    %v581 = vmul.f32 %v580, 1.442695
    %v582 = vpow.pop %v581
    %v583 = vsel %vm337, %v582, 0.0
    %584 = vadd.xlane.f32.xlu0 %v583
    %v585 = vpop.xlane.xlu0 %584
    %v586 = vrcp.pop %v585
    %v587 = vmul.f32 %v582, %v586
    %589 = vrot.lane.b32.xlu0 %v254, 120
    %v590 = vpop.permute.xlu0 %589
    %v593 = vsel %vm337, %v587, 0
    %595 = vmatprep.subr.mxu0 0.0
    %596 = vmatpush1.msra.mxu0 %v590
    %597 = vmatprep.subr.mxu0 0.0
    %598 = vmatpush1.msra.mxu0 0.0
    %599 = vmatprep.subr.mxu0 0.0
    %600 = vmatpush1.msra.mxu0 0.0
    %601 = vmatprep.subr.mxu0 0.0
    %602 = vmatpush1.msra.mxu0 0.0
    %603 = vmatprep.subr.mxu0 0.0
    %604 = vmatpush1.msra.mxu0 0.0
    %605 = vmatprep.subr.mxu0 0.0
    %606 = vmatpush1.msra.mxu0 0.0
    %607 = vmatprep.subr.mxu0 0.0
    %608 = vmatpush1.msra.mxu0 0.0
    %609 = vmatprep.subr.mxu0 0.0
    %610 = vmatpush1.msra.mxu0 0.0
    %611 = vmatprep.subr.mxu0 0.0
    %612 = vmatpush1.msra.mxu0 0.0
    %613 = vmatprep.subr.mxu0 0.0
    %614 = vmatpush1.msra.mxu0 0.0
    %615 = vmatprep.subr.mxu0 0.0
    %616 = vmatpush1.msra.mxu0 0.0
    %617 = vmatprep.subr.mxu0 0.0
    %618 = vmatpush1.msra.mxu0 0.0
    %619 = vmatprep.subr.mxu0 0.0
    %620 = vmatpush1.msra.mxu0 0.0
    %621 = vmatprep.subr.mxu0 0.0
    %622 = vmatpush1.msra.mxu0 0.0
    %623 = vmatprep.subr.mxu0 0.0
    %624 = vmatpush1.msra.mxu0 0.0
    %625 = vmatprep.subr.mxu0 0.0
    %626 = vmatpush1.msra.mxu0 0.0
    %627 = vmatprep.subr.mxu0 0.0
    %628 = vmatpush1.msra.mxu0 0.0
    %629 = vmatprep.subr.mxu0 0.0
    %630 = vmatpush1.msra.mxu0 0.0
    %631 = vmatprep.subr.mxu0 0.0
    %632 = vmatpush1.msra.mxu0 0.0
    %633 = vmatprep.subr.mxu0 0.0
    %634 = vmatpush1.msra.mxu0 0.0
    %635 = vmatprep.subr.mxu0 0.0
    %636 = vmatpush1.msra.mxu0 0.0
    %637 = vmatprep.subr.mxu0 0.0
    %638 = vmatpush1.msra.mxu0 0.0
    %639 = vmatprep.subr.mxu0 0.0
    %640 = vmatpush1.msra.mxu0 0.0
    %641 = vmatprep.subr.mxu0 0.0
    %642 = vmatpush1.msra.mxu0 0.0
    %643 = vmatprep.subr.mxu0 0.0
    %644 = vmatpush1.msra.mxu0 0.0
    %645 = vmatprep.subr.mxu0 0.0
    %646 = vmatpush1.msra.mxu0 0.0
    %647 = vmatprep.subr.mxu0 0.0
    %648 = vmatpush1.msra.mxu0 0.0
    %649 = vmatprep.subr.mxu0 0.0
    %650 = vmatpush1.msra.mxu0 0.0
    %651 = vmatprep.subr.mxu0 0.0
    %652 = vmatpush1.msra.mxu0 0.0
    %653 = vmatprep.subr.mxu0 0.0
    %654 = vmatpush1.msra.mxu0 0.0
    %655 = vmatprep.subr.mxu0 0.0
    %656 = vmatpush1.msra.mxu0 0.0
    %657 = vmatprep.subr.mxu0 0.0
    %658 = vmatpush1.msra.mxu0 0.0
    %659 = vmatprep.mubr.f32.mxu0 0.0
    %660 = vmatmul.mubr.f32.gmra.mrb[0].mxu0 %v593
    %v661 = vpop.f32.mrb[0].mxu0
    %v662 = vadd.f32 0.0, %v661
    %v663 = vpop.f32.mrb[0].mxu0
    %664 = vdwg.mxu0
    %v666 = vsel %vm337, %v662, 0
    %668 = vmatprep.subr.mxu0 0.0
    %669 = vmatpush1.msra.mxu0 %v128
    %670 = vmatprep.subr.mxu0 0.0
    %671 = vmatpush1.msra.mxu0 0.0
    %672 = vmatprep.subr.mxu0 0.0
    %673 = vmatpush1.msra.mxu0 0.0
    %674 = vmatprep.subr.mxu0 0.0
    %675 = vmatpush1.msra.mxu0 0.0
    %676 = vmatprep.subr.mxu0 0.0
    %677 = vmatpush1.msra.mxu0 0.0
    %678 = vmatprep.subr.mxu0 0.0
    %679 = vmatpush1.msra.mxu0 0.0
    %680 = vmatprep.subr.mxu0 0.0
    %681 = vmatpush1.msra.mxu0 0.0
    %682 = vmatprep.subr.mxu0 0.0
    %683 = vmatpush1.msra.mxu0 0.0
    %684 = vmatprep.subr.mxu0 0.0
    %685 = vmatpush1.msra.mxu0 0.0
    %686 = vmatprep.subr.mxu0 0.0
    %687 = vmatpush1.msra.mxu0 0.0
    %688 = vmatprep.subr.mxu0 0.0
    %689 = vmatpush1.msra.mxu0 0.0
    %690 = vmatprep.subr.mxu0 0.0
    %691 = vmatpush1.msra.mxu0 0.0
    %692 = vmatprep.subr.mxu0 0.0
    %693 = vmatpush1.msra.mxu0 0.0
    %694 = vmatprep.subr.mxu0 0.0
    %695 = vmatpush1.msra.mxu0 0.0
    %696 = vmatprep.subr.mxu0 0.0
    %697 = vmatpush1.msra.mxu0 0.0
    %698 = vmatprep.subr.mxu0 0.0
    %699 = vmatpush1.msra.mxu0 0.0
    %700 = vmatprep.subr.mxu0 0.0
    %701 = vmatpush1.msra.mxu0 0.0
    %702 = vmatprep.subr.mxu0 0.0
    %703 = vmatpush1.msra.mxu0 0.0
    %704 = vmatprep.subr.mxu0 0.0
    %705 = vmatpush1.msra.mxu0 0.0
    %706 = vmatprep.subr.mxu0 0.0
    %707 = vmatpush1.msra.mxu0 0.0
    %708 = vmatprep.subr.mxu0 0.0
    %709 = vmatpush1.msra.mxu0 0.0
    %710 = vmatprep.subr.mxu0 0.0
    %711 = vmatpush1.msra.mxu0 0.0
    %712 = vmatprep.subr.mxu0 0.0
    %713 = vmatpush1.msra.mxu0 0.0
    %714 = vmatprep.subr.mxu0 0.0
    %715 = vmatpush1.msra.mxu0 0.0
    %716 = vmatprep.subr.mxu0 0.0
    %717 = vmatpush1.msra.mxu0 0.0
    %718 = vmatprep.subr.mxu0 0.0
    %719 = vmatpush1.msra.mxu0 0.0
    %720 = vmatprep.subr.mxu0 0.0
    %721 = vmatpush1.msra.mxu0 0.0
    %722 = vmatprep.subr.mxu0 0.0
    %723 = vmatpush1.msra.mxu0 0.0
    %724 = vmatprep.subr.mxu0 0.0
    %725 = vmatpush1.msra.mxu0 0.0
    %726 = vmatprep.subr.mxu0 0.0
    %727 = vmatpush1.msra.mxu0 0.0
    %728 = vmatprep.subr.mxu0 0.0
    %729 = vmatpush1.msra.mxu0 0.0
    %730 = vmatprep.subr.mxu0 0.0
    %731 = vmatpush1.msra.mxu0 0.0
    %732 = vmatprep.mubr.f32.mxu0 0.0
    %733 = vmatmul.mubr.f32.gmra.mrb[0].mxu0 %v666
    %v734 = vpop.f32.mrb[0].mxu0
    %v735 = vadd.f32 0.0, %v734
    %v736 = vpop.f32.mrb[0].mxu0
    %737 = vdwg.mxu0
    %v739 = vsel %vm337, %v495, 0
    %741 = vmatprep.subr.mxu0 0.0
    %742 = vmatpush1.msra.mxu0 %v127
    %743 = vmatprep.subr.mxu0 0.0
    %744 = vmatpush1.msra.mxu0 0.0
    %745 = vmatprep.subr.mxu0 0.0
    %746 = vmatpush1.msra.mxu0 0.0
    %747 = vmatprep.subr.mxu0 0.0
    %748 = vmatpush1.msra.mxu0 0.0
    %749 = vmatprep.subr.mxu0 0.0
    %750 = vmatpush1.msra.mxu0 0.0
    %751 = vmatprep.subr.mxu0 0.0
    %752 = vmatpush1.msra.mxu0 0.0
    %753 = vmatprep.subr.mxu0 0.0
    %754 = vmatpush1.msra.mxu0 0.0
    %755 = vmatprep.subr.mxu0 0.0
    %756 = vmatpush1.msra.mxu0 0.0
    %757 = vmatprep.subr.mxu0 0.0
    %758 = vmatpush1.msra.mxu0 0.0
    %759 = vmatprep.subr.mxu0 0.0
    %760 = vmatpush1.msra.mxu0 0.0
    %761 = vmatprep.subr.mxu0 0.0
    %762 = vmatpush1.msra.mxu0 0.0
    %763 = vmatprep.subr.mxu0 0.0
    %764 = vmatpush1.msra.mxu0 0.0
    %765 = vmatprep.subr.mxu0 0.0
    %766 = vmatpush1.msra.mxu0 0.0
    %767 = vmatprep.subr.mxu0 0.0
    %768 = vmatpush1.msra.mxu0 0.0
    %769 = vmatprep.subr.mxu0 0.0
    %770 = vmatpush1.msra.mxu0 0.0
    %771 = vmatprep.subr.mxu0 0.0
    %772 = vmatpush1.msra.mxu0 0.0
    %773 = vmatprep.subr.mxu0 0.0
    %774 = vmatpush1.msra.mxu0 0.0
    %775 = vmatprep.subr.mxu0 0.0
    %776 = vmatpush1.msra.mxu0 0.0
    %777 = vmatprep.subr.mxu0 0.0
    %778 = vmatpush1.msra.mxu0 0.0
    %779 = vmatprep.subr.mxu0 0.0
    %780 = vmatpush1.msra.mxu0 0.0
    %781 = vmatprep.subr.mxu0 0.0
    %782 = vmatpush1.msra.mxu0 0.0
    %783 = vmatprep.subr.mxu0 0.0
    %784 = vmatpush1.msra.mxu0 0.0
    %785 = vmatprep.subr.mxu0 0.0
    %786 = vmatpush1.msra.mxu0 0.0
    %787 = vmatprep.subr.mxu0 0.0
    %788 = vmatpush1.msra.mxu0 0.0
    %789 = vmatprep.subr.mxu0 0.0
    %790 = vmatpush1.msra.mxu0 0.0
    %791 = vmatprep.subr.mxu0 0.0
    %792 = vmatpush1.msra.mxu0 0.0
    %793 = vmatprep.subr.mxu0 0.0
    %794 = vmatpush1.msra.mxu0 0.0
    %795 = vmatprep.subr.mxu0 0.0
    %796 = vmatpush1.msra.mxu0 0.0
    %797 = vmatprep.subr.mxu0 0.0
    %798 = vmatpush1.msra.mxu0 0.0
    %799 = vmatprep.subr.mxu0 0.0
    %800 = vmatpush1.msra.mxu0 0.0
    %801 = vmatprep.subr.mxu0 0.0
    %802 = vmatpush1.msra.mxu0 0.0
    %803 = vmatprep.subr.mxu0 0.0
    %804 = vmatpush1.msra.mxu0 0.0
    %805 = vmatprep.mubr.f32.mxu0 0.0
    %806 = vmatmul.mubr.f32.gmra.mrb[0].mxu0 %v739
    %v807 = vpop.f32.mrb[0].mxu0
    %v808 = vadd.f32 %v735, %v807
    %v809 = vpop.f32.mrb[0].mxu0
    %810 = vdwg.mxu0
    %811 = vrot.lane.b32.xlu0 %v156, 112
    %v812 = vpop.permute.xlu0 %811
    %813 = vrot.lane.b32.xlu0 %v329, 112
    %v814 = vpop.permute.xlu0 %813
    %v815 = vsel %vm337, %v812, 0
    %v817 = vsel %vm337, %v814, 0
    %819 = vmatprep.subr.mxu0 0.0
    %820 = vmatpush1.xpose.msra.mxu0 %v817
    %821 = vmatprep.subr.mxu0 0.0
    %822 = vmatpush1.xpose.msra.mxu0 0.0
    %823 = vmatprep.subr.mxu0 0.0
    %824 = vmatpush1.xpose.msra.mxu0 0.0
    %825 = vmatprep.subr.mxu0 0.0
    %826 = vmatpush1.xpose.msra.mxu0 0.0
    %827 = vmatprep.subr.mxu0 0.0
    %828 = vmatpush1.xpose.msra.mxu0 0.0
    %829 = vmatprep.subr.mxu0 0.0
    %830 = vmatpush1.xpose.msra.mxu0 0.0
    %831 = vmatprep.subr.mxu0 0.0
    %832 = vmatpush1.xpose.msra.mxu0 0.0
    %833 = vmatprep.subr.mxu0 0.0
    %834 = vmatpush1.xpose.msra.mxu0 0.0
    %835 = vmatprep.subr.mxu0 0.0
    %836 = vmatpush1.xpose.msra.mxu0 0.0
    %837 = vmatprep.subr.mxu0 0.0
    %838 = vmatpush1.xpose.msra.mxu0 0.0
    %839 = vmatprep.subr.mxu0 0.0
    %840 = vmatpush1.xpose.msra.mxu0 0.0
    %841 = vmatprep.subr.mxu0 0.0
    %842 = vmatpush1.xpose.msra.mxu0 0.0
    %843 = vmatprep.subr.mxu0 0.0
    %844 = vmatpush1.xpose.msra.mxu0 0.0
    %845 = vmatprep.subr.mxu0 0.0
    %846 = vmatpush1.xpose.msra.mxu0 0.0
    %847 = vmatprep.subr.mxu0 0.0
    %848 = vmatpush1.xpose.msra.mxu0 0.0
    %849 = vmatprep.subr.mxu0 0.0
    %850 = vmatpush1.xpose.msra.mxu0 0.0
    %851 = vmatprep.subr.mxu0 0.0
    %852 = vmatpush1.xpose.msra.mxu0 0.0
    %853 = vmatprep.subr.mxu0 0.0
    %854 = vmatpush1.xpose.msra.mxu0 0.0
    %855 = vmatprep.subr.mxu0 0.0
    %856 = vmatpush1.xpose.msra.mxu0 0.0
    %857 = vmatprep.subr.mxu0 0.0
    %858 = vmatpush1.xpose.msra.mxu0 0.0
    %859 = vmatprep.subr.mxu0 0.0
    %860 = vmatpush1.xpose.msra.mxu0 0.0
    %861 = vmatprep.subr.mxu0 0.0
    %862 = vmatpush1.xpose.msra.mxu0 0.0
    %863 = vmatprep.subr.mxu0 0.0
    %864 = vmatpush1.xpose.msra.mxu0 0.0
    %865 = vmatprep.subr.mxu0 0.0
    %866 = vmatpush1.xpose.msra.mxu0 0.0
    %867 = vmatprep.subr.mxu0 0.0
    %868 = vmatpush1.xpose.msra.mxu0 0.0
    %869 = vmatprep.subr.mxu0 0.0
    %870 = vmatpush1.xpose.msra.mxu0 0.0
    %871 = vmatprep.subr.mxu0 0.0
    %872 = vmatpush1.xpose.msra.mxu0 0.0
    %873 = vmatprep.subr.mxu0 0.0
    %874 = vmatpush1.xpose.msra.mxu0 0.0
    %875 = vmatprep.subr.mxu0 0.0
    %876 = vmatpush1.xpose.msra.mxu0 0.0
    %877 = vmatprep.subr.mxu0 0.0
    %878 = vmatpush1.xpose.msra.mxu0 0.0
    %879 = vmatprep.subr.mxu0 0.0
    %880 = vmatpush1.xpose.msra.mxu0 0.0
    %881 = vmatprep.subr.mxu0 0.0
    %882 = vmatpush1.xpose.msra.mxu0 0.0
    %883 = vmatprep.mubr.f32.mxu0 0.0
    %884 = vmatmul.mubr.f32.gmra.mrb[0].mxu0 %v815
    %v885 = vpop.f32.mrb[0].mxu0
    %v886 = vadd.f32 %v168, %v885
    %v887 = vpop.f32.mrb[0].mxu0
    %888 = vdwg.mxu0
    %v889 = vmul.f32 %v886, 0.17677669
    %v890 = vsel %vm337, %v889, -inf
    %891 = vmax.xlane.f32.xlu0 %v890
    %v892 = vpop.xlane.xlu0 %891
    %v893 = vsub.f32 %v889, %v892
    %v894 = vmul.f32 %v893, 1.442695
    %v895 = vpow.pop %v894
    %v896 = vsel %vm337, %v895, 0.0
    %897 = vadd.xlane.f32.xlu0 %v896
    %v898 = vpop.xlane.xlu0 %897
    %v899 = vrcp.pop %v898
    %v900 = vmul.f32 %v895, %v899
    %901 = vrot.lane.b32.xlu0 %v254, 112
    %v902 = vpop.permute.xlu0 %901
    %v905 = vsel %vm337, %v900, 0
    %907 = vmatprep.subr.mxu0 0.0
    %908 = vmatpush1.msra.mxu0 %v902
    %909 = vmatprep.subr.mxu0 0.0
    %910 = vmatpush1.msra.mxu0 0.0
    %911 = vmatprep.subr.mxu0 0.0
    %912 = vmatpush1.msra.mxu0 0.0
    %913 = vmatprep.subr.mxu0 0.0
    %914 = vmatpush1.msra.mxu0 0.0
    %915 = vmatprep.subr.mxu0 0.0
    %916 = vmatpush1.msra.mxu0 0.0
    %917 = vmatprep.subr.mxu0 0.0
    %918 = vmatpush1.msra.mxu0 0.0
    %919 = vmatprep.subr.mxu0 0.0
    %920 = vmatpush1.msra.mxu0 0.0
    %921 = vmatprep.subr.mxu0 0.0
    %922 = vmatpush1.msra.mxu0 0.0
    %923 = vmatprep.subr.mxu0 0.0
    %924 = vmatpush1.msra.mxu0 0.0
    %925 = vmatprep.subr.mxu0 0.0
    %926 = vmatpush1.msra.mxu0 0.0
    %927 = vmatprep.subr.mxu0 0.0
    %928 = vmatpush1.msra.mxu0 0.0
    %929 = vmatprep.subr.mxu0 0.0
    %930 = vmatpush1.msra.mxu0 0.0
    %931 = vmatprep.subr.mxu0 0.0
    %932 = vmatpush1.msra.mxu0 0.0
    %933 = vmatprep.subr.mxu0 0.0
    %934 = vmatpush1.msra.mxu0 0.0
    %935 = vmatprep.subr.mxu0 0.0
    %936 = vmatpush1.msra.mxu0 0.0
    %937 = vmatprep.subr.mxu0 0.0
    %938 = vmatpush1.msra.mxu0 0.0
    %939 = vmatprep.subr.mxu0 0.0
    %940 = vmatpush1.msra.mxu0 0.0
    %941 = vmatprep.subr.mxu0 0.0
    %942 = vmatpush1.msra.mxu0 0.0
    %943 = vmatprep.subr.mxu0 0.0
    %944 = vmatpush1.msra.mxu0 0.0
    %945 = vmatprep.subr.mxu0 0.0
    %946 = vmatpush1.msra.mxu0 0.0
    %947 = vmatprep.subr.mxu0 0.0
    %948 = vmatpush1.msra.mxu0 0.0
    %949 = vmatprep.subr.mxu0 0.0
    %950 = vmatpush1.msra.mxu0 0.0
    %951 = vmatprep.subr.mxu0 0.0
    %952 = vmatpush1.msra.mxu0 0.0
    %953 = vmatprep.subr.mxu0 0.0
    %954 = vmatpush1.msra.mxu0 0.0
    %955 = vmatprep.subr.mxu0 0.0
    %956 = vmatpush1.msra.mxu0 0.0
    %957 = vmatprep.subr.mxu0 0.0
    %958 = vmatpush1.msra.mxu0 0.0
    %959 = vmatprep.subr.mxu0 0.0
    %960 = vmatpush1.msra.mxu0 0.0
    %961 = vmatprep.subr.mxu0 0.0
    %962 = vmatpush1.msra.mxu0 0.0
    %963 = vmatprep.subr.mxu0 0.0
    %964 = vmatpush1.msra.mxu0 0.0
    %965 = vmatprep.subr.mxu0 0.0
    %966 = vmatpush1.msra.mxu0 0.0
    %967 = vmatprep.subr.mxu0 0.0
    %968 = vmatpush1.msra.mxu0 0.0
    %969 = vmatprep.subr.mxu0 0.0
    %970 = vmatpush1.msra.mxu0 0.0
    %971 = vmatprep.mubr.f32.mxu0 0.0
    %972 = vmatmul.mubr.f32.gmra.mrb[0].mxu0 %v905
    %v973 = vpop.f32.mrb[0].mxu0
    %v974 = vadd.f32 0.0, %v973
    %v975 = vpop.f32.mrb[0].mxu0
    %976 = vdwg.mxu0
    %v978 = vsel %vm337, %v974, 0
    %980 = vmatprep.subr.mxu0 0.0
    %981 = vmatpush1.msra.mxu0 %v129
    %982 = vmatprep.subr.mxu0 0.0
    %983 = vmatpush1.msra.mxu0 0.0
    %984 = vmatprep.subr.mxu0 0.0
    %985 = vmatpush1.msra.mxu0 0.0
    %986 = vmatprep.subr.mxu0 0.0
    %987 = vmatpush1.msra.mxu0 0.0
    %988 = vmatprep.subr.mxu0 0.0
    %989 = vmatpush1.msra.mxu0 0.0
    %990 = vmatprep.subr.mxu0 0.0
    %991 = vmatpush1.msra.mxu0 0.0
    %992 = vmatprep.subr.mxu0 0.0
    %993 = vmatpush1.msra.mxu0 0.0
    %994 = vmatprep.subr.mxu0 0.0
    %995 = vmatpush1.msra.mxu0 0.0
    %996 = vmatprep.subr.mxu0 0.0
    %997 = vmatpush1.msra.mxu0 0.0
    %998 = vmatprep.subr.mxu0 0.0
    %999 = vmatpush1.msra.mxu0 0.0
    %1000 = vmatprep.subr.mxu0 0.0
    %1001 = vmatpush1.msra.mxu0 0.0
    %1002 = vmatprep.subr.mxu0 0.0
    %1003 = vmatpush1.msra.mxu0 0.0
    %1004 = vmatprep.subr.mxu0 0.0
    %1005 = vmatpush1.msra.mxu0 0.0
    %1006 = vmatprep.subr.mxu0 0.0
    %1007 = vmatpush1.msra.mxu0 0.0
    %1008 = vmatprep.subr.mxu0 0.0
    %1009 = vmatpush1.msra.mxu0 0.0
    %1010 = vmatprep.subr.mxu0 0.0
    %1011 = vmatpush1.msra.mxu0 0.0
    %1012 = vmatprep.subr.mxu0 0.0
    %1013 = vmatpush1.msra.mxu0 0.0
    %1014 = vmatprep.subr.mxu0 0.0
    %1015 = vmatpush1.msra.mxu0 0.0
    %1016 = vmatprep.subr.mxu0 0.0
    %1017 = vmatpush1.msra.mxu0 0.0
    %1018 = vmatprep.subr.mxu0 0.0
    %1019 = vmatpush1.msra.mxu0 0.0
    %1020 = vmatprep.subr.mxu0 0.0
    %1021 = vmatpush1.msra.mxu0 0.0
    %1022 = vmatprep.subr.mxu0 0.0
    %1023 = vmatpush1.msra.mxu0 0.0
    %1024 = vmatprep.subr.mxu0 0.0
    %1025 = vmatpush1.msra.mxu0 0.0
    %1026 = vmatprep.subr.mxu0 0.0
    %1027 = vmatpush1.msra.mxu0 0.0
    %1028 = vmatprep.subr.mxu0 0.0
    %1029 = vmatpush1.msra.mxu0 0.0
    %1030 = vmatprep.subr.mxu0 0.0
    %1031 = vmatpush1.msra.mxu0 0.0
    %1032 = vmatprep.subr.mxu0 0.0
    %1033 = vmatpush1.msra.mxu0 0.0
    %1034 = vmatprep.subr.mxu0 0.0
    %1035 = vmatpush1.msra.mxu0 0.0
    %1036 = vmatprep.subr.mxu0 0.0
    %1037 = vmatpush1.msra.mxu0 0.0
    %1038 = vmatprep.subr.mxu0 0.0
    %1039 = vmatpush1.msra.mxu0 0.0
    %1040 = vmatprep.subr.mxu0 0.0
    %1041 = vmatpush1.msra.mxu0 0.0
    %1042 = vmatprep.subr.mxu0 0.0
    %1043 = vmatpush1.msra.mxu0 0.0
    %1044 = vmatprep.mubr.f32.mxu0 0.0
    %1045 = vmatmul.mubr.f32.gmra.mrb[0].mxu0 %v978
    %v1046 = vpop.f32.mrb[0].mxu0
    %v1047 = vadd.f32 0.0, %v1046
    %v1048 = vpop.f32.mrb[0].mxu0
    %1049 = vdwg.mxu0
    %v1050 = vadd.f32 %v808, %v1047
    %1051 = vrot.lane.b32.xlu0 %v156, 104
    %v1052 = vpop.permute.xlu0 %1051
    %1053 = vrot.lane.b32.xlu0 %v329, 104
    %v1054 = vpop.permute.xlu0 %1053
    %v1055 = vsel %vm337, %v1052, 0
    %v1057 = vsel %vm337, %v1054, 0
    %1059 = vmatprep.subr.mxu0 0.0
    %1060 = vmatpush1.xpose.msra.mxu0 %v1057
    %1061 = vmatprep.subr.mxu0 0.0
    %1062 = vmatpush1.xpose.msra.mxu0 0.0
    %1063 = vmatprep.subr.mxu0 0.0
    %1064 = vmatpush1.xpose.msra.mxu0 0.0
    %1065 = vmatprep.subr.mxu0 0.0
    %1066 = vmatpush1.xpose.msra.mxu0 0.0
    %1067 = vmatprep.subr.mxu0 0.0
    %1068 = vmatpush1.xpose.msra.mxu0 0.0
    %1069 = vmatprep.subr.mxu0 0.0
    %1070 = vmatpush1.xpose.msra.mxu0 0.0
    %1071 = vmatprep.subr.mxu0 0.0
    %1072 = vmatpush1.xpose.msra.mxu0 0.0
    %1073 = vmatprep.subr.mxu0 0.0
    %1074 = vmatpush1.xpose.msra.mxu0 0.0
    %1075 = vmatprep.subr.mxu0 0.0
    %1076 = vmatpush1.xpose.msra.mxu0 0.0
    %1077 = vmatprep.subr.mxu0 0.0
    %1078 = vmatpush1.xpose.msra.mxu0 0.0
    %1079 = vmatprep.subr.mxu0 0.0
    %1080 = vmatpush1.xpose.msra.mxu0 0.0
    %1081 = vmatprep.subr.mxu0 0.0
    %1082 = vmatpush1.xpose.msra.mxu0 0.0
    %1083 = vmatprep.subr.mxu0 0.0
    %1084 = vmatpush1.xpose.msra.mxu0 0.0
    %1085 = vmatprep.subr.mxu0 0.0
    %1086 = vmatpush1.xpose.msra.mxu0 0.0
    %1087 = vmatprep.subr.mxu0 0.0
    %1088 = vmatpush1.xpose.msra.mxu0 0.0
    %1089 = vmatprep.subr.mxu0 0.0
    %1090 = vmatpush1.xpose.msra.mxu0 0.0
    %1091 = vmatprep.subr.mxu0 0.0
    %1092 = vmatpush1.xpose.msra.mxu0 0.0
    %1093 = vmatprep.subr.mxu0 0.0
    %1094 = vmatpush1.xpose.msra.mxu0 0.0
    %1095 = vmatprep.subr.mxu0 0.0
    %1096 = vmatpush1.xpose.msra.mxu0 0.0
    %1097 = vmatprep.subr.mxu0 0.0
    %1098 = vmatpush1.xpose.msra.mxu0 0.0
    %1099 = vmatprep.subr.mxu0 0.0
    %1100 = vmatpush1.xpose.msra.mxu0 0.0
    %1101 = vmatprep.subr.mxu0 0.0
    %1102 = vmatpush1.xpose.msra.mxu0 0.0
    %1103 = vmatprep.subr.mxu0 0.0
    %1104 = vmatpush1.xpose.msra.mxu0 0.0
    %1105 = vmatprep.subr.mxu0 0.0
    %1106 = vmatpush1.xpose.msra.mxu0 0.0
    %1107 = vmatprep.subr.mxu0 0.0
    %1108 = vmatpush1.xpose.msra.mxu0 0.0
    %1109 = vmatprep.subr.mxu0 0.0
    %1110 = vmatpush1.xpose.msra.mxu0 0.0
    %1111 = vmatprep.subr.mxu0 0.0
    %1112 = vmatpush1.xpose.msra.mxu0 0.0
    %1113 = vmatprep.subr.mxu0 0.0
    %1114 = vmatpush1.xpose.msra.mxu0 0.0
    %1115 = vmatprep.subr.mxu0 0.0
    %1116 = vmatpush1.xpose.msra.mxu0 0.0
    %1117 = vmatprep.subr.mxu0 0.0
    %1118 = vmatpush1.xpose.msra.mxu0 0.0
    %1119 = vmatprep.subr.mxu0 0.0
    %1120 = vmatpush1.xpose.msra.mxu0 0.0
    %1121 = vmatprep.subr.mxu0 0.0
    %1122 = vmatpush1.xpose.msra.mxu0 0.0
    %1123 = vmatprep.mubr.f32.mxu0 0.0
    %1124 = vmatmul.mubr.f32.gmra.mrb[0].mxu0 %v1055
    %v1125 = vpop.f32.mrb[0].mxu0
    %v1126 = vadd.f32 %v168, %v1125
    %v1127 = vpop.f32.mrb[0].mxu0
    %1128 = vdwg.mxu0
    %v1129 = vmul.f32 %v1126, 0.17677669
    %v1130 = vsel %vm337, %v1129, -inf
    %1131 = vmax.xlane.f32.xlu0 %v1130
    %v1132 = vpop.xlane.xlu0 %1131
    %v1133 = vsub.f32 %v1129, %v1132
    %v1134 = vmul.f32 %v1133, 1.442695
    %v1135 = vpow.pop %v1134
    %v1136 = vsel %vm337, %v1135, 0.0
    %1137 = vadd.xlane.f32.xlu0 %v1136
    %v1138 = vpop.xlane.xlu0 %1137
    %v1139 = vrcp.pop %v1138
    %v1140 = vmul.f32 %v1135, %v1139
    %1141 = vrot.lane.b32.xlu0 %v254, 104
    %v1142 = vpop.permute.xlu0 %1141
    %v1145 = vsel %vm337, %v1140, 0
    %1147 = vmatprep.subr.mxu0 0.0
    %1148 = vmatpush1.msra.mxu0 %v1142
    %1149 = vmatprep.subr.mxu0 0.0
    %1150 = vmatpush1.msra.mxu0 0.0
    %1151 = vmatprep.subr.mxu0 0.0
    %1152 = vmatpush1.msra.mxu0 0.0
    %1153 = vmatprep.subr.mxu0 0.0
    %1154 = vmatpush1.msra.mxu0 0.0
    %1155 = vmatprep.subr.mxu0 0.0
    %1156 = vmatpush1.msra.mxu0 0.0
    %1157 = vmatprep.subr.mxu0 0.0
    %1158 = vmatpush1.msra.mxu0 0.0
    %1159 = vmatprep.subr.mxu0 0.0
    %1160 = vmatpush1.msra.mxu0 0.0
    %1161 = vmatprep.subr.mxu0 0.0
    %1162 = vmatpush1.msra.mxu0 0.0
    %1163 = vmatprep.subr.mxu0 0.0
    %1164 = vmatpush1.msra.mxu0 0.0
    %1165 = vmatprep.subr.mxu0 0.0
    %1166 = vmatpush1.msra.mxu0 0.0
    %1167 = vmatprep.subr.mxu0 0.0
    %1168 = vmatpush1.msra.mxu0 0.0
    %1169 = vmatprep.subr.mxu0 0.0
    %1170 = vmatpush1.msra.mxu0 0.0
    %1171 = vmatprep.subr.mxu0 0.0
    %1172 = vmatpush1.msra.mxu0 0.0
    %1173 = vmatprep.subr.mxu0 0.0
    %1174 = vmatpush1.msra.mxu0 0.0
    %1175 = vmatprep.subr.mxu0 0.0
    %1176 = vmatpush1.msra.mxu0 0.0
    %1177 = vmatprep.subr.mxu0 0.0
    %1178 = vmatpush1.msra.mxu0 0.0
    %1179 = vmatprep.subr.mxu0 0.0
    %1180 = vmatpush1.msra.mxu0 0.0
    %1181 = vmatprep.subr.mxu0 0.0
    %1182 = vmatpush1.msra.mxu0 0.0
    %1183 = vmatprep.subr.mxu0 0.0
    %1184 = vmatpush1.msra.mxu0 0.0
    %1185 = vmatprep.subr.mxu0 0.0
    %1186 = vmatpush1.msra.mxu0 0.0
    %1187 = vmatprep.subr.mxu0 0.0
    %1188 = vmatpush1.msra.mxu0 0.0
    %1189 = vmatprep.subr.mxu0 0.0
    %1190 = vmatpush1.msra.mxu0 0.0
    %1191 = vmatprep.subr.mxu0 0.0
    %1192 = vmatpush1.msra.mxu0 0.0
    %1193 = vmatprep.subr.mxu0 0.0
    %1194 = vmatpush1.msra.mxu0 0.0
    %1195 = vmatprep.subr.mxu0 0.0
    %1196 = vmatpush1.msra.mxu0 0.0
    %1197 = vmatprep.subr.mxu0 0.0
    %1198 = vmatpush1.msra.mxu0 0.0
    %1199 = vmatprep.subr.mxu0 0.0
    %1200 = vmatpush1.msra.mxu0 0.0
    %1201 = vmatprep.subr.mxu0 0.0
    %1202 = vmatpush1.msra.mxu0 0.0
    %1203 = vmatprep.subr.mxu0 0.0
    %1204 = vmatpush1.msra.mxu0 0.0
    %1205 = vmatprep.subr.mxu0 0.0
    %1206 = vmatpush1.msra.mxu0 0.0
    %1207 = vmatprep.subr.mxu0 0.0
    %1208 = vmatpush1.msra.mxu0 0.0
    %1209 = vmatprep.subr.mxu0 0.0
    %1210 = vmatpush1.msra.mxu0 0.0
    %1211 = vmatprep.mubr.f32.mxu0 0.0
    %1212 = vmatmul.mubr.f32.gmra.mrb[0].mxu0 %v1145
    %v1213 = vpop.f32.mrb[0].mxu0
    %v1214 = vadd.f32 0.0, %v1213
    %v1215 = vpop.f32.mrb[0].mxu0
    %1216 = vdwg.mxu0
    %v1218 = vsel %vm337, %v1214, 0
    %1220 = vmatprep.subr.mxu0 0.0
    %1221 = vmatpush1.msra.mxu0 %v130
    %1222 = vmatprep.subr.mxu0 0.0
    %1223 = vmatpush1.msra.mxu0 0.0
    %1224 = vmatprep.subr.mxu0 0.0
    %1225 = vmatpush1.msra.mxu0 0.0
    %1226 = vmatprep.subr.mxu0 0.0
    %1227 = vmatpush1.msra.mxu0 0.0
    %1228 = vmatprep.subr.mxu0 0.0
    %1229 = vmatpush1.msra.mxu0 0.0
    %1230 = vmatprep.subr.mxu0 0.0
    %1231 = vmatpush1.msra.mxu0 0.0
    %1232 = vmatprep.subr.mxu0 0.0
    %1233 = vmatpush1.msra.mxu0 0.0
    %1234 = vmatprep.subr.mxu0 0.0
    %1235 = vmatpush1.msra.mxu0 0.0
    %1236 = vmatprep.subr.mxu0 0.0
    %1237 = vmatpush1.msra.mxu0 0.0
    %1238 = vmatprep.subr.mxu0 0.0
    %1239 = vmatpush1.msra.mxu0 0.0
    %1240 = vmatprep.subr.mxu0 0.0
    %1241 = vmatpush1.msra.mxu0 0.0
    %1242 = vmatprep.subr.mxu0 0.0
    %1243 = vmatpush1.msra.mxu0 0.0
    %1244 = vmatprep.subr.mxu0 0.0
    %1245 = vmatpush1.msra.mxu0 0.0
    %1246 = vmatprep.subr.mxu0 0.0
    %1247 = vmatpush1.msra.mxu0 0.0
    %1248 = vmatprep.subr.mxu0 0.0
    %1249 = vmatpush1.msra.mxu0 0.0
    %1250 = vmatprep.subr.mxu0 0.0
    %1251 = vmatpush1.msra.mxu0 0.0
    %1252 = vmatprep.subr.mxu0 0.0
    %1253 = vmatpush1.msra.mxu0 0.0
    %1254 = vmatprep.subr.mxu0 0.0
    %1255 = vmatpush1.msra.mxu0 0.0
    %1256 = vmatprep.subr.mxu0 0.0
    %1257 = vmatpush1.msra.mxu0 0.0
    %1258 = vmatprep.subr.mxu0 0.0
    %1259 = vmatpush1.msra.mxu0 0.0
    %1260 = vmatprep.subr.mxu0 0.0
    %1261 = vmatpush1.msra.mxu0 0.0
    %1262 = vmatprep.subr.mxu0 0.0
    %1263 = vmatpush1.msra.mxu0 0.0
    %1264 = vmatprep.subr.mxu0 0.0
    %1265 = vmatpush1.msra.mxu0 0.0
    %1266 = vmatprep.subr.mxu0 0.0
    %1267 = vmatpush1.msra.mxu0 0.0
    %1268 = vmatprep.subr.mxu0 0.0
    %1269 = vmatpush1.msra.mxu0 0.0
    %1270 = vmatprep.subr.mxu0 0.0
    %1271 = vmatpush1.msra.mxu0 0.0
    %1272 = vmatprep.subr.mxu0 0.0
    %1273 = vmatpush1.msra.mxu0 0.0
    %1274 = vmatprep.subr.mxu0 0.0
    %1275 = vmatpush1.msra.mxu0 0.0
    %1276 = vmatprep.subr.mxu0 0.0
    %1277 = vmatpush1.msra.mxu0 0.0
    %1278 = vmatprep.subr.mxu0 0.0
    %1279 = vmatpush1.msra.mxu0 0.0
    %1280 = vmatprep.subr.mxu0 0.0
    %1281 = vmatpush1.msra.mxu0 0.0
    %1282 = vmatprep.subr.mxu0 0.0
    %1283 = vmatpush1.msra.mxu0 0.0
    %1284 = vmatprep.mubr.f32.mxu0 0.0
    %1285 = vmatmul.mubr.f32.gmra.mrb[0].mxu0 %v1218
    %v1286 = vpop.f32.mrb[0].mxu0
    %v1287 = vadd.f32 0.0, %v1286
    %v1288 = vpop.f32.mrb[0].mxu0
    %1289 = vdwg.mxu0
    %v1290 = vadd.f32 %v1050, %v1287
    %v1291 = vlaneseq
    %v1292 = vshrl.u32 %v1291, 7
    %v1293 = vsub.s32 0, %v1292
    %v1294 = vrot.slane %v115, %v1293
    %v1295 = vadd.f32 %v1290, %v1294
    %v1296 = vsel %vm337, %v157, 0
    %v1299 = vsel %vm337, %v334, 0
    %1301 = vmatprep.subr.mxu0 0.0
    %1302 = vmatpush1.xpose.msra.mxu0 %v1299
    %1303 = vmatprep.subr.mxu0 0.0
    %1304 = vmatpush1.xpose.msra.mxu0 0.0
    %1305 = vmatprep.subr.mxu0 0.0
    %1306 = vmatpush1.xpose.msra.mxu0 0.0
    %1307 = vmatprep.subr.mxu0 0.0
    %1308 = vmatpush1.xpose.msra.mxu0 0.0
    %1309 = vmatprep.subr.mxu0 0.0
    %1310 = vmatpush1.xpose.msra.mxu0 0.0
    %1311 = vmatprep.subr.mxu0 0.0
    %1312 = vmatpush1.xpose.msra.mxu0 0.0
    %1313 = vmatprep.subr.mxu0 0.0
    %1314 = vmatpush1.xpose.msra.mxu0 0.0
    %1315 = vmatprep.subr.mxu0 0.0
    %1316 = vmatpush1.xpose.msra.mxu0 0.0
    %1317 = vmatprep.subr.mxu0 0.0
    %1318 = vmatpush1.xpose.msra.mxu0 0.0
    %1319 = vmatprep.subr.mxu0 0.0
    %1320 = vmatpush1.xpose.msra.mxu0 0.0
    %1321 = vmatprep.subr.mxu0 0.0
    %1322 = vmatpush1.xpose.msra.mxu0 0.0
    %1323 = vmatprep.subr.mxu0 0.0
    %1324 = vmatpush1.xpose.msra.mxu0 0.0
    %1325 = vmatprep.subr.mxu0 0.0
    %1326 = vmatpush1.xpose.msra.mxu0 0.0
    %1327 = vmatprep.subr.mxu0 0.0
    %1328 = vmatpush1.xpose.msra.mxu0 0.0
    %1329 = vmatprep.subr.mxu0 0.0
    %1330 = vmatpush1.xpose.msra.mxu0 0.0
    %1331 = vmatprep.subr.mxu0 0.0
    %1332 = vmatpush1.xpose.msra.mxu0 0.0
    %1333 = vmatprep.subr.mxu0 0.0
    %1334 = vmatpush1.xpose.msra.mxu0 0.0
    %1335 = vmatprep.subr.mxu0 0.0
    %1336 = vmatpush1.xpose.msra.mxu0 0.0
    %1337 = vmatprep.subr.mxu0 0.0
    %1338 = vmatpush1.xpose.msra.mxu0 0.0
    %1339 = vmatprep.subr.mxu0 0.0
    %1340 = vmatpush1.xpose.msra.mxu0 0.0
    %1341 = vmatprep.subr.mxu0 0.0
    %1342 = vmatpush1.xpose.msra.mxu0 0.0
    %1343 = vmatprep.subr.mxu0 0.0
    %1344 = vmatpush1.xpose.msra.mxu0 0.0
    %1345 = vmatprep.subr.mxu0 0.0
    %1346 = vmatpush1.xpose.msra.mxu0 0.0
    %1347 = vmatprep.subr.mxu0 0.0
    %1348 = vmatpush1.xpose.msra.mxu0 0.0
    %1349 = vmatprep.subr.mxu0 0.0
    %1350 = vmatpush1.xpose.msra.mxu0 0.0
    %1351 = vmatprep.subr.mxu0 0.0
    %1352 = vmatpush1.xpose.msra.mxu0 0.0
    %1353 = vmatprep.subr.mxu0 0.0
    %1354 = vmatpush1.xpose.msra.mxu0 0.0
    %1355 = vmatprep.subr.mxu0 0.0
    %1356 = vmatpush1.xpose.msra.mxu0 0.0
    %1357 = vmatprep.subr.mxu0 0.0
    %1358 = vmatpush1.xpose.msra.mxu0 0.0
    %1359 = vmatprep.subr.mxu0 0.0
    %1360 = vmatpush1.xpose.msra.mxu0 0.0
    %1361 = vmatprep.subr.mxu0 0.0
    %1362 = vmatpush1.xpose.msra.mxu0 0.0
    %1363 = vmatprep.subr.mxu0 0.0
    %1364 = vmatpush1.xpose.msra.mxu0 0.0
    %1365 = vmatprep.mubr.f32.mxu0 0.0
    %1366 = vmatmul.mubr.f32.gmra.mrb[0].mxu0 %v1296
    %v1367 = vpop.f32.mrb[0].mxu0
    %v1368 = vadd.f32 %v172, %v1367
    %v1369 = vpop.f32.mrb[0].mxu0
    %1370 = vdwg.mxu0
    %v1371 = vmul.f32 %v1368, 0.17677669
    %v1372 = vsel %vm337, %v1371, -inf
    %1373 = vmax.xlane.f32.xlu0 %v1372
    %v1374 = vpop.xlane.xlu0 %1373
    %v1375 = vsub.f32 %v1371, %v1374
    %v1376 = vmul.f32 %v1375, 1.442695
    %v1377 = vpow.pop %v1376
    %v1378 = vsel %vm337, %v1377, 0.0
    %1379 = vadd.xlane.f32.xlu0 %v1378
    %v1380 = vpop.xlane.xlu0 %1379
    %v1381 = vrcp.pop %v1380
    %v1382 = vmul.f32 %v1377, %v1381
    %v1384 = vsel %vm337, %v1382, 0
    %1386 = vmatprep.subr.mxu0 0.0
    %1387 = vmatpush1.msra.mxu0 %v259
    %1388 = vmatprep.subr.mxu0 0.0
    %1389 = vmatpush1.msra.mxu0 0.0
    %1390 = vmatprep.subr.mxu0 0.0
    %1391 = vmatpush1.msra.mxu0 0.0
    %1392 = vmatprep.subr.mxu0 0.0
    %1393 = vmatpush1.msra.mxu0 0.0
    %1394 = vmatprep.subr.mxu0 0.0
    %1395 = vmatpush1.msra.mxu0 0.0
    %1396 = vmatprep.subr.mxu0 0.0
    %1397 = vmatpush1.msra.mxu0 0.0
    %1398 = vmatprep.subr.mxu0 0.0
    %1399 = vmatpush1.msra.mxu0 0.0
    %1400 = vmatprep.subr.mxu0 0.0
    %1401 = vmatpush1.msra.mxu0 0.0
    %1402 = vmatprep.subr.mxu0 0.0
    %1403 = vmatpush1.msra.mxu0 0.0
    %1404 = vmatprep.subr.mxu0 0.0
    %1405 = vmatpush1.msra.mxu0 0.0
    %1406 = vmatprep.subr.mxu0 0.0
    %1407 = vmatpush1.msra.mxu0 0.0
    %1408 = vmatprep.subr.mxu0 0.0
    %1409 = vmatpush1.msra.mxu0 0.0
    %1410 = vmatprep.subr.mxu0 0.0
    %1411 = vmatpush1.msra.mxu0 0.0
    %1412 = vmatprep.subr.mxu0 0.0
    %1413 = vmatpush1.msra.mxu0 0.0
    %1414 = vmatprep.subr.mxu0 0.0
    %1415 = vmatpush1.msra.mxu0 0.0
    %1416 = vmatprep.subr.mxu0 0.0
    %1417 = vmatpush1.msra.mxu0 0.0
    %1418 = vmatprep.subr.mxu0 0.0
    %1419 = vmatpush1.msra.mxu0 0.0
    %1420 = vmatprep.subr.mxu0 0.0
    %1421 = vmatpush1.msra.mxu0 0.0
    %1422 = vmatprep.subr.mxu0 0.0
    %1423 = vmatpush1.msra.mxu0 0.0
    %1424 = vmatprep.subr.mxu0 0.0
    %1425 = vmatpush1.msra.mxu0 0.0
    %1426 = vmatprep.subr.mxu0 0.0
    %1427 = vmatpush1.msra.mxu0 0.0
    %1428 = vmatprep.subr.mxu0 0.0
    %1429 = vmatpush1.msra.mxu0 0.0
    %1430 = vmatprep.subr.mxu0 0.0
    %1431 = vmatpush1.msra.mxu0 0.0
    %1432 = vmatprep.subr.mxu0 0.0
    %1433 = vmatpush1.msra.mxu0 0.0
    %1434 = vmatprep.subr.mxu0 0.0
    %1435 = vmatpush1.msra.mxu0 0.0
    %1436 = vmatprep.subr.mxu0 0.0
    %1437 = vmatpush1.msra.mxu0 0.0
    %1438 = vmatprep.subr.mxu0 0.0
    %1439 = vmatpush1.msra.mxu0 0.0
    %1440 = vmatprep.subr.mxu0 0.0
    %1441 = vmatpush1.msra.mxu0 0.0
    %1442 = vmatprep.subr.mxu0 0.0
    %1443 = vmatpush1.msra.mxu0 0.0
    %1444 = vmatprep.subr.mxu0 0.0
    %1445 = vmatpush1.msra.mxu0 0.0
    %1446 = vmatprep.subr.mxu0 0.0
    %1447 = vmatpush1.msra.mxu0 0.0
    %1448 = vmatprep.subr.mxu0 0.0
    %1449 = vmatpush1.msra.mxu0 0.0
    %1450 = vmatprep.mubr.f32.mxu0 0.0
    %1451 = vmatmul.mubr.f32.gmra.mrb[0].mxu0 %v1384
    %v1452 = vpop.f32.mrb[0].mxu0
    %v1453 = vadd.f32 0.0, %v1452
    %v1454 = vpop.f32.mrb[0].mxu0
    %1455 = vdwg.mxu0
    %1456 = vrot.lane.b32.xlu0 %v157, 120
    %v1457 = vpop.permute.xlu0 %1456
    %1458 = vrot.lane.b32.xlu0 %v334, 120
    %v1459 = vpop.permute.xlu0 %1458
    %v1460 = vsel %vm337, %v1457, 0
    %v1462 = vsel %vm337, %v1459, 0
    %1464 = vmatprep.subr.mxu0 0.0
    %1465 = vmatpush1.xpose.msra.mxu0 %v1462
    %1466 = vmatprep.subr.mxu0 0.0
    %1467 = vmatpush1.xpose.msra.mxu0 0.0
    %1468 = vmatprep.subr.mxu0 0.0
    %1469 = vmatpush1.xpose.msra.mxu0 0.0
    %1470 = vmatprep.subr.mxu0 0.0
    %1471 = vmatpush1.xpose.msra.mxu0 0.0
    %1472 = vmatprep.subr.mxu0 0.0
    %1473 = vmatpush1.xpose.msra.mxu0 0.0
    %1474 = vmatprep.subr.mxu0 0.0
    %1475 = vmatpush1.xpose.msra.mxu0 0.0
    %1476 = vmatprep.subr.mxu0 0.0
    %1477 = vmatpush1.xpose.msra.mxu0 0.0
    %1478 = vmatprep.subr.mxu0 0.0
    %1479 = vmatpush1.xpose.msra.mxu0 0.0
    %1480 = vmatprep.subr.mxu0 0.0
    %1481 = vmatpush1.xpose.msra.mxu0 0.0
    %1482 = vmatprep.subr.mxu0 0.0
    %1483 = vmatpush1.xpose.msra.mxu0 0.0
    %1484 = vmatprep.subr.mxu0 0.0
    %1485 = vmatpush1.xpose.msra.mxu0 0.0
    %1486 = vmatprep.subr.mxu0 0.0
    %1487 = vmatpush1.xpose.msra.mxu0 0.0
    %1488 = vmatprep.subr.mxu0 0.0
    %1489 = vmatpush1.xpose.msra.mxu0 0.0
    %1490 = vmatprep.subr.mxu0 0.0
    %1491 = vmatpush1.xpose.msra.mxu0 0.0
    %1492 = vmatprep.subr.mxu0 0.0
    %1493 = vmatpush1.xpose.msra.mxu0 0.0
    %1494 = vmatprep.subr.mxu0 0.0
    %1495 = vmatpush1.xpose.msra.mxu0 0.0
    %1496 = vmatprep.subr.mxu0 0.0
    %1497 = vmatpush1.xpose.msra.mxu0 0.0
    %1498 = vmatprep.subr.mxu0 0.0
    %1499 = vmatpush1.xpose.msra.mxu0 0.0
    %1500 = vmatprep.subr.mxu0 0.0
    %1501 = vmatpush1.xpose.msra.mxu0 0.0
    %1502 = vmatprep.subr.mxu0 0.0
    %1503 = vmatpush1.xpose.msra.mxu0 0.0
    %1504 = vmatprep.subr.mxu0 0.0
    %1505 = vmatpush1.xpose.msra.mxu0 0.0
    %1506 = vmatprep.subr.mxu0 0.0
    %1507 = vmatpush1.xpose.msra.mxu0 0.0
    %1508 = vmatprep.subr.mxu0 0.0
    %1509 = vmatpush1.xpose.msra.mxu0 0.0
    %1510 = vmatprep.subr.mxu0 0.0
    %1511 = vmatpush1.xpose.msra.mxu0 0.0
    %1512 = vmatprep.subr.mxu0 0.0
    %1513 = vmatpush1.xpose.msra.mxu0 0.0
    %1514 = vmatprep.subr.mxu0 0.0
    %1515 = vmatpush1.xpose.msra.mxu0 0.0
    %1516 = vmatprep.subr.mxu0 0.0
    %1517 = vmatpush1.xpose.msra.mxu0 0.0
    %1518 = vmatprep.subr.mxu0 0.0
    %1519 = vmatpush1.xpose.msra.mxu0 0.0
    %1520 = vmatprep.subr.mxu0 0.0
    %1521 = vmatpush1.xpose.msra.mxu0 0.0
    %1522 = vmatprep.subr.mxu0 0.0
    %1523 = vmatpush1.xpose.msra.mxu0 0.0
    %1524 = vmatprep.subr.mxu0 0.0
    %1525 = vmatpush1.xpose.msra.mxu0 0.0
    %1526 = vmatprep.subr.mxu0 0.0
    %1527 = vmatpush1.xpose.msra.mxu0 0.0
    %1528 = vmatprep.mubr.f32.mxu0 0.0
    %1529 = vmatmul.mubr.f32.gmra.mrb[0].mxu0 %v1460
    %v1530 = vpop.f32.mrb[0].mxu0
    %v1531 = vadd.f32 %v172, %v1530
    %v1532 = vpop.f32.mrb[0].mxu0
    %1533 = vdwg.mxu0
    %v1534 = vmul.f32 %v1531, 0.17677669
    %v1535 = vsel %vm337, %v1534, -inf
    %1536 = vmax.xlane.f32.xlu0 %v1535
    %v1537 = vpop.xlane.xlu0 %1536
    %v1538 = vsub.f32 %v1534, %v1537
    %v1539 = vmul.f32 %v1538, 1.442695
    %v1540 = vpow.pop %v1539
    %v1541 = vsel %vm337, %v1540, 0.0
    %1542 = vadd.xlane.f32.xlu0 %v1541
    %v1543 = vpop.xlane.xlu0 %1542
    %v1544 = vrcp.pop %v1543
    %v1545 = vmul.f32 %v1540, %v1544
    %1547 = vrot.lane.b32.xlu0 %v259, 120
    %v1548 = vpop.permute.xlu0 %1547
    %v1551 = vsel %vm337, %v1545, 0
    %1553 = vmatprep.subr.mxu0 0.0
    %1554 = vmatpush1.msra.mxu0 %v1548
    %1555 = vmatprep.subr.mxu0 0.0
    %1556 = vmatpush1.msra.mxu0 0.0
    %1557 = vmatprep.subr.mxu0 0.0
    %1558 = vmatpush1.msra.mxu0 0.0
    %1559 = vmatprep.subr.mxu0 0.0
    %1560 = vmatpush1.msra.mxu0 0.0
    %1561 = vmatprep.subr.mxu0 0.0
    %1562 = vmatpush1.msra.mxu0 0.0
    %1563 = vmatprep.subr.mxu0 0.0
    %1564 = vmatpush1.msra.mxu0 0.0
    %1565 = vmatprep.subr.mxu0 0.0
    %1566 = vmatpush1.msra.mxu0 0.0
    %1567 = vmatprep.subr.mxu0 0.0
    %1568 = vmatpush1.msra.mxu0 0.0
    %1569 = vmatprep.subr.mxu0 0.0
    %1570 = vmatpush1.msra.mxu0 0.0
    %1571 = vmatprep.subr.mxu0 0.0
    %1572 = vmatpush1.msra.mxu0 0.0
    %1573 = vmatprep.subr.mxu0 0.0
    %1574 = vmatpush1.msra.mxu0 0.0
    %1575 = vmatprep.subr.mxu0 0.0
    %1576 = vmatpush1.msra.mxu0 0.0
    %1577 = vmatprep.subr.mxu0 0.0
    %1578 = vmatpush1.msra.mxu0 0.0
    %1579 = vmatprep.subr.mxu0 0.0
    %1580 = vmatpush1.msra.mxu0 0.0
    %1581 = vmatprep.subr.mxu0 0.0
    %1582 = vmatpush1.msra.mxu0 0.0
    %1583 = vmatprep.subr.mxu0 0.0
    %1584 = vmatpush1.msra.mxu0 0.0
    %1585 = vmatprep.subr.mxu0 0.0
    %1586 = vmatpush1.msra.mxu0 0.0
    %1587 = vmatprep.subr.mxu0 0.0
    %1588 = vmatpush1.msra.mxu0 0.0
    %1589 = vmatprep.subr.mxu0 0.0
    %1590 = vmatpush1.msra.mxu0 0.0
    %1591 = vmatprep.subr.mxu0 0.0
    %1592 = vmatpush1.msra.mxu0 0.0
    %1593 = vmatprep.subr.mxu0 0.0
    %1594 = vmatpush1.msra.mxu0 0.0
    %1595 = vmatprep.subr.mxu0 0.0
    %1596 = vmatpush1.msra.mxu0 0.0
    %1597 = vmatprep.subr.mxu0 0.0
    %1598 = vmatpush1.msra.mxu0 0.0
    %1599 = vmatprep.subr.mxu0 0.0
    %1600 = vmatpush1.msra.mxu0 0.0
    %1601 = vmatprep.subr.mxu0 0.0
    %1602 = vmatpush1.msra.mxu0 0.0
    %1603 = vmatprep.subr.mxu0 0.0
    %1604 = vmatpush1.msra.mxu0 0.0
    %1605 = vmatprep.subr.mxu0 0.0
    %1606 = vmatpush1.msra.mxu0 0.0
    %1607 = vmatprep.subr.mxu0 0.0
    %1608 = vmatpush1.msra.mxu0 0.0
    %1609 = vmatprep.subr.mxu0 0.0
    %1610 = vmatpush1.msra.mxu0 0.0
    %1611 = vmatprep.subr.mxu0 0.0
    %1612 = vmatpush1.msra.mxu0 0.0
    %1613 = vmatprep.subr.mxu0 0.0
    %1614 = vmatpush1.msra.mxu0 0.0
    %1615 = vmatprep.subr.mxu0 0.0
    %1616 = vmatpush1.msra.mxu0 0.0
    %1617 = vmatprep.mubr.f32.mxu0 0.0
    %1618 = vmatmul.mubr.f32.gmra.mrb[0].mxu0 %v1551
    %v1619 = vpop.f32.mrb[0].mxu0
    %v1620 = vadd.f32 0.0, %v1619
    %v1621 = vpop.f32.mrb[0].mxu0
    %1622 = vdwg.mxu0
    %v1624 = vsel %vm337, %v1620, 0
    %1626 = vmatprep.subr.mxu0 0.0
    %1627 = vmatpush1.msra.mxu0 %v128
    %1628 = vmatprep.subr.mxu0 0.0
    %1629 = vmatpush1.msra.mxu0 0.0
    %1630 = vmatprep.subr.mxu0 0.0
    %1631 = vmatpush1.msra.mxu0 0.0
    %1632 = vmatprep.subr.mxu0 0.0
    %1633 = vmatpush1.msra.mxu0 0.0
    %1634 = vmatprep.subr.mxu0 0.0
    %1635 = vmatpush1.msra.mxu0 0.0
    %1636 = vmatprep.subr.mxu0 0.0
    %1637 = vmatpush1.msra.mxu0 0.0
    %1638 = vmatprep.subr.mxu0 0.0
    %1639 = vmatpush1.msra.mxu0 0.0
    %1640 = vmatprep.subr.mxu0 0.0
    %1641 = vmatpush1.msra.mxu0 0.0
    %1642 = vmatprep.subr.mxu0 0.0
    %1643 = vmatpush1.msra.mxu0 0.0
    %1644 = vmatprep.subr.mxu0 0.0
    %1645 = vmatpush1.msra.mxu0 0.0
    %1646 = vmatprep.subr.mxu0 0.0
    %1647 = vmatpush1.msra.mxu0 0.0
    %1648 = vmatprep.subr.mxu0 0.0
    %1649 = vmatpush1.msra.mxu0 0.0
    %1650 = vmatprep.subr.mxu0 0.0
    %1651 = vmatpush1.msra.mxu0 0.0
    %1652 = vmatprep.subr.mxu0 0.0
    %1653 = vmatpush1.msra.mxu0 0.0
    %1654 = vmatprep.subr.mxu0 0.0
    %1655 = vmatpush1.msra.mxu0 0.0
    %1656 = vmatprep.subr.mxu0 0.0
    %1657 = vmatpush1.msra.mxu0 0.0
    %1658 = vmatprep.subr.mxu0 0.0
    %1659 = vmatpush1.msra.mxu0 0.0
    %1660 = vmatprep.subr.mxu0 0.0
    %1661 = vmatpush1.msra.mxu0 0.0
    %1662 = vmatprep.subr.mxu0 0.0
    %1663 = vmatpush1.msra.mxu0 0.0
    %1664 = vmatprep.subr.mxu0 0.0
    %1665 = vmatpush1.msra.mxu0 0.0
    %1666 = vmatprep.subr.mxu0 0.0
    %1667 = vmatpush1.msra.mxu0 0.0
    %1668 = vmatprep.subr.mxu0 0.0
    %1669 = vmatpush1.msra.mxu0 0.0
    %1670 = vmatprep.subr.mxu0 0.0
    %1671 = vmatpush1.msra.mxu0 0.0
    %1672 = vmatprep.subr.mxu0 0.0
    %1673 = vmatpush1.msra.mxu0 0.0
    %1674 = vmatprep.subr.mxu0 0.0
    %1675 = vmatpush1.msra.mxu0 0.0
    %1676 = vmatprep.subr.mxu0 0.0
    %1677 = vmatpush1.msra.mxu0 0.0
    %1678 = vmatprep.subr.mxu0 0.0
    %1679 = vmatpush1.msra.mxu0 0.0
    %1680 = vmatprep.subr.mxu0 0.0
    %1681 = vmatpush1.msra.mxu0 0.0
    %1682 = vmatprep.subr.mxu0 0.0
    %1683 = vmatpush1.msra.mxu0 0.0
    %1684 = vmatprep.subr.mxu0 0.0
    %1685 = vmatpush1.msra.mxu0 0.0
    %1686 = vmatprep.subr.mxu0 0.0
    %1687 = vmatpush1.msra.mxu0 0.0
    %1688 = vmatprep.subr.mxu0 0.0
    %1689 = vmatpush1.msra.mxu0 0.0
    %1690 = vmatprep.mubr.f32.mxu0 0.0
    %1691 = vmatmul.mubr.f32.gmra.mrb[0].mxu0 %v1624
    %v1692 = vpop.f32.mrb[0].mxu0
    %v1693 = vadd.f32 0.0, %v1692
    %v1694 = vpop.f32.mrb[0].mxu0
    %1695 = vdwg.mxu0
    %v1697 = vsel %vm337, %v1453, 0
    %1699 = vmatprep.subr.mxu0 0.0
    %1700 = vmatpush1.msra.mxu0 %v127
    %1701 = vmatprep.subr.mxu0 0.0
    %1702 = vmatpush1.msra.mxu0 0.0
    %1703 = vmatprep.subr.mxu0 0.0
    %1704 = vmatpush1.msra.mxu0 0.0
    %1705 = vmatprep.subr.mxu0 0.0
    %1706 = vmatpush1.msra.mxu0 0.0
    %1707 = vmatprep.subr.mxu0 0.0
    %1708 = vmatpush1.msra.mxu0 0.0
    %1709 = vmatprep.subr.mxu0 0.0
    %1710 = vmatpush1.msra.mxu0 0.0
    %1711 = vmatprep.subr.mxu0 0.0
    %1712 = vmatpush1.msra.mxu0 0.0
    %1713 = vmatprep.subr.mxu0 0.0
    %1714 = vmatpush1.msra.mxu0 0.0
    %1715 = vmatprep.subr.mxu0 0.0
    %1716 = vmatpush1.msra.mxu0 0.0
    %1717 = vmatprep.subr.mxu0 0.0
    %1718 = vmatpush1.msra.mxu0 0.0
    %1719 = vmatprep.subr.mxu0 0.0
    %1720 = vmatpush1.msra.mxu0 0.0
    %1721 = vmatprep.subr.mxu0 0.0
    %1722 = vmatpush1.msra.mxu0 0.0
    %1723 = vmatprep.subr.mxu0 0.0
    %1724 = vmatpush1.msra.mxu0 0.0
    %1725 = vmatprep.subr.mxu0 0.0
    %1726 = vmatpush1.msra.mxu0 0.0
    %1727 = vmatprep.subr.mxu0 0.0
    %1728 = vmatpush1.msra.mxu0 0.0
    %1729 = vmatprep.subr.mxu0 0.0
    %1730 = vmatpush1.msra.mxu0 0.0
    %1731 = vmatprep.subr.mxu0 0.0
    %1732 = vmatpush1.msra.mxu0 0.0
    %1733 = vmatprep.subr.mxu0 0.0
    %1734 = vmatpush1.msra.mxu0 0.0
    %1735 = vmatprep.subr.mxu0 0.0
    %1736 = vmatpush1.msra.mxu0 0.0
    %1737 = vmatprep.subr.mxu0 0.0
    %1738 = vmatpush1.msra.mxu0 0.0
    %1739 = vmatprep.subr.mxu0 0.0
    %1740 = vmatpush1.msra.mxu0 0.0
    %1741 = vmatprep.subr.mxu0 0.0
    %1742 = vmatpush1.msra.mxu0 0.0
    %1743 = vmatprep.subr.mxu0 0.0
    %1744 = vmatpush1.msra.mxu0 0.0
    %1745 = vmatprep.subr.mxu0 0.0
    %1746 = vmatpush1.msra.mxu0 0.0
    %1747 = vmatprep.subr.mxu0 0.0
    %1748 = vmatpush1.msra.mxu0 0.0
    %1749 = vmatprep.subr.mxu0 0.0
    %1750 = vmatpush1.msra.mxu0 0.0
    %1751 = vmatprep.subr.mxu0 0.0
    %1752 = vmatpush1.msra.mxu0 0.0
    %1753 = vmatprep.subr.mxu0 0.0
    %1754 = vmatpush1.msra.mxu0 0.0
    %1755 = vmatprep.subr.mxu0 0.0
    %1756 = vmatpush1.msra.mxu0 0.0
    %1757 = vmatprep.subr.mxu0 0.0
    %1758 = vmatpush1.msra.mxu0 0.0
    %1759 = vmatprep.subr.mxu0 0.0
    %1760 = vmatpush1.msra.mxu0 0.0
    %1761 = vmatprep.subr.mxu0 0.0
    %1762 = vmatpush1.msra.mxu0 0.0
    %1763 = vmatprep.mubr.f32.mxu0 0.0
    %1764 = vmatmul.mubr.f32.gmra.mrb[0].mxu0 %v1697
    %v1765 = vpop.f32.mrb[0].mxu0
    %v1766 = vadd.f32 %v1693, %v1765
    %v1767 = vpop.f32.mrb[0].mxu0
    %1768 = vdwg.mxu0
    %1769 = vrot.lane.b32.xlu0 %v157, 112
    %v1770 = vpop.permute.xlu0 %1769
    %1771 = vrot.lane.b32.xlu0 %v334, 112
    %v1772 = vpop.permute.xlu0 %1771
    %v1773 = vsel %vm337, %v1770, 0
    %v1775 = vsel %vm337, %v1772, 0
    %1777 = vmatprep.subr.mxu0 0.0
    %1778 = vmatpush1.xpose.msra.mxu0 %v1775
    %1779 = vmatprep.subr.mxu0 0.0
    %1780 = vmatpush1.xpose.msra.mxu0 0.0
    %1781 = vmatprep.subr.mxu0 0.0
    %1782 = vmatpush1.xpose.msra.mxu0 0.0
    %1783 = vmatprep.subr.mxu0 0.0
    %1784 = vmatpush1.xpose.msra.mxu0 0.0
    %1785 = vmatprep.subr.mxu0 0.0
    %1786 = vmatpush1.xpose.msra.mxu0 0.0
    %1787 = vmatprep.subr.mxu0 0.0
    %1788 = vmatpush1.xpose.msra.mxu0 0.0
    %1789 = vmatprep.subr.mxu0 0.0
    %1790 = vmatpush1.xpose.msra.mxu0 0.0
    %1791 = vmatprep.subr.mxu0 0.0
    %1792 = vmatpush1.xpose.msra.mxu0 0.0
    %1793 = vmatprep.subr.mxu0 0.0
    %1794 = vmatpush1.xpose.msra.mxu0 0.0
    %1795 = vmatprep.subr.mxu0 0.0
    %1796 = vmatpush1.xpose.msra.mxu0 0.0
    %1797 = vmatprep.subr.mxu0 0.0
    %1798 = vmatpush1.xpose.msra.mxu0 0.0
    %1799 = vmatprep.subr.mxu0 0.0
    %1800 = vmatpush1.xpose.msra.mxu0 0.0
    %1801 = vmatprep.subr.mxu0 0.0
    %1802 = vmatpush1.xpose.msra.mxu0 0.0
    %1803 = vmatprep.subr.mxu0 0.0
    %1804 = vmatpush1.xpose.msra.mxu0 0.0
    %1805 = vmatprep.subr.mxu0 0.0
    %1806 = vmatpush1.xpose.msra.mxu0 0.0
    %1807 = vmatprep.subr.mxu0 0.0
    %1808 = vmatpush1.xpose.msra.mxu0 0.0
    %1809 = vmatprep.subr.mxu0 0.0
    %1810 = vmatpush1.xpose.msra.mxu0 0.0
    %1811 = vmatprep.subr.mxu0 0.0
    %1812 = vmatpush1.xpose.msra.mxu0 0.0
    %1813 = vmatprep.subr.mxu0 0.0
    %1814 = vmatpush1.xpose.msra.mxu0 0.0
    %1815 = vmatprep.subr.mxu0 0.0
    %1816 = vmatpush1.xpose.msra.mxu0 0.0
    %1817 = vmatprep.subr.mxu0 0.0
    %1818 = vmatpush1.xpose.msra.mxu0 0.0
    %1819 = vmatprep.subr.mxu0 0.0
    %1820 = vmatpush1.xpose.msra.mxu0 0.0
    %1821 = vmatprep.subr.mxu0 0.0
    %1822 = vmatpush1.xpose.msra.mxu0 0.0
    %1823 = vmatprep.subr.mxu0 0.0
    %1824 = vmatpush1.xpose.msra.mxu0 0.0
    %1825 = vmatprep.subr.mxu0 0.0
    %1826 = vmatpush1.xpose.msra.mxu0 0.0
    %1827 = vmatprep.subr.mxu0 0.0
    %1828 = vmatpush1.xpose.msra.mxu0 0.0
    %1829 = vmatprep.subr.mxu0 0.0
    %1830 = vmatpush1.xpose.msra.mxu0 0.0
    %1831 = vmatprep.subr.mxu0 0.0
    %1832 = vmatpush1.xpose.msra.mxu0 0.0
    %1833 = vmatprep.subr.mxu0 0.0
    %1834 = vmatpush1.xpose.msra.mxu0 0.0
    %1835 = vmatprep.subr.mxu0 0.0
    %1836 = vmatpush1.xpose.msra.mxu0 0.0
    %1837 = vmatprep.subr.mxu0 0.0
    %1838 = vmatpush1.xpose.msra.mxu0 0.0
    %1839 = vmatprep.subr.mxu0 0.0
    %1840 = vmatpush1.xpose.msra.mxu0 0.0
    %1841 = vmatprep.mubr.f32.mxu0 0.0
    %1842 = vmatmul.mubr.f32.gmra.mrb[0].mxu0 %v1773
    %v1843 = vpop.f32.mrb[0].mxu0
    %v1844 = vadd.f32 %v172, %v1843
    %v1845 = vpop.f32.mrb[0].mxu0
    %1846 = vdwg.mxu0
    %v1847 = vmul.f32 %v1844, 0.17677669
    %v1848 = vsel %vm337, %v1847, -inf
    %1849 = vmax.xlane.f32.xlu0 %v1848
    %v1850 = vpop.xlane.xlu0 %1849
    %v1851 = vsub.f32 %v1847, %v1850
    %v1852 = vmul.f32 %v1851, 1.442695
    %v1853 = vpow.pop %v1852
    %v1854 = vsel %vm337, %v1853, 0.0
    %1855 = vadd.xlane.f32.xlu0 %v1854
    %v1856 = vpop.xlane.xlu0 %1855
    %v1857 = vrcp.pop %v1856
    %v1858 = vmul.f32 %v1853, %v1857
    %1859 = vrot.lane.b32.xlu0 %v259, 112
    %v1860 = vpop.permute.xlu0 %1859
    %v1863 = vsel %vm337, %v1858, 0
    %1865 = vmatprep.subr.mxu0 0.0
    %1866 = vmatpush1.msra.mxu0 %v1860
    %1867 = vmatprep.subr.mxu0 0.0
    %1868 = vmatpush1.msra.mxu0 0.0
    %1869 = vmatprep.subr.mxu0 0.0
    %1870 = vmatpush1.msra.mxu0 0.0
    %1871 = vmatprep.subr.mxu0 0.0
    %1872 = vmatpush1.msra.mxu0 0.0
    %1873 = vmatprep.subr.mxu0 0.0
    %1874 = vmatpush1.msra.mxu0 0.0
    %1875 = vmatprep.subr.mxu0 0.0
    %1876 = vmatpush1.msra.mxu0 0.0
    %1877 = vmatprep.subr.mxu0 0.0
    %1878 = vmatpush1.msra.mxu0 0.0
    %1879 = vmatprep.subr.mxu0 0.0
    %1880 = vmatpush1.msra.mxu0 0.0
    %1881 = vmatprep.subr.mxu0 0.0
    %1882 = vmatpush1.msra.mxu0 0.0
    %1883 = vmatprep.subr.mxu0 0.0
    %1884 = vmatpush1.msra.mxu0 0.0
    %1885 = vmatprep.subr.mxu0 0.0
    %1886 = vmatpush1.msra.mxu0 0.0
    %1887 = vmatprep.subr.mxu0 0.0
    %1888 = vmatpush1.msra.mxu0 0.0
    %1889 = vmatprep.subr.mxu0 0.0
    %1890 = vmatpush1.msra.mxu0 0.0
    %1891 = vmatprep.subr.mxu0 0.0
    %1892 = vmatpush1.msra.mxu0 0.0
    %1893 = vmatprep.subr.mxu0 0.0
    %1894 = vmatpush1.msra.mxu0 0.0
    %1895 = vmatprep.subr.mxu0 0.0
    %1896 = vmatpush1.msra.mxu0 0.0
    %1897 = vmatprep.subr.mxu0 0.0
    %1898 = vmatpush1.msra.mxu0 0.0
    %1899 = vmatprep.subr.mxu0 0.0
    %1900 = vmatpush1.msra.mxu0 0.0
    %1901 = vmatprep.subr.mxu0 0.0
    %1902 = vmatpush1.msra.mxu0 0.0
    %1903 = vmatprep.subr.mxu0 0.0
    %1904 = vmatpush1.msra.mxu0 0.0
    %1905 = vmatprep.subr.mxu0 0.0
    %1906 = vmatpush1.msra.mxu0 0.0
    %1907 = vmatprep.subr.mxu0 0.0
    %1908 = vmatpush1.msra.mxu0 0.0
    %1909 = vmatprep.subr.mxu0 0.0
    %1910 = vmatpush1.msra.mxu0 0.0
    %1911 = vmatprep.subr.mxu0 0.0
    %1912 = vmatpush1.msra.mxu0 0.0
    %1913 = vmatprep.subr.mxu0 0.0
    %1914 = vmatpush1.msra.mxu0 0.0
    %1915 = vmatprep.subr.mxu0 0.0
    %1916 = vmatpush1.msra.mxu0 0.0
    %1917 = vmatprep.subr.mxu0 0.0
    %1918 = vmatpush1.msra.mxu0 0.0
    %1919 = vmatprep.subr.mxu0 0.0
    %1920 = vmatpush1.msra.mxu0 0.0
    %1921 = vmatprep.subr.mxu0 0.0
    %1922 = vmatpush1.msra.mxu0 0.0
    %1923 = vmatprep.subr.mxu0 0.0
    %1924 = vmatpush1.msra.mxu0 0.0
    %1925 = vmatprep.subr.mxu0 0.0
    %1926 = vmatpush1.msra.mxu0 0.0
    %1927 = vmatprep.subr.mxu0 0.0
    %1928 = vmatpush1.msra.mxu0 0.0
    %1929 = vmatprep.mubr.f32.mxu0 0.0
    %1930 = vmatmul.mubr.f32.gmra.mrb[0].mxu0 %v1863
    %v1931 = vpop.f32.mrb[0].mxu0
    %v1932 = vadd.f32 0.0, %v1931
    %v1933 = vpop.f32.mrb[0].mxu0
    %1934 = vdwg.mxu0
    %v1936 = vsel %vm337, %v1932, 0
    %1938 = vmatprep.subr.mxu0 0.0
    %1939 = vmatpush1.msra.mxu0 %v129
    %1940 = vmatprep.subr.mxu0 0.0
    %1941 = vmatpush1.msra.mxu0 0.0
    %1942 = vmatprep.subr.mxu0 0.0
    %1943 = vmatpush1.msra.mxu0 0.0
    %1944 = vmatprep.subr.mxu0 0.0
    %1945 = vmatpush1.msra.mxu0 0.0
    %1946 = vmatprep.subr.mxu0 0.0
    %1947 = vmatpush1.msra.mxu0 0.0
    %1948 = vmatprep.subr.mxu0 0.0
    %1949 = vmatpush1.msra.mxu0 0.0
    %1950 = vmatprep.subr.mxu0 0.0
    %1951 = vmatpush1.msra.mxu0 0.0
    %1952 = vmatprep.subr.mxu0 0.0
    %1953 = vmatpush1.msra.mxu0 0.0
    %1954 = vmatprep.subr.mxu0 0.0
    %1955 = vmatpush1.msra.mxu0 0.0
    %1956 = vmatprep.subr.mxu0 0.0
    %1957 = vmatpush1.msra.mxu0 0.0
    %1958 = vmatprep.subr.mxu0 0.0
    %1959 = vmatpush1.msra.mxu0 0.0
    %1960 = vmatprep.subr.mxu0 0.0
    %1961 = vmatpush1.msra.mxu0 0.0
    %1962 = vmatprep.subr.mxu0 0.0
    %1963 = vmatpush1.msra.mxu0 0.0
    %1964 = vmatprep.subr.mxu0 0.0
    %1965 = vmatpush1.msra.mxu0 0.0
    %1966 = vmatprep.subr.mxu0 0.0
    %1967 = vmatpush1.msra.mxu0 0.0
    %1968 = vmatprep.subr.mxu0 0.0
    %1969 = vmatpush1.msra.mxu0 0.0
    %1970 = vmatprep.subr.mxu0 0.0
    %1971 = vmatpush1.msra.mxu0 0.0
    %1972 = vmatprep.subr.mxu0 0.0
    %1973 = vmatpush1.msra.mxu0 0.0
    %1974 = vmatprep.subr.mxu0 0.0
    %1975 = vmatpush1.msra.mxu0 0.0
    %1976 = vmatprep.subr.mxu0 0.0
    %1977 = vmatpush1.msra.mxu0 0.0
    %1978 = vmatprep.subr.mxu0 0.0
    %1979 = vmatpush1.msra.mxu0 0.0
    %1980 = vmatprep.subr.mxu0 0.0
    %1981 = vmatpush1.msra.mxu0 0.0
    %1982 = vmatprep.subr.mxu0 0.0
    %1983 = vmatpush1.msra.mxu0 0.0
    %1984 = vmatprep.subr.mxu0 0.0
    %1985 = vmatpush1.msra.mxu0 0.0
    %1986 = vmatprep.subr.mxu0 0.0
    %1987 = vmatpush1.msra.mxu0 0.0
    %1988 = vmatprep.subr.mxu0 0.0
    %1989 = vmatpush1.msra.mxu0 0.0
    %1990 = vmatprep.subr.mxu0 0.0
    %1991 = vmatpush1.msra.mxu0 0.0
    %1992 = vmatprep.subr.mxu0 0.0
    %1993 = vmatpush1.msra.mxu0 0.0
    %1994 = vmatprep.subr.mxu0 0.0
    %1995 = vmatpush1.msra.mxu0 0.0
    %1996 = vmatprep.subr.mxu0 0.0
    %1997 = vmatpush1.msra.mxu0 0.0
    %1998 = vmatprep.subr.mxu0 0.0
    %1999 = vmatpush1.msra.mxu0 0.0
    %2000 = vmatprep.subr.mxu0 0.0
    %2001 = vmatpush1.msra.mxu0 0.0
    %2002 = vmatprep.mubr.f32.mxu0 0.0
    %2003 = vmatmul.mubr.f32.gmra.mrb[0].mxu0 %v1936
    %v2004 = vpop.f32.mrb[0].mxu0
    %v2005 = vadd.f32 0.0, %v2004
    %v2006 = vpop.f32.mrb[0].mxu0
    %2007 = vdwg.mxu0
    %v2008 = vadd.f32 %v1766, %v2005
    %2009 = vrot.lane.b32.xlu0 %v157, 104
    %v2010 = vpop.permute.xlu0 %2009
    %2011 = vrot.lane.b32.xlu0 %v334, 104
    %v2012 = vpop.permute.xlu0 %2011
    %v2013 = vsel %vm337, %v2010, 0
    %v2015 = vsel %vm337, %v2012, 0
    %2017 = vmatprep.subr.mxu0 0.0
    %2018 = vmatpush1.xpose.msra.mxu0 %v2015
    %2019 = vmatprep.subr.mxu0 0.0
    %2020 = vmatpush1.xpose.msra.mxu0 0.0
    %2021 = vmatprep.subr.mxu0 0.0
    %2022 = vmatpush1.xpose.msra.mxu0 0.0
    %2023 = vmatprep.subr.mxu0 0.0
    %2024 = vmatpush1.xpose.msra.mxu0 0.0
    %2025 = vmatprep.subr.mxu0 0.0
    %2026 = vmatpush1.xpose.msra.mxu0 0.0
    %2027 = vmatprep.subr.mxu0 0.0
    %2028 = vmatpush1.xpose.msra.mxu0 0.0
    %2029 = vmatprep.subr.mxu0 0.0
    %2030 = vmatpush1.xpose.msra.mxu0 0.0
    %2031 = vmatprep.subr.mxu0 0.0
    %2032 = vmatpush1.xpose.msra.mxu0 0.0
    %2033 = vmatprep.subr.mxu0 0.0
    %2034 = vmatpush1.xpose.msra.mxu0 0.0
    %2035 = vmatprep.subr.mxu0 0.0
    %2036 = vmatpush1.xpose.msra.mxu0 0.0
    %2037 = vmatprep.subr.mxu0 0.0
    %2038 = vmatpush1.xpose.msra.mxu0 0.0
    %2039 = vmatprep.subr.mxu0 0.0
    %2040 = vmatpush1.xpose.msra.mxu0 0.0
    %2041 = vmatprep.subr.mxu0 0.0
    %2042 = vmatpush1.xpose.msra.mxu0 0.0
    %2043 = vmatprep.subr.mxu0 0.0
    %2044 = vmatpush1.xpose.msra.mxu0 0.0
    %2045 = vmatprep.subr.mxu0 0.0
    %2046 = vmatpush1.xpose.msra.mxu0 0.0
    %2047 = vmatprep.subr.mxu0 0.0
    %2048 = vmatpush1.xpose.msra.mxu0 0.0
    %2049 = vmatprep.subr.mxu0 0.0
    %2050 = vmatpush1.xpose.msra.mxu0 0.0
    %2051 = vmatprep.subr.mxu0 0.0
    %2052 = vmatpush1.xpose.msra.mxu0 0.0
    %2053 = vmatprep.subr.mxu0 0.0
    %2054 = vmatpush1.xpose.msra.mxu0 0.0
    %2055 = vmatprep.subr.mxu0 0.0
    %2056 = vmatpush1.xpose.msra.mxu0 0.0
    %2057 = vmatprep.subr.mxu0 0.0
    %2058 = vmatpush1.xpose.msra.mxu0 0.0
    %2059 = vmatprep.subr.mxu0 0.0
    %2060 = vmatpush1.xpose.msra.mxu0 0.0
    %2061 = vmatprep.subr.mxu0 0.0
    %2062 = vmatpush1.xpose.msra.mxu0 0.0
    %2063 = vmatprep.subr.mxu0 0.0
    %2064 = vmatpush1.xpose.msra.mxu0 0.0
    %2065 = vmatprep.subr.mxu0 0.0
    %2066 = vmatpush1.xpose.msra.mxu0 0.0
    %2067 = vmatprep.subr.mxu0 0.0
    %2068 = vmatpush1.xpose.msra.mxu0 0.0
    %2069 = vmatprep.subr.mxu0 0.0
    %2070 = vmatpush1.xpose.msra.mxu0 0.0
    %2071 = vmatprep.subr.mxu0 0.0
    %2072 = vmatpush1.xpose.msra.mxu0 0.0
    %2073 = vmatprep.subr.mxu0 0.0
    %2074 = vmatpush1.xpose.msra.mxu0 0.0
    %2075 = vmatprep.subr.mxu0 0.0
    %2076 = vmatpush1.xpose.msra.mxu0 0.0
    %2077 = vmatprep.subr.mxu0 0.0
    %2078 = vmatpush1.xpose.msra.mxu0 0.0
    %2079 = vmatprep.subr.mxu0 0.0
    %2080 = vmatpush1.xpose.msra.mxu0 0.0
    %2081 = vmatprep.mubr.f32.mxu0 0.0
    %2082 = vmatmul.mubr.f32.gmra.mrb[0].mxu0 %v2013
    %v2083 = vpop.f32.mrb[0].mxu0
    %v2084 = vadd.f32 %v172, %v2083
    %v2085 = vpop.f32.mrb[0].mxu0
    %2086 = vdwg.mxu0
    %v2087 = vmul.f32 %v2084, 0.17677669
    %v2088 = vsel %vm337, %v2087, -inf
    %2089 = vmax.xlane.f32.xlu0 %v2088
    %v2090 = vpop.xlane.xlu0 %2089
    %v2091 = vsub.f32 %v2087, %v2090
    %v2092 = vmul.f32 %v2091, 1.442695
    %v2093 = vpow.pop %v2092
    %v2094 = vsel %vm337, %v2093, 0.0
    %2095 = vadd.xlane.f32.xlu0 %v2094
    %v2096 = vpop.xlane.xlu0 %2095
    %v2097 = vrcp.pop %v2096
    %v2098 = vmul.f32 %v2093, %v2097
    %2099 = vrot.lane.b32.xlu0 %v259, 104
    %v2100 = vpop.permute.xlu0 %2099
    %v2103 = vsel %vm337, %v2098, 0
    %2105 = vmatprep.subr.mxu0 0.0
    %2106 = vmatpush1.msra.mxu0 %v2100
    %2107 = vmatprep.subr.mxu0 0.0
    %2108 = vmatpush1.msra.mxu0 0.0
    %2109 = vmatprep.subr.mxu0 0.0
    %2110 = vmatpush1.msra.mxu0 0.0
    %2111 = vmatprep.subr.mxu0 0.0
    %2112 = vmatpush1.msra.mxu0 0.0
    %2113 = vmatprep.subr.mxu0 0.0
    %2114 = vmatpush1.msra.mxu0 0.0
    %2115 = vmatprep.subr.mxu0 0.0
    %2116 = vmatpush1.msra.mxu0 0.0
    %2117 = vmatprep.subr.mxu0 0.0
    %2118 = vmatpush1.msra.mxu0 0.0
    %2119 = vmatprep.subr.mxu0 0.0
    %2120 = vmatpush1.msra.mxu0 0.0
    %2121 = vmatprep.subr.mxu0 0.0
    %2122 = vmatpush1.msra.mxu0 0.0
    %2123 = vmatprep.subr.mxu0 0.0
    %2124 = vmatpush1.msra.mxu0 0.0
    %2125 = vmatprep.subr.mxu0 0.0
    %2126 = vmatpush1.msra.mxu0 0.0
    %2127 = vmatprep.subr.mxu0 0.0
    %2128 = vmatpush1.msra.mxu0 0.0
    %2129 = vmatprep.subr.mxu0 0.0
    %2130 = vmatpush1.msra.mxu0 0.0
    %2131 = vmatprep.subr.mxu0 0.0
    %2132 = vmatpush1.msra.mxu0 0.0
    %2133 = vmatprep.subr.mxu0 0.0
    %2134 = vmatpush1.msra.mxu0 0.0
    %2135 = vmatprep.subr.mxu0 0.0
    %2136 = vmatpush1.msra.mxu0 0.0
    %2137 = vmatprep.subr.mxu0 0.0
    %2138 = vmatpush1.msra.mxu0 0.0
    %2139 = vmatprep.subr.mxu0 0.0
    %2140 = vmatpush1.msra.mxu0 0.0
    %2141 = vmatprep.subr.mxu0 0.0
    %2142 = vmatpush1.msra.mxu0 0.0
    %2143 = vmatprep.subr.mxu0 0.0
    %2144 = vmatpush1.msra.mxu0 0.0
    %2145 = vmatprep.subr.mxu0 0.0
    %2146 = vmatpush1.msra.mxu0 0.0
    %2147 = vmatprep.subr.mxu0 0.0
    %2148 = vmatpush1.msra.mxu0 0.0
    %2149 = vmatprep.subr.mxu0 0.0
    %2150 = vmatpush1.msra.mxu0 0.0
    %2151 = vmatprep.subr.mxu0 0.0
    %2152 = vmatpush1.msra.mxu0 0.0
    %2153 = vmatprep.subr.mxu0 0.0
    %2154 = vmatpush1.msra.mxu0 0.0
    %2155 = vmatprep.subr.mxu0 0.0
    %2156 = vmatpush1.msra.mxu0 0.0
    %2157 = vmatprep.subr.mxu0 0.0
    %2158 = vmatpush1.msra.mxu0 0.0
    %2159 = vmatprep.subr.mxu0 0.0
    %2160 = vmatpush1.msra.mxu0 0.0
    %2161 = vmatprep.subr.mxu0 0.0
    %2162 = vmatpush1.msra.mxu0 0.0
    %2163 = vmatprep.subr.mxu0 0.0
    %2164 = vmatpush1.msra.mxu0 0.0
    %2165 = vmatprep.subr.mxu0 0.0
    %2166 = vmatpush1.msra.mxu0 0.0
    %2167 = vmatprep.subr.mxu0 0.0
    %2168 = vmatpush1.msra.mxu0 0.0
    %2169 = vmatprep.mubr.f32.mxu0 0.0
    %2170 = vmatmul.mubr.f32.gmra.mrb[0].mxu0 %v2103
    %v2171 = vpop.f32.mrb[0].mxu0
    %v2172 = vadd.f32 0.0, %v2171
    %v2173 = vpop.f32.mrb[0].mxu0
    %2174 = vdwg.mxu0
    %v2176 = vsel %vm337, %v2172, 0
    %2178 = vmatprep.subr.mxu0 0.0
    %2179 = vmatpush1.msra.mxu0 %v130
    %2180 = vmatprep.subr.mxu0 0.0
    %2181 = vmatpush1.msra.mxu0 0.0
    %2182 = vmatprep.subr.mxu0 0.0
    %2183 = vmatpush1.msra.mxu0 0.0
    %2184 = vmatprep.subr.mxu0 0.0
    %2185 = vmatpush1.msra.mxu0 0.0
    %2186 = vmatprep.subr.mxu0 0.0
    %2187 = vmatpush1.msra.mxu0 0.0
    %2188 = vmatprep.subr.mxu0 0.0
    %2189 = vmatpush1.msra.mxu0 0.0
    %2190 = vmatprep.subr.mxu0 0.0
    %2191 = vmatpush1.msra.mxu0 0.0
    %2192 = vmatprep.subr.mxu0 0.0
    %2193 = vmatpush1.msra.mxu0 0.0
    %2194 = vmatprep.subr.mxu0 0.0
    %2195 = vmatpush1.msra.mxu0 0.0
    %2196 = vmatprep.subr.mxu0 0.0
    %2197 = vmatpush1.msra.mxu0 0.0
    %2198 = vmatprep.subr.mxu0 0.0
    %2199 = vmatpush1.msra.mxu0 0.0
    %2200 = vmatprep.subr.mxu0 0.0
    %2201 = vmatpush1.msra.mxu0 0.0
    %2202 = vmatprep.subr.mxu0 0.0
    %2203 = vmatpush1.msra.mxu0 0.0
    %2204 = vmatprep.subr.mxu0 0.0
    %2205 = vmatpush1.msra.mxu0 0.0
    %2206 = vmatprep.subr.mxu0 0.0
    %2207 = vmatpush1.msra.mxu0 0.0
    %2208 = vmatprep.subr.mxu0 0.0
    %2209 = vmatpush1.msra.mxu0 0.0
    %2210 = vmatprep.subr.mxu0 0.0
    %2211 = vmatpush1.msra.mxu0 0.0
    %2212 = vmatprep.subr.mxu0 0.0
    %2213 = vmatpush1.msra.mxu0 0.0
    %2214 = vmatprep.subr.mxu0 0.0
    %2215 = vmatpush1.msra.mxu0 0.0
    %2216 = vmatprep.subr.mxu0 0.0
    %2217 = vmatpush1.msra.mxu0 0.0
    %2218 = vmatprep.subr.mxu0 0.0
    %2219 = vmatpush1.msra.mxu0 0.0
    %2220 = vmatprep.subr.mxu0 0.0
    %2221 = vmatpush1.msra.mxu0 0.0
    %2222 = vmatprep.subr.mxu0 0.0
    %2223 = vmatpush1.msra.mxu0 0.0
    %2224 = vmatprep.subr.mxu0 0.0
    %2225 = vmatpush1.msra.mxu0 0.0
    %2226 = vmatprep.subr.mxu0 0.0
    %2227 = vmatpush1.msra.mxu0 0.0
    %2228 = vmatprep.subr.mxu0 0.0
    %2229 = vmatpush1.msra.mxu0 0.0
    %2230 = vmatprep.subr.mxu0 0.0
    %2231 = vmatpush1.msra.mxu0 0.0
    %2232 = vmatprep.subr.mxu0 0.0
    %2233 = vmatpush1.msra.mxu0 0.0
    %2234 = vmatprep.subr.mxu0 0.0
    %2235 = vmatpush1.msra.mxu0 0.0
    %2236 = vmatprep.subr.mxu0 0.0
    %2237 = vmatpush1.msra.mxu0 0.0
    %2238 = vmatprep.subr.mxu0 0.0
    %2239 = vmatpush1.msra.mxu0 0.0
    %2240 = vmatprep.subr.mxu0 0.0
    %2241 = vmatpush1.msra.mxu0 0.0
    %2242 = vmatprep.mubr.f32.mxu0 0.0
    %2243 = vmatmul.mubr.f32.gmra.mrb[0].mxu0 %v2176
    %v2244 = vpop.f32.mrb[0].mxu0
    %v2245 = vadd.f32 0.0, %v2244
    %v2246 = vpop.f32.mrb[0].mxu0
    %2247 = vdwg.mxu0
    %v2248 = vadd.f32 %v2008, %v2245
    %v2249 = vadd.f32 %v2248, %v1294
    %v2250 = vadd.f32 %v1295, %v156
    %v2251 = vadd.f32 %v2249, %v157
    %v2252 = vsel %vm180, %v2250, 0.0
    %2253 = vadd.xlane.f32.xlu0 %v2252
    %v2254 = vpop.xlane.xlu0 %2253
    %v2255 = vsel %vm180, %v2251, 0.0
    %2256 = vadd.xlane.f32.xlu0 %v2255
    %v2257 = vpop.xlane.xlu0 %2256
    %v2258 = vrcp.pop 32.0
    %v2259 = vmul.f32 %v2254, %v2258
    %v2260 = vmul.f32 %v2257, %v2258
    %v2261 = vsub.f32 %v2250, %v2259
    %v2262 = vsub.f32 %v2251, %v2260
    %v2263 = vmul.f32 %v2261, %v2261
    %v2264 = vmul.f32 %v2262, %v2262
    %v2265 = vsel %vm180, %v2263, 0.0
    %2266 = vadd.xlane.f32.xlu0 %v2265
    %v2267 = vpop.xlane.xlu0 %2266
    %v2268 = vsel %vm180, %v2264, 0.0
    %2269 = vadd.xlane.f32.xlu0 %v2268
    %v2270 = vpop.xlane.xlu0 %2269
    %v2271 = vmul.f32 %v2267, %v2258
    %v2272 = vmul.f32 %v2270, %v2258
    %v2273 = vadd.f32 %v2271, 1e-05
    %v2274 = vadd.f32 %v2272, 1e-05
    %v2275 = vrsqrt.pop %v2273
    %v2276 = vrsqrt.pop %v2274
    %v2277 = vmul.f32 %v2261, %v2275
    %v2278 = vmul.f32 %v2262, %v2276
    %v2279 = vlaneseq
    %v2280 = vshrl.u32 %v2279, 7
    %v2281 = vsub.s32 1, %v2280
    %v2282 = vrot.slane %v115, %v2281
    %v2283 = vmul.f32 %v2277, %v2282
    %v2284 = vmul.f32 %v2278, %v2282
    %v2285 = vlaneseq
    %v2286 = vshrl.u32 %v2285, 7
    %v2287 = vsub.s32 2, %v2286
    %v2288 = vrot.slane %v115, %v2287
    %v2289 = vadd.f32 %v2283, %v2288
    %v2290 = vadd.f32 %v2284, %v2288
    %v2292 = vsel %vm180, %v158, 0
    %v2295 = vsel %vm180, %v159, 0
    %v2298 = vsel %vm180, %v160, 0
    %v2301 = vsel %vm180, %v161, 0
    %2303 = vmatprep.subr.mxu0 0.0
    %2304 = vmatpush1.msra.mxu0 %v132
    %2305 = vmatprep.subr.mxu0 0.0
    %2306 = vmatpush1.msra.mxu0 %v133
    %2307 = vmatprep.subr.mxu0 0.0
    %2308 = vmatpush1.msra.mxu0 %v134
    %2309 = vmatprep.subr.mxu0 0.0
    %2310 = vmatpush1.msra.mxu0 %v135
    %2311 = vmatprep.subr.mxu0 0.0
    %2312 = vmatpush1.msra.mxu0 0.0
    %2313 = vmatprep.subr.mxu0 0.0
    %2314 = vmatpush1.msra.mxu0 0.0
    %2315 = vmatprep.subr.mxu0 0.0
    %2316 = vmatpush1.msra.mxu0 0.0
    %2317 = vmatprep.subr.mxu0 0.0
    %2318 = vmatpush1.msra.mxu0 0.0
    %2319 = vmatprep.subr.mxu0 0.0
    %2320 = vmatpush1.msra.mxu0 0.0
    %2321 = vmatprep.subr.mxu0 0.0
    %2322 = vmatpush1.msra.mxu0 0.0
    %2323 = vmatprep.subr.mxu0 0.0
    %2324 = vmatpush1.msra.mxu0 0.0
    %2325 = vmatprep.subr.mxu0 0.0
    %2326 = vmatpush1.msra.mxu0 0.0
    %2327 = vmatprep.subr.mxu0 0.0
    %2328 = vmatpush1.msra.mxu0 0.0
    %2329 = vmatprep.subr.mxu0 0.0
    %2330 = vmatpush1.msra.mxu0 0.0
    %2331 = vmatprep.subr.mxu0 0.0
    %2332 = vmatpush1.msra.mxu0 0.0
    %2333 = vmatprep.subr.mxu0 0.0
    %2334 = vmatpush1.msra.mxu0 0.0
    %2335 = vmatprep.subr.mxu0 0.0
    %2336 = vmatpush1.msra.mxu0 0.0
    %2337 = vmatprep.subr.mxu0 0.0
    %2338 = vmatpush1.msra.mxu0 0.0
    %2339 = vmatprep.subr.mxu0 0.0
    %2340 = vmatpush1.msra.mxu0 0.0
    %2341 = vmatprep.subr.mxu0 0.0
    %2342 = vmatpush1.msra.mxu0 0.0
    %2343 = vmatprep.subr.mxu0 0.0
    %2344 = vmatpush1.msra.mxu0 0.0
    %2345 = vmatprep.subr.mxu0 0.0
    %2346 = vmatpush1.msra.mxu0 0.0
    %2347 = vmatprep.subr.mxu0 0.0
    %2348 = vmatpush1.msra.mxu0 0.0
    %2349 = vmatprep.subr.mxu0 0.0
    %2350 = vmatpush1.msra.mxu0 0.0
    %2351 = vmatprep.subr.mxu0 0.0
    %2352 = vmatpush1.msra.mxu0 0.0
    %2353 = vmatprep.subr.mxu0 0.0
    %2354 = vmatpush1.msra.mxu0 0.0
    %2355 = vmatprep.subr.mxu0 0.0
    %2356 = vmatpush1.msra.mxu0 0.0
    %2357 = vmatprep.subr.mxu0 0.0
    %2358 = vmatpush1.msra.mxu0 0.0
    %2359 = vmatprep.subr.mxu0 0.0
    %2360 = vmatpush1.msra.mxu0 0.0
    %2361 = vmatprep.subr.mxu0 0.0
    %2362 = vmatpush1.msra.mxu0 0.0
    %2363 = vmatprep.subr.mxu0 0.0
    %2364 = vmatpush1.msra.mxu0 0.0
    %2365 = vmatprep.subr.mxu0 0.0
    %2366 = vmatpush1.msra.mxu0 0.0
    %2367 = vmatprep.mubr.f32.mxu0 0.0
    %2368 = vmatmul.mubr.f32.gmra.mrb[0].mxu0 %v2292
    %v2369 = vpop.f32.mrb[0].mxu0
    %v2370 = vadd.f32 0.0, %v2369
    %v2371 = vpop.f32.mrb[0].mxu0
    %2372 = vmatprep.mubr.f32.mxu0 0.0
    %2373 = vmatmul.mubr.f32.gmra.mrb[0].mxu0 %v2295
    %v2374 = vpop.f32.mrb[0].mxu0
    %v2375 = vadd.f32 0.0, %v2374
    %v2376 = vpop.f32.mrb[0].mxu0
    %2377 = vmatprep.mubr.f32.mxu0 0.0
    %2378 = vmatmul.mubr.f32.gmra.mrb[0].mxu0 %v2298
    %v2379 = vpop.f32.mrb[0].mxu0
    %v2380 = vadd.f32 0.0, %v2379
    %v2381 = vpop.f32.mrb[0].mxu0
    %2382 = vmatprep.mubr.f32.mxu0 0.0
    %2383 = vmatmul.mubr.f32.gmra.mrb[0].mxu0 %v2301
    %v2384 = vpop.f32.mrb[0].mxu0
    %v2385 = vadd.f32 0.0, %v2384
    %v2386 = vpop.f32.mrb[0].mxu0
    %2387 = vdwg.mxu0
    %v2389 = vsel %vm180, %v162, 0
    %v2392 = vsel %vm180, %v163, 0
    %v2395 = vsel %vm180, %v164, 0
    %v2398 = vsel %vm180, %v165, 0
    %2400 = vmatprep.subr.mxu0 0.0
    %2401 = vmatpush1.msra.mxu0 %v137
    %2402 = vmatprep.subr.mxu0 0.0
    %2403 = vmatpush1.msra.mxu0 %v138
    %2404 = vmatprep.subr.mxu0 0.0
    %2405 = vmatpush1.msra.mxu0 %v139
    %2406 = vmatprep.subr.mxu0 0.0
    %2407 = vmatpush1.msra.mxu0 %v140
    %2408 = vmatprep.subr.mxu0 0.0
    %2409 = vmatpush1.msra.mxu0 0.0
    %2410 = vmatprep.subr.mxu0 0.0
    %2411 = vmatpush1.msra.mxu0 0.0
    %2412 = vmatprep.subr.mxu0 0.0
    %2413 = vmatpush1.msra.mxu0 0.0
    %2414 = vmatprep.subr.mxu0 0.0
    %2415 = vmatpush1.msra.mxu0 0.0
    %2416 = vmatprep.subr.mxu0 0.0
    %2417 = vmatpush1.msra.mxu0 0.0
    %2418 = vmatprep.subr.mxu0 0.0
    %2419 = vmatpush1.msra.mxu0 0.0
    %2420 = vmatprep.subr.mxu0 0.0
    %2421 = vmatpush1.msra.mxu0 0.0
    %2422 = vmatprep.subr.mxu0 0.0
    %2423 = vmatpush1.msra.mxu0 0.0
    %2424 = vmatprep.subr.mxu0 0.0
    %2425 = vmatpush1.msra.mxu0 0.0
    %2426 = vmatprep.subr.mxu0 0.0
    %2427 = vmatpush1.msra.mxu0 0.0
    %2428 = vmatprep.subr.mxu0 0.0
    %2429 = vmatpush1.msra.mxu0 0.0
    %2430 = vmatprep.subr.mxu0 0.0
    %2431 = vmatpush1.msra.mxu0 0.0
    %2432 = vmatprep.subr.mxu0 0.0
    %2433 = vmatpush1.msra.mxu0 0.0
    %2434 = vmatprep.subr.mxu0 0.0
    %2435 = vmatpush1.msra.mxu0 0.0
    %2436 = vmatprep.subr.mxu0 0.0
    %2437 = vmatpush1.msra.mxu0 0.0
    %2438 = vmatprep.subr.mxu0 0.0
    %2439 = vmatpush1.msra.mxu0 0.0
    %2440 = vmatprep.subr.mxu0 0.0
    %2441 = vmatpush1.msra.mxu0 0.0
    %2442 = vmatprep.subr.mxu0 0.0
    %2443 = vmatpush1.msra.mxu0 0.0
    %2444 = vmatprep.subr.mxu0 0.0
    %2445 = vmatpush1.msra.mxu0 0.0
    %2446 = vmatprep.subr.mxu0 0.0
    %2447 = vmatpush1.msra.mxu0 0.0
    %2448 = vmatprep.subr.mxu0 0.0
    %2449 = vmatpush1.msra.mxu0 0.0
    %2450 = vmatprep.subr.mxu0 0.0
    %2451 = vmatpush1.msra.mxu0 0.0
    %2452 = vmatprep.subr.mxu0 0.0
    %2453 = vmatpush1.msra.mxu0 0.0
    %2454 = vmatprep.subr.mxu0 0.0
    %2455 = vmatpush1.msra.mxu0 0.0
    %2456 = vmatprep.subr.mxu0 0.0
    %2457 = vmatpush1.msra.mxu0 0.0
    %2458 = vmatprep.subr.mxu0 0.0
    %2459 = vmatpush1.msra.mxu0 0.0
    %2460 = vmatprep.subr.mxu0 0.0
    %2461 = vmatpush1.msra.mxu0 0.0
    %2462 = vmatprep.subr.mxu0 0.0
    %2463 = vmatpush1.msra.mxu0 0.0
    %2464 = vmatprep.mubr.f32.mxu0 0.0
    %2465 = vmatmul.mubr.f32.gmra.mrb[0].mxu0 %v2389
    %v2466 = vpop.f32.mrb[0].mxu0
    %v2467 = vadd.f32 0.0, %v2466
    %v2468 = vpop.f32.mrb[0].mxu0
    %2469 = vmatprep.mubr.f32.mxu0 0.0
    %2470 = vmatmul.mubr.f32.gmra.mrb[0].mxu0 %v2392
    %v2471 = vpop.f32.mrb[0].mxu0
    %v2472 = vadd.f32 0.0, %v2471
    %v2473 = vpop.f32.mrb[0].mxu0
    %2474 = vmatprep.mubr.f32.mxu0 0.0
    %2475 = vmatmul.mubr.f32.gmra.mrb[0].mxu0 %v2395
    %v2476 = vpop.f32.mrb[0].mxu0
    %v2477 = vadd.f32 0.0, %v2476
    %v2478 = vpop.f32.mrb[0].mxu0
    %2479 = vmatprep.mubr.f32.mxu0 0.0
    %2480 = vmatmul.mubr.f32.gmra.mrb[0].mxu0 %v2398
    %v2481 = vpop.f32.mrb[0].mxu0
    %v2482 = vadd.f32 0.0, %v2481
    %v2483 = vpop.f32.mrb[0].mxu0
    %2484 = vdwg.mxu0
    %v2486 = vlaneseq
    %v2487 = vshrl.u32 %v2486, 7
    %v2488 = vsub.s32 0, %v2487
    %v2489 = vrot.slane %v175, %v2488
    %v2492 = vsel %vm337, %v2289, 0
    %v2495 = vsel %vm337, %v2467, 0
    %v2498 = vsel %vm337, %v2472, 0
    %2500 = vmatprep.subr.mxu0 0.0
    %2501 = vmatpush1.xpose.msra.mxu0 %v2495
    %2502 = vmatprep.subr.mxu0 0.0
    %2503 = vmatpush1.xpose.msra.mxu0 %v2498
    %2504 = vmatprep.subr.mxu0 0.0
    %2505 = vmatpush1.xpose.msra.mxu0 0.0
    %2506 = vmatprep.subr.mxu0 0.0
    %2507 = vmatpush1.xpose.msra.mxu0 0.0
    %2508 = vmatprep.subr.mxu0 0.0
    %2509 = vmatpush1.xpose.msra.mxu0 0.0
    %2510 = vmatprep.subr.mxu0 0.0
    %2511 = vmatpush1.xpose.msra.mxu0 0.0
    %2512 = vmatprep.subr.mxu0 0.0
    %2513 = vmatpush1.xpose.msra.mxu0 0.0
    %2514 = vmatprep.subr.mxu0 0.0
    %2515 = vmatpush1.xpose.msra.mxu0 0.0
    %2516 = vmatprep.subr.mxu0 0.0
    %2517 = vmatpush1.xpose.msra.mxu0 0.0
    %2518 = vmatprep.subr.mxu0 0.0
    %2519 = vmatpush1.xpose.msra.mxu0 0.0
    %2520 = vmatprep.subr.mxu0 0.0
    %2521 = vmatpush1.xpose.msra.mxu0 0.0
    %2522 = vmatprep.subr.mxu0 0.0
    %2523 = vmatpush1.xpose.msra.mxu0 0.0
    %2524 = vmatprep.subr.mxu0 0.0
    %2525 = vmatpush1.xpose.msra.mxu0 0.0
    %2526 = vmatprep.subr.mxu0 0.0
    %2527 = vmatpush1.xpose.msra.mxu0 0.0
    %2528 = vmatprep.subr.mxu0 0.0
    %2529 = vmatpush1.xpose.msra.mxu0 0.0
    %2530 = vmatprep.subr.mxu0 0.0
    %2531 = vmatpush1.xpose.msra.mxu0 0.0
    %2532 = vmatprep.subr.mxu0 0.0
    %2533 = vmatpush1.xpose.msra.mxu0 0.0
    %2534 = vmatprep.subr.mxu0 0.0
    %2535 = vmatpush1.xpose.msra.mxu0 0.0
    %2536 = vmatprep.subr.mxu0 0.0
    %2537 = vmatpush1.xpose.msra.mxu0 0.0
    %2538 = vmatprep.subr.mxu0 0.0
    %2539 = vmatpush1.xpose.msra.mxu0 0.0
    %2540 = vmatprep.subr.mxu0 0.0
    %2541 = vmatpush1.xpose.msra.mxu0 0.0
    %2542 = vmatprep.subr.mxu0 0.0
    %2543 = vmatpush1.xpose.msra.mxu0 0.0
    %2544 = vmatprep.subr.mxu0 0.0
    %2545 = vmatpush1.xpose.msra.mxu0 0.0
    %2546 = vmatprep.subr.mxu0 0.0
    %2547 = vmatpush1.xpose.msra.mxu0 0.0
    %2548 = vmatprep.subr.mxu0 0.0
    %2549 = vmatpush1.xpose.msra.mxu0 0.0
    %2550 = vmatprep.subr.mxu0 0.0
    %2551 = vmatpush1.xpose.msra.mxu0 0.0
    %2552 = vmatprep.subr.mxu0 0.0
    %2553 = vmatpush1.xpose.msra.mxu0 0.0
    %2554 = vmatprep.subr.mxu0 0.0
    %2555 = vmatpush1.xpose.msra.mxu0 0.0
    %2556 = vmatprep.subr.mxu0 0.0
    %2557 = vmatpush1.xpose.msra.mxu0 0.0
    %2558 = vmatprep.subr.mxu0 0.0
    %2559 = vmatpush1.xpose.msra.mxu0 0.0
    %2560 = vmatprep.subr.mxu0 0.0
    %2561 = vmatpush1.xpose.msra.mxu0 0.0
    %2562 = vmatprep.subr.mxu0 0.0
    %2563 = vmatpush1.xpose.msra.mxu0 0.0
    %2564 = vmatprep.mubr.f32.mxu0 0.0
    %2565 = vmatmul.mubr.f32.gmra.mrb[0].mxu0 %v2492
    %v2566 = vpop.f32.mrb[0].mxu0
    %v2567 = vadd.f32 %v2489, %v2566
    %v2568 = vpop.f32.mrb[0].mxu0
    %2569 = vdwg.mxu0
    %v2570 = vmul.f32 %v2567, 0.17677669
    %vm2571 = vcmask 130048
    %v2572 = vsel %vm2571, %v2570, -inf
    %2573 = vmax.xlane.f32.xlu0 %v2572
    %v2574 = vpop.xlane.xlu0 %2573
    %v2575 = vsub.f32 %v2570, %v2574
    %v2576 = vmul.f32 %v2575, 1.442695
    %v2577 = vpow.pop %v2576
    %v2578 = vsel %vm2571, %v2577, 0.0
    %2579 = vadd.xlane.f32.xlu0 %v2578
    %v2580 = vpop.xlane.xlu0 %2579
    %v2581 = vrcp.pop %v2580
    %v2582 = vmul.f32 %v2577, %v2581
    %v2584 = vsel %vm2571, %v2582, 0
    %2586 = vmatprep.subr.mxu0 0.0
    %2587 = vmatpush1.msra.mxu0 %v2370
    %2588 = vmatprep.subr.mxu0 0.0
    %2589 = vmatpush1.msra.mxu0 %v2375
    %2590 = vmatprep.subr.mxu0 0.0
    %2591 = vmatpush1.msra.mxu0 0.0
    %2592 = vmatprep.subr.mxu0 0.0
    %2593 = vmatpush1.msra.mxu0 0.0
    %2594 = vmatprep.subr.mxu0 0.0
    %2595 = vmatpush1.msra.mxu0 0.0
    %2596 = vmatprep.subr.mxu0 0.0
    %2597 = vmatpush1.msra.mxu0 0.0
    %2598 = vmatprep.subr.mxu0 0.0
    %2599 = vmatpush1.msra.mxu0 0.0
    %2600 = vmatprep.subr.mxu0 0.0
    %2601 = vmatpush1.msra.mxu0 0.0
    %2602 = vmatprep.subr.mxu0 0.0
    %2603 = vmatpush1.msra.mxu0 0.0
    %2604 = vmatprep.subr.mxu0 0.0
    %2605 = vmatpush1.msra.mxu0 0.0
    %2606 = vmatprep.subr.mxu0 0.0
    %2607 = vmatpush1.msra.mxu0 0.0
    %2608 = vmatprep.subr.mxu0 0.0
    %2609 = vmatpush1.msra.mxu0 0.0
    %2610 = vmatprep.subr.mxu0 0.0
    %2611 = vmatpush1.msra.mxu0 0.0
    %2612 = vmatprep.subr.mxu0 0.0
    %2613 = vmatpush1.msra.mxu0 0.0
    %2614 = vmatprep.subr.mxu0 0.0
    %2615 = vmatpush1.msra.mxu0 0.0
    %2616 = vmatprep.subr.mxu0 0.0
    %2617 = vmatpush1.msra.mxu0 0.0
    %2618 = vmatprep.subr.mxu0 0.0
    %2619 = vmatpush1.msra.mxu0 0.0
    %2620 = vmatprep.subr.mxu0 0.0
    %2621 = vmatpush1.msra.mxu0 0.0
    %2622 = vmatprep.subr.mxu0 0.0
    %2623 = vmatpush1.msra.mxu0 0.0
    %2624 = vmatprep.subr.mxu0 0.0
    %2625 = vmatpush1.msra.mxu0 0.0
    %2626 = vmatprep.subr.mxu0 0.0
    %2627 = vmatpush1.msra.mxu0 0.0
    %2628 = vmatprep.subr.mxu0 0.0
    %2629 = vmatpush1.msra.mxu0 0.0
    %2630 = vmatprep.subr.mxu0 0.0
    %2631 = vmatpush1.msra.mxu0 0.0
    %2632 = vmatprep.subr.mxu0 0.0
    %2633 = vmatpush1.msra.mxu0 0.0
    %2634 = vmatprep.subr.mxu0 0.0
    %2635 = vmatpush1.msra.mxu0 0.0
    %2636 = vmatprep.subr.mxu0 0.0
    %2637 = vmatpush1.msra.mxu0 0.0
    %2638 = vmatprep.subr.mxu0 0.0
    %2639 = vmatpush1.msra.mxu0 0.0
    %2640 = vmatprep.subr.mxu0 0.0
    %2641 = vmatpush1.msra.mxu0 0.0
    %2642 = vmatprep.subr.mxu0 0.0
    %2643 = vmatpush1.msra.mxu0 0.0
    %2644 = vmatprep.subr.mxu0 0.0
    %2645 = vmatpush1.msra.mxu0 0.0
    %2646 = vmatprep.subr.mxu0 0.0
    %2647 = vmatpush1.msra.mxu0 0.0
    %2648 = vmatprep.subr.mxu0 0.0
    %2649 = vmatpush1.msra.mxu0 0.0
    %2650 = vmatprep.mubr.f32.mxu0 0.0
    %2651 = vmatmul.mubr.f32.gmra.mrb[0].mxu0 %v2584
    %v2652 = vpop.f32.mrb[0].mxu0
    %v2653 = vadd.f32 0.0, %v2652
    %v2654 = vpop.f32.mrb[0].mxu0
    %2655 = vdwg.mxu0
    %2656 = vrot.lane.b32.xlu0 %v2289, 120
    %v2657 = vpop.permute.xlu0 %2656
    %2658 = vrot.lane.b32.xlu0 %v2467, 120
    %v2659 = vpop.permute.xlu0 %2658
    %2660 = vrot.lane.b32.xlu0 %v2472, 120
    %v2661 = vpop.permute.xlu0 %2660
    %v2662 = vsel %vm337, %v2657, 0
    %v2664 = vsel %vm337, %v2659, 0
    %v2666 = vsel %vm337, %v2661, 0
    %2668 = vmatprep.subr.mxu0 0.0
    %2669 = vmatpush1.xpose.msra.mxu0 %v2664
    %2670 = vmatprep.subr.mxu0 0.0
    %2671 = vmatpush1.xpose.msra.mxu0 %v2666
    %2672 = vmatprep.subr.mxu0 0.0
    %2673 = vmatpush1.xpose.msra.mxu0 0.0
    %2674 = vmatprep.subr.mxu0 0.0
    %2675 = vmatpush1.xpose.msra.mxu0 0.0
    %2676 = vmatprep.subr.mxu0 0.0
    %2677 = vmatpush1.xpose.msra.mxu0 0.0
    %2678 = vmatprep.subr.mxu0 0.0
    %2679 = vmatpush1.xpose.msra.mxu0 0.0
    %2680 = vmatprep.subr.mxu0 0.0
    %2681 = vmatpush1.xpose.msra.mxu0 0.0
    %2682 = vmatprep.subr.mxu0 0.0
    %2683 = vmatpush1.xpose.msra.mxu0 0.0
    %2684 = vmatprep.subr.mxu0 0.0
    %2685 = vmatpush1.xpose.msra.mxu0 0.0
    %2686 = vmatprep.subr.mxu0 0.0
    %2687 = vmatpush1.xpose.msra.mxu0 0.0
    %2688 = vmatprep.subr.mxu0 0.0
    %2689 = vmatpush1.xpose.msra.mxu0 0.0
    %2690 = vmatprep.subr.mxu0 0.0
    %2691 = vmatpush1.xpose.msra.mxu0 0.0
    %2692 = vmatprep.subr.mxu0 0.0
    %2693 = vmatpush1.xpose.msra.mxu0 0.0
    %2694 = vmatprep.subr.mxu0 0.0
    %2695 = vmatpush1.xpose.msra.mxu0 0.0
    %2696 = vmatprep.subr.mxu0 0.0
    %2697 = vmatpush1.xpose.msra.mxu0 0.0
    %2698 = vmatprep.subr.mxu0 0.0
    %2699 = vmatpush1.xpose.msra.mxu0 0.0
    %2700 = vmatprep.subr.mxu0 0.0
    %2701 = vmatpush1.xpose.msra.mxu0 0.0
    %2702 = vmatprep.subr.mxu0 0.0
    %2703 = vmatpush1.xpose.msra.mxu0 0.0
    %2704 = vmatprep.subr.mxu0 0.0
    %2705 = vmatpush1.xpose.msra.mxu0 0.0
    %2706 = vmatprep.subr.mxu0 0.0
    %2707 = vmatpush1.xpose.msra.mxu0 0.0
    %2708 = vmatprep.subr.mxu0 0.0
    %2709 = vmatpush1.xpose.msra.mxu0 0.0
    %2710 = vmatprep.subr.mxu0 0.0
    %2711 = vmatpush1.xpose.msra.mxu0 0.0
    %2712 = vmatprep.subr.mxu0 0.0
    %2713 = vmatpush1.xpose.msra.mxu0 0.0
    %2714 = vmatprep.subr.mxu0 0.0
    %2715 = vmatpush1.xpose.msra.mxu0 0.0
    %2716 = vmatprep.subr.mxu0 0.0
    %2717 = vmatpush1.xpose.msra.mxu0 0.0
    %2718 = vmatprep.subr.mxu0 0.0
    %2719 = vmatpush1.xpose.msra.mxu0 0.0
    %2720 = vmatprep.subr.mxu0 0.0
    %2721 = vmatpush1.xpose.msra.mxu0 0.0
    %2722 = vmatprep.subr.mxu0 0.0
    %2723 = vmatpush1.xpose.msra.mxu0 0.0
    %2724 = vmatprep.subr.mxu0 0.0
    %2725 = vmatpush1.xpose.msra.mxu0 0.0
    %2726 = vmatprep.subr.mxu0 0.0
    %2727 = vmatpush1.xpose.msra.mxu0 0.0
    %2728 = vmatprep.subr.mxu0 0.0
    %2729 = vmatpush1.xpose.msra.mxu0 0.0
    %2730 = vmatprep.subr.mxu0 0.0
    %2731 = vmatpush1.xpose.msra.mxu0 0.0
    %2732 = vmatprep.mubr.f32.mxu0 0.0
    %2733 = vmatmul.mubr.f32.gmra.mrb[0].mxu0 %v2662
    %v2734 = vpop.f32.mrb[0].mxu0
    %v2735 = vadd.f32 %v2489, %v2734
    %v2736 = vpop.f32.mrb[0].mxu0
    %2737 = vdwg.mxu0
    %v2738 = vmul.f32 %v2735, 0.17677669
    %v2739 = vsel %vm2571, %v2738, -inf
    %2740 = vmax.xlane.f32.xlu0 %v2739
    %v2741 = vpop.xlane.xlu0 %2740
    %v2742 = vsub.f32 %v2738, %v2741
    %v2743 = vmul.f32 %v2742, 1.442695
    %v2744 = vpow.pop %v2743
    %v2745 = vsel %vm2571, %v2744, 0.0
    %2746 = vadd.xlane.f32.xlu0 %v2745
    %v2747 = vpop.xlane.xlu0 %2746
    %v2748 = vrcp.pop %v2747
    %v2749 = vmul.f32 %v2744, %v2748
    %2752 = vrot.lane.b32.xlu0 %v2370, 120
    %v2753 = vpop.permute.xlu0 %2752
    %2754 = vrot.lane.b32.xlu0 %v2375, 120
    %v2755 = vpop.permute.xlu0 %2754
    %v2759 = vsel %vm2571, %v2749, 0
    %2761 = vmatprep.subr.mxu0 0.0
    %2762 = vmatpush1.msra.mxu0 %v2753
    %2763 = vmatprep.subr.mxu0 0.0
    %2764 = vmatpush1.msra.mxu0 %v2755
    %2765 = vmatprep.subr.mxu0 0.0
    %2766 = vmatpush1.msra.mxu0 0.0
    %2767 = vmatprep.subr.mxu0 0.0
    %2768 = vmatpush1.msra.mxu0 0.0
    %2769 = vmatprep.subr.mxu0 0.0
    %2770 = vmatpush1.msra.mxu0 0.0
    %2771 = vmatprep.subr.mxu0 0.0
    %2772 = vmatpush1.msra.mxu0 0.0
    %2773 = vmatprep.subr.mxu0 0.0
    %2774 = vmatpush1.msra.mxu0 0.0
    %2775 = vmatprep.subr.mxu0 0.0
    %2776 = vmatpush1.msra.mxu0 0.0
    %2777 = vmatprep.subr.mxu0 0.0
    %2778 = vmatpush1.msra.mxu0 0.0
    %2779 = vmatprep.subr.mxu0 0.0
    %2780 = vmatpush1.msra.mxu0 0.0
    %2781 = vmatprep.subr.mxu0 0.0
    %2782 = vmatpush1.msra.mxu0 0.0
    %2783 = vmatprep.subr.mxu0 0.0
    %2784 = vmatpush1.msra.mxu0 0.0
    %2785 = vmatprep.subr.mxu0 0.0
    %2786 = vmatpush1.msra.mxu0 0.0
    %2787 = vmatprep.subr.mxu0 0.0
    %2788 = vmatpush1.msra.mxu0 0.0
    %2789 = vmatprep.subr.mxu0 0.0
    %2790 = vmatpush1.msra.mxu0 0.0
    %2791 = vmatprep.subr.mxu0 0.0
    %2792 = vmatpush1.msra.mxu0 0.0
    %2793 = vmatprep.subr.mxu0 0.0
    %2794 = vmatpush1.msra.mxu0 0.0
    %2795 = vmatprep.subr.mxu0 0.0
    %2796 = vmatpush1.msra.mxu0 0.0
    %2797 = vmatprep.subr.mxu0 0.0
    %2798 = vmatpush1.msra.mxu0 0.0
    %2799 = vmatprep.subr.mxu0 0.0
    %2800 = vmatpush1.msra.mxu0 0.0
    %2801 = vmatprep.subr.mxu0 0.0
    %2802 = vmatpush1.msra.mxu0 0.0
    %2803 = vmatprep.subr.mxu0 0.0
    %2804 = vmatpush1.msra.mxu0 0.0
    %2805 = vmatprep.subr.mxu0 0.0
    %2806 = vmatpush1.msra.mxu0 0.0
    %2807 = vmatprep.subr.mxu0 0.0
    %2808 = vmatpush1.msra.mxu0 0.0
    %2809 = vmatprep.subr.mxu0 0.0
    %2810 = vmatpush1.msra.mxu0 0.0
    %2811 = vmatprep.subr.mxu0 0.0
    %2812 = vmatpush1.msra.mxu0 0.0
    %2813 = vmatprep.subr.mxu0 0.0
    %2814 = vmatpush1.msra.mxu0 0.0
    %2815 = vmatprep.subr.mxu0 0.0
    %2816 = vmatpush1.msra.mxu0 0.0
    %2817 = vmatprep.subr.mxu0 0.0
    %2818 = vmatpush1.msra.mxu0 0.0
    %2819 = vmatprep.subr.mxu0 0.0
    %2820 = vmatpush1.msra.mxu0 0.0
    %2821 = vmatprep.subr.mxu0 0.0
    %2822 = vmatpush1.msra.mxu0 0.0
    %2823 = vmatprep.subr.mxu0 0.0
    %2824 = vmatpush1.msra.mxu0 0.0
    %2825 = vmatprep.mubr.f32.mxu0 0.0
    %2826 = vmatmul.mubr.f32.gmra.mrb[0].mxu0 %v2759
    %v2827 = vpop.f32.mrb[0].mxu0
    %v2828 = vadd.f32 0.0, %v2827
    %v2829 = vpop.f32.mrb[0].mxu0
    %2830 = vdwg.mxu0
    %v2832 = vsel %vm337, %v2828, 0
    %2834 = vmatprep.subr.mxu0 0.0
    %2835 = vmatpush1.msra.mxu0 %v143
    %2836 = vmatprep.subr.mxu0 0.0
    %2837 = vmatpush1.msra.mxu0 0.0
    %2838 = vmatprep.subr.mxu0 0.0
    %2839 = vmatpush1.msra.mxu0 0.0
    %2840 = vmatprep.subr.mxu0 0.0
    %2841 = vmatpush1.msra.mxu0 0.0
    %2842 = vmatprep.subr.mxu0 0.0
    %2843 = vmatpush1.msra.mxu0 0.0
    %2844 = vmatprep.subr.mxu0 0.0
    %2845 = vmatpush1.msra.mxu0 0.0
    %2846 = vmatprep.subr.mxu0 0.0
    %2847 = vmatpush1.msra.mxu0 0.0
    %2848 = vmatprep.subr.mxu0 0.0
    %2849 = vmatpush1.msra.mxu0 0.0
    %2850 = vmatprep.subr.mxu0 0.0
    %2851 = vmatpush1.msra.mxu0 0.0
    %2852 = vmatprep.subr.mxu0 0.0
    %2853 = vmatpush1.msra.mxu0 0.0
    %2854 = vmatprep.subr.mxu0 0.0
    %2855 = vmatpush1.msra.mxu0 0.0
    %2856 = vmatprep.subr.mxu0 0.0
    %2857 = vmatpush1.msra.mxu0 0.0
    %2858 = vmatprep.subr.mxu0 0.0
    %2859 = vmatpush1.msra.mxu0 0.0
    %2860 = vmatprep.subr.mxu0 0.0
    %2861 = vmatpush1.msra.mxu0 0.0
    %2862 = vmatprep.subr.mxu0 0.0
    %2863 = vmatpush1.msra.mxu0 0.0
    %2864 = vmatprep.subr.mxu0 0.0
    %2865 = vmatpush1.msra.mxu0 0.0
    %2866 = vmatprep.subr.mxu0 0.0
    %2867 = vmatpush1.msra.mxu0 0.0
    %2868 = vmatprep.subr.mxu0 0.0
    %2869 = vmatpush1.msra.mxu0 0.0
    %2870 = vmatprep.subr.mxu0 0.0
    %2871 = vmatpush1.msra.mxu0 0.0
    %2872 = vmatprep.subr.mxu0 0.0
    %2873 = vmatpush1.msra.mxu0 0.0
    %2874 = vmatprep.subr.mxu0 0.0
    %2875 = vmatpush1.msra.mxu0 0.0
    %2876 = vmatprep.subr.mxu0 0.0
    %2877 = vmatpush1.msra.mxu0 0.0
    %2878 = vmatprep.subr.mxu0 0.0
    %2879 = vmatpush1.msra.mxu0 0.0
    %2880 = vmatprep.subr.mxu0 0.0
    %2881 = vmatpush1.msra.mxu0 0.0
    %2882 = vmatprep.subr.mxu0 0.0
    %2883 = vmatpush1.msra.mxu0 0.0
    %2884 = vmatprep.subr.mxu0 0.0
    %2885 = vmatpush1.msra.mxu0 0.0
    %2886 = vmatprep.subr.mxu0 0.0
    %2887 = vmatpush1.msra.mxu0 0.0
    %2888 = vmatprep.subr.mxu0 0.0
    %2889 = vmatpush1.msra.mxu0 0.0
    %2890 = vmatprep.subr.mxu0 0.0
    %2891 = vmatpush1.msra.mxu0 0.0
    %2892 = vmatprep.subr.mxu0 0.0
    %2893 = vmatpush1.msra.mxu0 0.0
    %2894 = vmatprep.subr.mxu0 0.0
    %2895 = vmatpush1.msra.mxu0 0.0
    %2896 = vmatprep.subr.mxu0 0.0
    %2897 = vmatpush1.msra.mxu0 0.0
    %2898 = vmatprep.mubr.f32.mxu0 0.0
    %2899 = vmatmul.mubr.f32.gmra.mrb[0].mxu0 %v2832
    %v2900 = vpop.f32.mrb[0].mxu0
    %v2901 = vadd.f32 0.0, %v2900
    %v2902 = vpop.f32.mrb[0].mxu0
    %2903 = vdwg.mxu0
    %v2905 = vsel %vm337, %v2653, 0
    %2907 = vmatprep.subr.mxu0 0.0
    %2908 = vmatpush1.msra.mxu0 %v142
    %2909 = vmatprep.subr.mxu0 0.0
    %2910 = vmatpush1.msra.mxu0 0.0
    %2911 = vmatprep.subr.mxu0 0.0
    %2912 = vmatpush1.msra.mxu0 0.0
    %2913 = vmatprep.subr.mxu0 0.0
    %2914 = vmatpush1.msra.mxu0 0.0
    %2915 = vmatprep.subr.mxu0 0.0
    %2916 = vmatpush1.msra.mxu0 0.0
    %2917 = vmatprep.subr.mxu0 0.0
    %2918 = vmatpush1.msra.mxu0 0.0
    %2919 = vmatprep.subr.mxu0 0.0
    %2920 = vmatpush1.msra.mxu0 0.0
    %2921 = vmatprep.subr.mxu0 0.0
    %2922 = vmatpush1.msra.mxu0 0.0
    %2923 = vmatprep.subr.mxu0 0.0
    %2924 = vmatpush1.msra.mxu0 0.0
    %2925 = vmatprep.subr.mxu0 0.0
    %2926 = vmatpush1.msra.mxu0 0.0
    %2927 = vmatprep.subr.mxu0 0.0
    %2928 = vmatpush1.msra.mxu0 0.0
    %2929 = vmatprep.subr.mxu0 0.0
    %2930 = vmatpush1.msra.mxu0 0.0
    %2931 = vmatprep.subr.mxu0 0.0
    %2932 = vmatpush1.msra.mxu0 0.0
    %2933 = vmatprep.subr.mxu0 0.0
    %2934 = vmatpush1.msra.mxu0 0.0
    %2935 = vmatprep.subr.mxu0 0.0
    %2936 = vmatpush1.msra.mxu0 0.0
    %2937 = vmatprep.subr.mxu0 0.0
    %2938 = vmatpush1.msra.mxu0 0.0
    %2939 = vmatprep.subr.mxu0 0.0
    %2940 = vmatpush1.msra.mxu0 0.0
    %2941 = vmatprep.subr.mxu0 0.0
    %2942 = vmatpush1.msra.mxu0 0.0
    %2943 = vmatprep.subr.mxu0 0.0
    %2944 = vmatpush1.msra.mxu0 0.0
    %2945 = vmatprep.subr.mxu0 0.0
    %2946 = vmatpush1.msra.mxu0 0.0
    %2947 = vmatprep.subr.mxu0 0.0
    %2948 = vmatpush1.msra.mxu0 0.0
    %2949 = vmatprep.subr.mxu0 0.0
    %2950 = vmatpush1.msra.mxu0 0.0
    %2951 = vmatprep.subr.mxu0 0.0
    %2952 = vmatpush1.msra.mxu0 0.0
    %2953 = vmatprep.subr.mxu0 0.0
    %2954 = vmatpush1.msra.mxu0 0.0
    %2955 = vmatprep.subr.mxu0 0.0
    %2956 = vmatpush1.msra.mxu0 0.0
    %2957 = vmatprep.subr.mxu0 0.0
    %2958 = vmatpush1.msra.mxu0 0.0
    %2959 = vmatprep.subr.mxu0 0.0
    %2960 = vmatpush1.msra.mxu0 0.0
    %2961 = vmatprep.subr.mxu0 0.0
    %2962 = vmatpush1.msra.mxu0 0.0
    %2963 = vmatprep.subr.mxu0 0.0
    %2964 = vmatpush1.msra.mxu0 0.0
    %2965 = vmatprep.subr.mxu0 0.0
    %2966 = vmatpush1.msra.mxu0 0.0
    %2967 = vmatprep.subr.mxu0 0.0
    %2968 = vmatpush1.msra.mxu0 0.0
    %2969 = vmatprep.subr.mxu0 0.0
    %2970 = vmatpush1.msra.mxu0 0.0
    %2971 = vmatprep.mubr.f32.mxu0 0.0
    %2972 = vmatmul.mubr.f32.gmra.mrb[0].mxu0 %v2905
    %v2973 = vpop.f32.mrb[0].mxu0
    %v2974 = vadd.f32 %v2901, %v2973
    %v2975 = vpop.f32.mrb[0].mxu0
    %2976 = vdwg.mxu0
    %2977 = vrot.lane.b32.xlu0 %v2289, 112
    %v2978 = vpop.permute.xlu0 %2977
    %2979 = vrot.lane.b32.xlu0 %v2467, 112
    %v2980 = vpop.permute.xlu0 %2979
    %2981 = vrot.lane.b32.xlu0 %v2472, 112
    %v2982 = vpop.permute.xlu0 %2981
    %v2983 = vsel %vm337, %v2978, 0
    %v2985 = vsel %vm337, %v2980, 0
    %v2987 = vsel %vm337, %v2982, 0
    %2989 = vmatprep.subr.mxu0 0.0
    %2990 = vmatpush1.xpose.msra.mxu0 %v2985
    %2991 = vmatprep.subr.mxu0 0.0
    %2992 = vmatpush1.xpose.msra.mxu0 %v2987
    %2993 = vmatprep.subr.mxu0 0.0
    %2994 = vmatpush1.xpose.msra.mxu0 0.0
    %2995 = vmatprep.subr.mxu0 0.0
    %2996 = vmatpush1.xpose.msra.mxu0 0.0
    %2997 = vmatprep.subr.mxu0 0.0
    %2998 = vmatpush1.xpose.msra.mxu0 0.0
    %2999 = vmatprep.subr.mxu0 0.0
    %3000 = vmatpush1.xpose.msra.mxu0 0.0
    %3001 = vmatprep.subr.mxu0 0.0
    %3002 = vmatpush1.xpose.msra.mxu0 0.0
    %3003 = vmatprep.subr.mxu0 0.0
    %3004 = vmatpush1.xpose.msra.mxu0 0.0
    %3005 = vmatprep.subr.mxu0 0.0
    %3006 = vmatpush1.xpose.msra.mxu0 0.0
    %3007 = vmatprep.subr.mxu0 0.0
    %3008 = vmatpush1.xpose.msra.mxu0 0.0
    %3009 = vmatprep.subr.mxu0 0.0
    %3010 = vmatpush1.xpose.msra.mxu0 0.0
    %3011 = vmatprep.subr.mxu0 0.0
    %3012 = vmatpush1.xpose.msra.mxu0 0.0
    %3013 = vmatprep.subr.mxu0 0.0
    %3014 = vmatpush1.xpose.msra.mxu0 0.0
    %3015 = vmatprep.subr.mxu0 0.0
    %3016 = vmatpush1.xpose.msra.mxu0 0.0
    %3017 = vmatprep.subr.mxu0 0.0
    %3018 = vmatpush1.xpose.msra.mxu0 0.0
    %3019 = vmatprep.subr.mxu0 0.0
    %3020 = vmatpush1.xpose.msra.mxu0 0.0
    %3021 = vmatprep.subr.mxu0 0.0
    %3022 = vmatpush1.xpose.msra.mxu0 0.0
    %3023 = vmatprep.subr.mxu0 0.0
    %3024 = vmatpush1.xpose.msra.mxu0 0.0
    %3025 = vmatprep.subr.mxu0 0.0
    %3026 = vmatpush1.xpose.msra.mxu0 0.0
    %3027 = vmatprep.subr.mxu0 0.0
    %3028 = vmatpush1.xpose.msra.mxu0 0.0
    %3029 = vmatprep.subr.mxu0 0.0
    %3030 = vmatpush1.xpose.msra.mxu0 0.0
    %3031 = vmatprep.subr.mxu0 0.0
    %3032 = vmatpush1.xpose.msra.mxu0 0.0
    %3033 = vmatprep.subr.mxu0 0.0
    %3034 = vmatpush1.xpose.msra.mxu0 0.0
    %3035 = vmatprep.subr.mxu0 0.0
    %3036 = vmatpush1.xpose.msra.mxu0 0.0
    %3037 = vmatprep.subr.mxu0 0.0
    %3038 = vmatpush1.xpose.msra.mxu0 0.0
    %3039 = vmatprep.subr.mxu0 0.0
    %3040 = vmatpush1.xpose.msra.mxu0 0.0
    %3041 = vmatprep.subr.mxu0 0.0
    %3042 = vmatpush1.xpose.msra.mxu0 0.0
    %3043 = vmatprep.subr.mxu0 0.0
    %3044 = vmatpush1.xpose.msra.mxu0 0.0
    %3045 = vmatprep.subr.mxu0 0.0
    %3046 = vmatpush1.xpose.msra.mxu0 0.0
    %3047 = vmatprep.subr.mxu0 0.0
    %3048 = vmatpush1.xpose.msra.mxu0 0.0
    %3049 = vmatprep.subr.mxu0 0.0
    %3050 = vmatpush1.xpose.msra.mxu0 0.0
    %3051 = vmatprep.subr.mxu0 0.0
    %3052 = vmatpush1.xpose.msra.mxu0 0.0
    %3053 = vmatprep.mubr.f32.mxu0 0.0
    %3054 = vmatmul.mubr.f32.gmra.mrb[0].mxu0 %v2983
    %v3055 = vpop.f32.mrb[0].mxu0
    %v3056 = vadd.f32 %v2489, %v3055
    %v3057 = vpop.f32.mrb[0].mxu0
    %3058 = vdwg.mxu0
    %v3059 = vmul.f32 %v3056, 0.17677669
    %v3060 = vsel %vm2571, %v3059, -inf
    %3061 = vmax.xlane.f32.xlu0 %v3060
    %v3062 = vpop.xlane.xlu0 %3061
    %v3063 = vsub.f32 %v3059, %v3062
    %v3064 = vmul.f32 %v3063, 1.442695
    %v3065 = vpow.pop %v3064
    %v3066 = vsel %vm2571, %v3065, 0.0
    %3067 = vadd.xlane.f32.xlu0 %v3066
    %v3068 = vpop.xlane.xlu0 %3067
    %v3069 = vrcp.pop %v3068
    %v3070 = vmul.f32 %v3065, %v3069
    %3071 = vrot.lane.b32.xlu0 %v2370, 112
    %v3072 = vpop.permute.xlu0 %3071
    %3073 = vrot.lane.b32.xlu0 %v2375, 112
    %v3074 = vpop.permute.xlu0 %3073
    %v3078 = vsel %vm2571, %v3070, 0
    %3080 = vmatprep.subr.mxu0 0.0
    %3081 = vmatpush1.msra.mxu0 %v3072
    %3082 = vmatprep.subr.mxu0 0.0
    %3083 = vmatpush1.msra.mxu0 %v3074
    %3084 = vmatprep.subr.mxu0 0.0
    %3085 = vmatpush1.msra.mxu0 0.0
    %3086 = vmatprep.subr.mxu0 0.0
    %3087 = vmatpush1.msra.mxu0 0.0
    %3088 = vmatprep.subr.mxu0 0.0
    %3089 = vmatpush1.msra.mxu0 0.0
    %3090 = vmatprep.subr.mxu0 0.0
    %3091 = vmatpush1.msra.mxu0 0.0
    %3092 = vmatprep.subr.mxu0 0.0
    %3093 = vmatpush1.msra.mxu0 0.0
    %3094 = vmatprep.subr.mxu0 0.0
    %3095 = vmatpush1.msra.mxu0 0.0
    %3096 = vmatprep.subr.mxu0 0.0
    %3097 = vmatpush1.msra.mxu0 0.0
    %3098 = vmatprep.subr.mxu0 0.0
    %3099 = vmatpush1.msra.mxu0 0.0
    %3100 = vmatprep.subr.mxu0 0.0
    %3101 = vmatpush1.msra.mxu0 0.0
    %3102 = vmatprep.subr.mxu0 0.0
    %3103 = vmatpush1.msra.mxu0 0.0
    %3104 = vmatprep.subr.mxu0 0.0
    %3105 = vmatpush1.msra.mxu0 0.0
    %3106 = vmatprep.subr.mxu0 0.0
    %3107 = vmatpush1.msra.mxu0 0.0
    %3108 = vmatprep.subr.mxu0 0.0
    %3109 = vmatpush1.msra.mxu0 0.0
    %3110 = vmatprep.subr.mxu0 0.0
    %3111 = vmatpush1.msra.mxu0 0.0
    %3112 = vmatprep.subr.mxu0 0.0
    %3113 = vmatpush1.msra.mxu0 0.0
    %3114 = vmatprep.subr.mxu0 0.0
    %3115 = vmatpush1.msra.mxu0 0.0
    %3116 = vmatprep.subr.mxu0 0.0
    %3117 = vmatpush1.msra.mxu0 0.0
    %3118 = vmatprep.subr.mxu0 0.0
    %3119 = vmatpush1.msra.mxu0 0.0
    %3120 = vmatprep.subr.mxu0 0.0
    %3121 = vmatpush1.msra.mxu0 0.0
    %3122 = vmatprep.subr.mxu0 0.0
    %3123 = vmatpush1.msra.mxu0 0.0
    %3124 = vmatprep.subr.mxu0 0.0
    %3125 = vmatpush1.msra.mxu0 0.0
    %3126 = vmatprep.subr.mxu0 0.0
    %3127 = vmatpush1.msra.mxu0 0.0
    %3128 = vmatprep.subr.mxu0 0.0
    %3129 = vmatpush1.msra.mxu0 0.0
    %3130 = vmatprep.subr.mxu0 0.0
    %3131 = vmatpush1.msra.mxu0 0.0
    %3132 = vmatprep.subr.mxu0 0.0
    %3133 = vmatpush1.msra.mxu0 0.0
    %3134 = vmatprep.subr.mxu0 0.0
    %3135 = vmatpush1.msra.mxu0 0.0
    %3136 = vmatprep.subr.mxu0 0.0
    %3137 = vmatpush1.msra.mxu0 0.0
    %3138 = vmatprep.subr.mxu0 0.0
    %3139 = vmatpush1.msra.mxu0 0.0
    %3140 = vmatprep.subr.mxu0 0.0
    %3141 = vmatpush1.msra.mxu0 0.0
    %3142 = vmatprep.subr.mxu0 0.0
    %3143 = vmatpush1.msra.mxu0 0.0
    %3144 = vmatprep.mubr.f32.mxu0 0.0
    %3145 = vmatmul.mubr.f32.gmra.mrb[0].mxu0 %v3078
    %v3146 = vpop.f32.mrb[0].mxu0
    %v3147 = vadd.f32 0.0, %v3146
    %v3148 = vpop.f32.mrb[0].mxu0
    %3149 = vdwg.mxu0
    %v3151 = vsel %vm337, %v3147, 0
    %3153 = vmatprep.subr.mxu0 0.0
    %3154 = vmatpush1.msra.mxu0 %v144
    %3155 = vmatprep.subr.mxu0 0.0
    %3156 = vmatpush1.msra.mxu0 0.0
    %3157 = vmatprep.subr.mxu0 0.0
    %3158 = vmatpush1.msra.mxu0 0.0
    %3159 = vmatprep.subr.mxu0 0.0
    %3160 = vmatpush1.msra.mxu0 0.0
    %3161 = vmatprep.subr.mxu0 0.0
    %3162 = vmatpush1.msra.mxu0 0.0
    %3163 = vmatprep.subr.mxu0 0.0
    %3164 = vmatpush1.msra.mxu0 0.0
    %3165 = vmatprep.subr.mxu0 0.0
    %3166 = vmatpush1.msra.mxu0 0.0
    %3167 = vmatprep.subr.mxu0 0.0
    %3168 = vmatpush1.msra.mxu0 0.0
    %3169 = vmatprep.subr.mxu0 0.0
    %3170 = vmatpush1.msra.mxu0 0.0
    %3171 = vmatprep.subr.mxu0 0.0
    %3172 = vmatpush1.msra.mxu0 0.0
    %3173 = vmatprep.subr.mxu0 0.0
    %3174 = vmatpush1.msra.mxu0 0.0
    %3175 = vmatprep.subr.mxu0 0.0
    %3176 = vmatpush1.msra.mxu0 0.0
    %3177 = vmatprep.subr.mxu0 0.0
    %3178 = vmatpush1.msra.mxu0 0.0
    %3179 = vmatprep.subr.mxu0 0.0
    %3180 = vmatpush1.msra.mxu0 0.0
    %3181 = vmatprep.subr.mxu0 0.0
    %3182 = vmatpush1.msra.mxu0 0.0
    %3183 = vmatprep.subr.mxu0 0.0
    %3184 = vmatpush1.msra.mxu0 0.0
    %3185 = vmatprep.subr.mxu0 0.0
    %3186 = vmatpush1.msra.mxu0 0.0
    %3187 = vmatprep.subr.mxu0 0.0
    %3188 = vmatpush1.msra.mxu0 0.0
    %3189 = vmatprep.subr.mxu0 0.0
    %3190 = vmatpush1.msra.mxu0 0.0
    %3191 = vmatprep.subr.mxu0 0.0
    %3192 = vmatpush1.msra.mxu0 0.0
    %3193 = vmatprep.subr.mxu0 0.0
    %3194 = vmatpush1.msra.mxu0 0.0
    %3195 = vmatprep.subr.mxu0 0.0
    %3196 = vmatpush1.msra.mxu0 0.0
    %3197 = vmatprep.subr.mxu0 0.0
    %3198 = vmatpush1.msra.mxu0 0.0
    %3199 = vmatprep.subr.mxu0 0.0
    %3200 = vmatpush1.msra.mxu0 0.0
    %3201 = vmatprep.subr.mxu0 0.0
    %3202 = vmatpush1.msra.mxu0 0.0
    %3203 = vmatprep.subr.mxu0 0.0
    %3204 = vmatpush1.msra.mxu0 0.0
    %3205 = vmatprep.subr.mxu0 0.0
    %3206 = vmatpush1.msra.mxu0 0.0
    %3207 = vmatprep.subr.mxu0 0.0
    %3208 = vmatpush1.msra.mxu0 0.0
    %3209 = vmatprep.subr.mxu0 0.0
    %3210 = vmatpush1.msra.mxu0 0.0
    %3211 = vmatprep.subr.mxu0 0.0
    %3212 = vmatpush1.msra.mxu0 0.0
    %3213 = vmatprep.subr.mxu0 0.0
    %3214 = vmatpush1.msra.mxu0 0.0
    %3215 = vmatprep.subr.mxu0 0.0
    %3216 = vmatpush1.msra.mxu0 0.0
    %3217 = vmatprep.mubr.f32.mxu0 0.0
    %3218 = vmatmul.mubr.f32.gmra.mrb[0].mxu0 %v3151
    %v3219 = vpop.f32.mrb[0].mxu0
    %v3220 = vadd.f32 0.0, %v3219
    %v3221 = vpop.f32.mrb[0].mxu0
    %3222 = vdwg.mxu0
    %v3223 = vadd.f32 %v2974, %v3220
    %3224 = vrot.lane.b32.xlu0 %v2289, 104
    %v3225 = vpop.permute.xlu0 %3224
    %3226 = vrot.lane.b32.xlu0 %v2467, 104
    %v3227 = vpop.permute.xlu0 %3226
    %3228 = vrot.lane.b32.xlu0 %v2472, 104
    %v3229 = vpop.permute.xlu0 %3228
    %v3230 = vsel %vm337, %v3225, 0
    %v3232 = vsel %vm337, %v3227, 0
    %v3234 = vsel %vm337, %v3229, 0
    %3236 = vmatprep.subr.mxu0 0.0
    %3237 = vmatpush1.xpose.msra.mxu0 %v3232
    %3238 = vmatprep.subr.mxu0 0.0
    %3239 = vmatpush1.xpose.msra.mxu0 %v3234
    %3240 = vmatprep.subr.mxu0 0.0
    %3241 = vmatpush1.xpose.msra.mxu0 0.0
    %3242 = vmatprep.subr.mxu0 0.0
    %3243 = vmatpush1.xpose.msra.mxu0 0.0
    %3244 = vmatprep.subr.mxu0 0.0
    %3245 = vmatpush1.xpose.msra.mxu0 0.0
    %3246 = vmatprep.subr.mxu0 0.0
    %3247 = vmatpush1.xpose.msra.mxu0 0.0
    %3248 = vmatprep.subr.mxu0 0.0
    %3249 = vmatpush1.xpose.msra.mxu0 0.0
    %3250 = vmatprep.subr.mxu0 0.0
    %3251 = vmatpush1.xpose.msra.mxu0 0.0
    %3252 = vmatprep.subr.mxu0 0.0
    %3253 = vmatpush1.xpose.msra.mxu0 0.0
    %3254 = vmatprep.subr.mxu0 0.0
    %3255 = vmatpush1.xpose.msra.mxu0 0.0
    %3256 = vmatprep.subr.mxu0 0.0
    %3257 = vmatpush1.xpose.msra.mxu0 0.0
    %3258 = vmatprep.subr.mxu0 0.0
    %3259 = vmatpush1.xpose.msra.mxu0 0.0
    %3260 = vmatprep.subr.mxu0 0.0
    %3261 = vmatpush1.xpose.msra.mxu0 0.0
    %3262 = vmatprep.subr.mxu0 0.0
    %3263 = vmatpush1.xpose.msra.mxu0 0.0
    %3264 = vmatprep.subr.mxu0 0.0
    %3265 = vmatpush1.xpose.msra.mxu0 0.0
    %3266 = vmatprep.subr.mxu0 0.0
    %3267 = vmatpush1.xpose.msra.mxu0 0.0
    %3268 = vmatprep.subr.mxu0 0.0
    %3269 = vmatpush1.xpose.msra.mxu0 0.0
    %3270 = vmatprep.subr.mxu0 0.0
    %3271 = vmatpush1.xpose.msra.mxu0 0.0
    %3272 = vmatprep.subr.mxu0 0.0
    %3273 = vmatpush1.xpose.msra.mxu0 0.0
    %3274 = vmatprep.subr.mxu0 0.0
    %3275 = vmatpush1.xpose.msra.mxu0 0.0
    %3276 = vmatprep.subr.mxu0 0.0
    %3277 = vmatpush1.xpose.msra.mxu0 0.0
    %3278 = vmatprep.subr.mxu0 0.0
    %3279 = vmatpush1.xpose.msra.mxu0 0.0
    %3280 = vmatprep.subr.mxu0 0.0
    %3281 = vmatpush1.xpose.msra.mxu0 0.0
    %3282 = vmatprep.subr.mxu0 0.0
    %3283 = vmatpush1.xpose.msra.mxu0 0.0
    %3284 = vmatprep.subr.mxu0 0.0
    %3285 = vmatpush1.xpose.msra.mxu0 0.0
    %3286 = vmatprep.subr.mxu0 0.0
    %3287 = vmatpush1.xpose.msra.mxu0 0.0
    %3288 = vmatprep.subr.mxu0 0.0
    %3289 = vmatpush1.xpose.msra.mxu0 0.0
    %3290 = vmatprep.subr.mxu0 0.0
    %3291 = vmatpush1.xpose.msra.mxu0 0.0
    %3292 = vmatprep.subr.mxu0 0.0
    %3293 = vmatpush1.xpose.msra.mxu0 0.0
    %3294 = vmatprep.subr.mxu0 0.0
    %3295 = vmatpush1.xpose.msra.mxu0 0.0
    %3296 = vmatprep.subr.mxu0 0.0
    %3297 = vmatpush1.xpose.msra.mxu0 0.0
    %3298 = vmatprep.subr.mxu0 0.0
    %3299 = vmatpush1.xpose.msra.mxu0 0.0
    %3300 = vmatprep.mubr.f32.mxu0 0.0
    %3301 = vmatmul.mubr.f32.gmra.mrb[0].mxu0 %v3230
    %v3302 = vpop.f32.mrb[0].mxu0
    %v3303 = vadd.f32 %v2489, %v3302
    %v3304 = vpop.f32.mrb[0].mxu0
    %3305 = vdwg.mxu0
    %v3306 = vmul.f32 %v3303, 0.17677669
    %v3307 = vsel %vm2571, %v3306, -inf
    %3308 = vmax.xlane.f32.xlu0 %v3307
    %v3309 = vpop.xlane.xlu0 %3308
    %v3310 = vsub.f32 %v3306, %v3309
    %v3311 = vmul.f32 %v3310, 1.442695
    %v3312 = vpow.pop %v3311
    %v3313 = vsel %vm2571, %v3312, 0.0
    %3314 = vadd.xlane.f32.xlu0 %v3313
    %v3315 = vpop.xlane.xlu0 %3314
    %v3316 = vrcp.pop %v3315
    %v3317 = vmul.f32 %v3312, %v3316
    %3318 = vrot.lane.b32.xlu0 %v2370, 104
    %v3319 = vpop.permute.xlu0 %3318
    %3320 = vrot.lane.b32.xlu0 %v2375, 104
    %v3321 = vpop.permute.xlu0 %3320
    %v3325 = vsel %vm2571, %v3317, 0
    %3327 = vmatprep.subr.mxu0 0.0
    %3328 = vmatpush1.msra.mxu0 %v3319
    %3329 = vmatprep.subr.mxu0 0.0
    %3330 = vmatpush1.msra.mxu0 %v3321
    %3331 = vmatprep.subr.mxu0 0.0
    %3332 = vmatpush1.msra.mxu0 0.0
    %3333 = vmatprep.subr.mxu0 0.0
    %3334 = vmatpush1.msra.mxu0 0.0
    %3335 = vmatprep.subr.mxu0 0.0
    %3336 = vmatpush1.msra.mxu0 0.0
    %3337 = vmatprep.subr.mxu0 0.0
    %3338 = vmatpush1.msra.mxu0 0.0
    %3339 = vmatprep.subr.mxu0 0.0
    %3340 = vmatpush1.msra.mxu0 0.0
    %3341 = vmatprep.subr.mxu0 0.0
    %3342 = vmatpush1.msra.mxu0 0.0
    %3343 = vmatprep.subr.mxu0 0.0
    %3344 = vmatpush1.msra.mxu0 0.0
    %3345 = vmatprep.subr.mxu0 0.0
    %3346 = vmatpush1.msra.mxu0 0.0
    %3347 = vmatprep.subr.mxu0 0.0
    %3348 = vmatpush1.msra.mxu0 0.0
    %3349 = vmatprep.subr.mxu0 0.0
    %3350 = vmatpush1.msra.mxu0 0.0
    %3351 = vmatprep.subr.mxu0 0.0
    %3352 = vmatpush1.msra.mxu0 0.0
    %3353 = vmatprep.subr.mxu0 0.0
    %3354 = vmatpush1.msra.mxu0 0.0
    %3355 = vmatprep.subr.mxu0 0.0
    %3356 = vmatpush1.msra.mxu0 0.0
    %3357 = vmatprep.subr.mxu0 0.0
    %3358 = vmatpush1.msra.mxu0 0.0
    %3359 = vmatprep.subr.mxu0 0.0
    %3360 = vmatpush1.msra.mxu0 0.0
    %3361 = vmatprep.subr.mxu0 0.0
    %3362 = vmatpush1.msra.mxu0 0.0
    %3363 = vmatprep.subr.mxu0 0.0
    %3364 = vmatpush1.msra.mxu0 0.0
    %3365 = vmatprep.subr.mxu0 0.0
    %3366 = vmatpush1.msra.mxu0 0.0
    %3367 = vmatprep.subr.mxu0 0.0
    %3368 = vmatpush1.msra.mxu0 0.0
    %3369 = vmatprep.subr.mxu0 0.0
    %3370 = vmatpush1.msra.mxu0 0.0
    %3371 = vmatprep.subr.mxu0 0.0
    %3372 = vmatpush1.msra.mxu0 0.0
    %3373 = vmatprep.subr.mxu0 0.0
    %3374 = vmatpush1.msra.mxu0 0.0
    %3375 = vmatprep.subr.mxu0 0.0
    %3376 = vmatpush1.msra.mxu0 0.0
    %3377 = vmatprep.subr.mxu0 0.0
    %3378 = vmatpush1.msra.mxu0 0.0
    %3379 = vmatprep.subr.mxu0 0.0
    %3380 = vmatpush1.msra.mxu0 0.0
    %3381 = vmatprep.subr.mxu0 0.0
    %3382 = vmatpush1.msra.mxu0 0.0
    %3383 = vmatprep.subr.mxu0 0.0
    %3384 = vmatpush1.msra.mxu0 0.0
    %3385 = vmatprep.subr.mxu0 0.0
    %3386 = vmatpush1.msra.mxu0 0.0
    %3387 = vmatprep.subr.mxu0 0.0
    %3388 = vmatpush1.msra.mxu0 0.0
    %3389 = vmatprep.subr.mxu0 0.0
    %3390 = vmatpush1.msra.mxu0 0.0
    %3391 = vmatprep.mubr.f32.mxu0 0.0
    %3392 = vmatmul.mubr.f32.gmra.mrb[0].mxu0 %v3325
    %v3393 = vpop.f32.mrb[0].mxu0
    %v3394 = vadd.f32 0.0, %v3393
    %v3395 = vpop.f32.mrb[0].mxu0
    %3396 = vdwg.mxu0
    %v3398 = vsel %vm337, %v3394, 0
    %3400 = vmatprep.subr.mxu0 0.0
    %3401 = vmatpush1.msra.mxu0 %v145
    %3402 = vmatprep.subr.mxu0 0.0
    %3403 = vmatpush1.msra.mxu0 0.0
    %3404 = vmatprep.subr.mxu0 0.0
    %3405 = vmatpush1.msra.mxu0 0.0
    %3406 = vmatprep.subr.mxu0 0.0
    %3407 = vmatpush1.msra.mxu0 0.0
    %3408 = vmatprep.subr.mxu0 0.0
    %3409 = vmatpush1.msra.mxu0 0.0
    %3410 = vmatprep.subr.mxu0 0.0
    %3411 = vmatpush1.msra.mxu0 0.0
    %3412 = vmatprep.subr.mxu0 0.0
    %3413 = vmatpush1.msra.mxu0 0.0
    %3414 = vmatprep.subr.mxu0 0.0
    %3415 = vmatpush1.msra.mxu0 0.0
    %3416 = vmatprep.subr.mxu0 0.0
    %3417 = vmatpush1.msra.mxu0 0.0
    %3418 = vmatprep.subr.mxu0 0.0
    %3419 = vmatpush1.msra.mxu0 0.0
    %3420 = vmatprep.subr.mxu0 0.0
    %3421 = vmatpush1.msra.mxu0 0.0
    %3422 = vmatprep.subr.mxu0 0.0
    %3423 = vmatpush1.msra.mxu0 0.0
    %3424 = vmatprep.subr.mxu0 0.0
    %3425 = vmatpush1.msra.mxu0 0.0
    %3426 = vmatprep.subr.mxu0 0.0
    %3427 = vmatpush1.msra.mxu0 0.0
    %3428 = vmatprep.subr.mxu0 0.0
    %3429 = vmatpush1.msra.mxu0 0.0
    %3430 = vmatprep.subr.mxu0 0.0
    %3431 = vmatpush1.msra.mxu0 0.0
    %3432 = vmatprep.subr.mxu0 0.0
    %3433 = vmatpush1.msra.mxu0 0.0
    %3434 = vmatprep.subr.mxu0 0.0
    %3435 = vmatpush1.msra.mxu0 0.0
    %3436 = vmatprep.subr.mxu0 0.0
    %3437 = vmatpush1.msra.mxu0 0.0
    %3438 = vmatprep.subr.mxu0 0.0
    %3439 = vmatpush1.msra.mxu0 0.0
    %3440 = vmatprep.subr.mxu0 0.0
    %3441 = vmatpush1.msra.mxu0 0.0
    %3442 = vmatprep.subr.mxu0 0.0
    %3443 = vmatpush1.msra.mxu0 0.0
    %3444 = vmatprep.subr.mxu0 0.0
    %3445 = vmatpush1.msra.mxu0 0.0
    %3446 = vmatprep.subr.mxu0 0.0
    %3447 = vmatpush1.msra.mxu0 0.0
    %3448 = vmatprep.subr.mxu0 0.0
    %3449 = vmatpush1.msra.mxu0 0.0
    %3450 = vmatprep.subr.mxu0 0.0
    %3451 = vmatpush1.msra.mxu0 0.0
    %3452 = vmatprep.subr.mxu0 0.0
    %3453 = vmatpush1.msra.mxu0 0.0
    %3454 = vmatprep.subr.mxu0 0.0
    %3455 = vmatpush1.msra.mxu0 0.0
    %3456 = vmatprep.subr.mxu0 0.0
    %3457 = vmatpush1.msra.mxu0 0.0
    %3458 = vmatprep.subr.mxu0 0.0
    %3459 = vmatpush1.msra.mxu0 0.0
    %3460 = vmatprep.subr.mxu0 0.0
    %3461 = vmatpush1.msra.mxu0 0.0
    %3462 = vmatprep.subr.mxu0 0.0
    %3463 = vmatpush1.msra.mxu0 0.0
    %3464 = vmatprep.mubr.f32.mxu0 0.0
    %3465 = vmatmul.mubr.f32.gmra.mrb[0].mxu0 %v3398
    %v3466 = vpop.f32.mrb[0].mxu0
    %v3467 = vadd.f32 0.0, %v3466
    %v3468 = vpop.f32.mrb[0].mxu0
    %3469 = vdwg.mxu0
    %v3470 = vadd.f32 %v3223, %v3467
    %v3471 = vlaneseq
    %v3472 = vshrl.u32 %v3471, 7
    %v3473 = vsub.s32 3, %v3472
    %v3474 = vrot.slane %v115, %v3473
    %v3475 = vadd.f32 %v3470, %v3474
    %v3477 = vlaneseq
    %v3478 = vshrl.u32 %v3477, 7
    %v3479 = vsub.s32 0, %v3478
    %v3480 = vrot.slane %v179, %v3479
    %v3483 = vsel %vm337, %v2290, 0
    %v3486 = vsel %vm337, %v2477, 0
    %v3489 = vsel %vm337, %v2482, 0
    %3491 = vmatprep.subr.mxu0 0.0
    %3492 = vmatpush1.xpose.msra.mxu0 %v3486
    %3493 = vmatprep.subr.mxu0 0.0
    %3494 = vmatpush1.xpose.msra.mxu0 %v3489
    %3495 = vmatprep.subr.mxu0 0.0
    %3496 = vmatpush1.xpose.msra.mxu0 0.0
    %3497 = vmatprep.subr.mxu0 0.0
    %3498 = vmatpush1.xpose.msra.mxu0 0.0
    %3499 = vmatprep.subr.mxu0 0.0
    %3500 = vmatpush1.xpose.msra.mxu0 0.0
    %3501 = vmatprep.subr.mxu0 0.0
    %3502 = vmatpush1.xpose.msra.mxu0 0.0
    %3503 = vmatprep.subr.mxu0 0.0
    %3504 = vmatpush1.xpose.msra.mxu0 0.0
    %3505 = vmatprep.subr.mxu0 0.0
    %3506 = vmatpush1.xpose.msra.mxu0 0.0
    %3507 = vmatprep.subr.mxu0 0.0
    %3508 = vmatpush1.xpose.msra.mxu0 0.0
    %3509 = vmatprep.subr.mxu0 0.0
    %3510 = vmatpush1.xpose.msra.mxu0 0.0
    %3511 = vmatprep.subr.mxu0 0.0
    %3512 = vmatpush1.xpose.msra.mxu0 0.0
    %3513 = vmatprep.subr.mxu0 0.0
    %3514 = vmatpush1.xpose.msra.mxu0 0.0
    %3515 = vmatprep.subr.mxu0 0.0
    %3516 = vmatpush1.xpose.msra.mxu0 0.0
    %3517 = vmatprep.subr.mxu0 0.0
    %3518 = vmatpush1.xpose.msra.mxu0 0.0
    %3519 = vmatprep.subr.mxu0 0.0
    %3520 = vmatpush1.xpose.msra.mxu0 0.0
    %3521 = vmatprep.subr.mxu0 0.0
    %3522 = vmatpush1.xpose.msra.mxu0 0.0
    %3523 = vmatprep.subr.mxu0 0.0
    %3524 = vmatpush1.xpose.msra.mxu0 0.0
    %3525 = vmatprep.subr.mxu0 0.0
    %3526 = vmatpush1.xpose.msra.mxu0 0.0
    %3527 = vmatprep.subr.mxu0 0.0
    %3528 = vmatpush1.xpose.msra.mxu0 0.0
    %3529 = vmatprep.subr.mxu0 0.0
    %3530 = vmatpush1.xpose.msra.mxu0 0.0
    %3531 = vmatprep.subr.mxu0 0.0
    %3532 = vmatpush1.xpose.msra.mxu0 0.0
    %3533 = vmatprep.subr.mxu0 0.0
    %3534 = vmatpush1.xpose.msra.mxu0 0.0
    %3535 = vmatprep.subr.mxu0 0.0
    %3536 = vmatpush1.xpose.msra.mxu0 0.0
    %3537 = vmatprep.subr.mxu0 0.0
    %3538 = vmatpush1.xpose.msra.mxu0 0.0
    %3539 = vmatprep.subr.mxu0 0.0
    %3540 = vmatpush1.xpose.msra.mxu0 0.0
    %3541 = vmatprep.subr.mxu0 0.0
    %3542 = vmatpush1.xpose.msra.mxu0 0.0
    %3543 = vmatprep.subr.mxu0 0.0
    %3544 = vmatpush1.xpose.msra.mxu0 0.0
    %3545 = vmatprep.subr.mxu0 0.0
    %3546 = vmatpush1.xpose.msra.mxu0 0.0
    %3547 = vmatprep.subr.mxu0 0.0
    %3548 = vmatpush1.xpose.msra.mxu0 0.0
    %3549 = vmatprep.subr.mxu0 0.0
    %3550 = vmatpush1.xpose.msra.mxu0 0.0
    %3551 = vmatprep.subr.mxu0 0.0
    %3552 = vmatpush1.xpose.msra.mxu0 0.0
    %3553 = vmatprep.subr.mxu0 0.0
    %3554 = vmatpush1.xpose.msra.mxu0 0.0
    %3555 = vmatprep.mubr.f32.mxu0 0.0
    %3556 = vmatmul.mubr.f32.gmra.mrb[0].mxu0 %v3483
    %v3557 = vpop.f32.mrb[0].mxu0
    %v3558 = vadd.f32 %v3480, %v3557
    %v3559 = vpop.f32.mrb[0].mxu0
    %3560 = vdwg.mxu0
    %v3561 = vmul.f32 %v3558, 0.17677669
    %v3562 = vsel %vm2571, %v3561, -inf
    %3563 = vmax.xlane.f32.xlu0 %v3562
    %v3564 = vpop.xlane.xlu0 %3563
    %v3565 = vsub.f32 %v3561, %v3564
    %v3566 = vmul.f32 %v3565, 1.442695
    %v3567 = vpow.pop %v3566
    %v3568 = vsel %vm2571, %v3567, 0.0
    %3569 = vadd.xlane.f32.xlu0 %v3568
    %v3570 = vpop.xlane.xlu0 %3569
    %v3571 = vrcp.pop %v3570
    %v3572 = vmul.f32 %v3567, %v3571
    %v3574 = vsel %vm2571, %v3572, 0
    %3576 = vmatprep.subr.mxu0 0.0
    %3577 = vmatpush1.msra.mxu0 %v2380
    %3578 = vmatprep.subr.mxu0 0.0
    %3579 = vmatpush1.msra.mxu0 %v2385
    %3580 = vmatprep.subr.mxu0 0.0
    %3581 = vmatpush1.msra.mxu0 0.0
    %3582 = vmatprep.subr.mxu0 0.0
    %3583 = vmatpush1.msra.mxu0 0.0
    %3584 = vmatprep.subr.mxu0 0.0
    %3585 = vmatpush1.msra.mxu0 0.0
    %3586 = vmatprep.subr.mxu0 0.0
    %3587 = vmatpush1.msra.mxu0 0.0
    %3588 = vmatprep.subr.mxu0 0.0
    %3589 = vmatpush1.msra.mxu0 0.0
    %3590 = vmatprep.subr.mxu0 0.0
    %3591 = vmatpush1.msra.mxu0 0.0
    %3592 = vmatprep.subr.mxu0 0.0
    %3593 = vmatpush1.msra.mxu0 0.0
    %3594 = vmatprep.subr.mxu0 0.0
    %3595 = vmatpush1.msra.mxu0 0.0
    %3596 = vmatprep.subr.mxu0 0.0
    %3597 = vmatpush1.msra.mxu0 0.0
    %3598 = vmatprep.subr.mxu0 0.0
    %3599 = vmatpush1.msra.mxu0 0.0
    %3600 = vmatprep.subr.mxu0 0.0
    %3601 = vmatpush1.msra.mxu0 0.0
    %3602 = vmatprep.subr.mxu0 0.0
    %3603 = vmatpush1.msra.mxu0 0.0
    %3604 = vmatprep.subr.mxu0 0.0
    %3605 = vmatpush1.msra.mxu0 0.0
    %3606 = vmatprep.subr.mxu0 0.0
    %3607 = vmatpush1.msra.mxu0 0.0
    %3608 = vmatprep.subr.mxu0 0.0
    %3609 = vmatpush1.msra.mxu0 0.0
    %3610 = vmatprep.subr.mxu0 0.0
    %3611 = vmatpush1.msra.mxu0 0.0
    %3612 = vmatprep.subr.mxu0 0.0
    %3613 = vmatpush1.msra.mxu0 0.0
    %3614 = vmatprep.subr.mxu0 0.0
    %3615 = vmatpush1.msra.mxu0 0.0
    %3616 = vmatprep.subr.mxu0 0.0
    %3617 = vmatpush1.msra.mxu0 0.0
    %3618 = vmatprep.subr.mxu0 0.0
    %3619 = vmatpush1.msra.mxu0 0.0
    %3620 = vmatprep.subr.mxu0 0.0
    %3621 = vmatpush1.msra.mxu0 0.0
    %3622 = vmatprep.subr.mxu0 0.0
    %3623 = vmatpush1.msra.mxu0 0.0
    %3624 = vmatprep.subr.mxu0 0.0
    %3625 = vmatpush1.msra.mxu0 0.0
    %3626 = vmatprep.subr.mxu0 0.0
    %3627 = vmatpush1.msra.mxu0 0.0
    %3628 = vmatprep.subr.mxu0 0.0
    %3629 = vmatpush1.msra.mxu0 0.0
    %3630 = vmatprep.subr.mxu0 0.0
    %3631 = vmatpush1.msra.mxu0 0.0
    %3632 = vmatprep.subr.mxu0 0.0
    %3633 = vmatpush1.msra.mxu0 0.0
    %3634 = vmatprep.subr.mxu0 0.0
    %3635 = vmatpush1.msra.mxu0 0.0
    %3636 = vmatprep.subr.mxu0 0.0
    %3637 = vmatpush1.msra.mxu0 0.0
    %3638 = vmatprep.subr.mxu0 0.0
    %3639 = vmatpush1.msra.mxu0 0.0
    %3640 = vmatprep.mubr.f32.mxu0 0.0
    %3641 = vmatmul.mubr.f32.gmra.mrb[0].mxu0 %v3574
    %v3642 = vpop.f32.mrb[0].mxu0
    %v3643 = vadd.f32 0.0, %v3642
    %v3644 = vpop.f32.mrb[0].mxu0
    %3645 = vdwg.mxu0
    %3646 = vrot.lane.b32.xlu0 %v2290, 120
    %v3647 = vpop.permute.xlu0 %3646
    %3648 = vrot.lane.b32.xlu0 %v2477, 120
    %v3649 = vpop.permute.xlu0 %3648
    %3650 = vrot.lane.b32.xlu0 %v2482, 120
    %v3651 = vpop.permute.xlu0 %3650
    %v3652 = vsel %vm337, %v3647, 0
    %v3654 = vsel %vm337, %v3649, 0
    %v3656 = vsel %vm337, %v3651, 0
    %3658 = vmatprep.subr.mxu0 0.0
    %3659 = vmatpush1.xpose.msra.mxu0 %v3654
    %3660 = vmatprep.subr.mxu0 0.0
    %3661 = vmatpush1.xpose.msra.mxu0 %v3656
    %3662 = vmatprep.subr.mxu0 0.0
    %3663 = vmatpush1.xpose.msra.mxu0 0.0
    %3664 = vmatprep.subr.mxu0 0.0
    %3665 = vmatpush1.xpose.msra.mxu0 0.0
    %3666 = vmatprep.subr.mxu0 0.0
    %3667 = vmatpush1.xpose.msra.mxu0 0.0
    %3668 = vmatprep.subr.mxu0 0.0
    %3669 = vmatpush1.xpose.msra.mxu0 0.0
    %3670 = vmatprep.subr.mxu0 0.0
    %3671 = vmatpush1.xpose.msra.mxu0 0.0
    %3672 = vmatprep.subr.mxu0 0.0
    %3673 = vmatpush1.xpose.msra.mxu0 0.0
    %3674 = vmatprep.subr.mxu0 0.0
    %3675 = vmatpush1.xpose.msra.mxu0 0.0
    %3676 = vmatprep.subr.mxu0 0.0
    %3677 = vmatpush1.xpose.msra.mxu0 0.0
    %3678 = vmatprep.subr.mxu0 0.0
    %3679 = vmatpush1.xpose.msra.mxu0 0.0
    %3680 = vmatprep.subr.mxu0 0.0
    %3681 = vmatpush1.xpose.msra.mxu0 0.0
    %3682 = vmatprep.subr.mxu0 0.0
    %3683 = vmatpush1.xpose.msra.mxu0 0.0
    %3684 = vmatprep.subr.mxu0 0.0
    %3685 = vmatpush1.xpose.msra.mxu0 0.0
    %3686 = vmatprep.subr.mxu0 0.0
    %3687 = vmatpush1.xpose.msra.mxu0 0.0
    %3688 = vmatprep.subr.mxu0 0.0
    %3689 = vmatpush1.xpose.msra.mxu0 0.0
    %3690 = vmatprep.subr.mxu0 0.0
    %3691 = vmatpush1.xpose.msra.mxu0 0.0
    %3692 = vmatprep.subr.mxu0 0.0
    %3693 = vmatpush1.xpose.msra.mxu0 0.0
    %3694 = vmatprep.subr.mxu0 0.0
    %3695 = vmatpush1.xpose.msra.mxu0 0.0
    %3696 = vmatprep.subr.mxu0 0.0
    %3697 = vmatpush1.xpose.msra.mxu0 0.0
    %3698 = vmatprep.subr.mxu0 0.0
    %3699 = vmatpush1.xpose.msra.mxu0 0.0
    %3700 = vmatprep.subr.mxu0 0.0
    %3701 = vmatpush1.xpose.msra.mxu0 0.0
    %3702 = vmatprep.subr.mxu0 0.0
    %3703 = vmatpush1.xpose.msra.mxu0 0.0
    %3704 = vmatprep.subr.mxu0 0.0
    %3705 = vmatpush1.xpose.msra.mxu0 0.0
    %3706 = vmatprep.subr.mxu0 0.0
    %3707 = vmatpush1.xpose.msra.mxu0 0.0
    %3708 = vmatprep.subr.mxu0 0.0
    %3709 = vmatpush1.xpose.msra.mxu0 0.0
    %3710 = vmatprep.subr.mxu0 0.0
    %3711 = vmatpush1.xpose.msra.mxu0 0.0
    %3712 = vmatprep.subr.mxu0 0.0
    %3713 = vmatpush1.xpose.msra.mxu0 0.0
    %3714 = vmatprep.subr.mxu0 0.0
    %3715 = vmatpush1.xpose.msra.mxu0 0.0
    %3716 = vmatprep.subr.mxu0 0.0
    %3717 = vmatpush1.xpose.msra.mxu0 0.0
    %3718 = vmatprep.subr.mxu0 0.0
    %3719 = vmatpush1.xpose.msra.mxu0 0.0
    %3720 = vmatprep.subr.mxu0 0.0
    %3721 = vmatpush1.xpose.msra.mxu0 0.0
    %3722 = vmatprep.mubr.f32.mxu0 0.0
    %3723 = vmatmul.mubr.f32.gmra.mrb[0].mxu0 %v3652
    %v3724 = vpop.f32.mrb[0].mxu0
    %v3725 = vadd.f32 %v3480, %v3724
    %v3726 = vpop.f32.mrb[0].mxu0
    %3727 = vdwg.mxu0
    %v3728 = vmul.f32 %v3725, 0.17677669
    %v3729 = vsel %vm2571, %v3728, -inf
    %3730 = vmax.xlane.f32.xlu0 %v3729
    %v3731 = vpop.xlane.xlu0 %3730
    %v3732 = vsub.f32 %v3728, %v3731
    %v3733 = vmul.f32 %v3732, 1.442695
    %v3734 = vpow.pop %v3733
    %v3735 = vsel %vm2571, %v3734, 0.0
    %3736 = vadd.xlane.f32.xlu0 %v3735
    %v3737 = vpop.xlane.xlu0 %3736
    %v3738 = vrcp.pop %v3737
    %v3739 = vmul.f32 %v3734, %v3738
    %3742 = vrot.lane.b32.xlu0 %v2380, 120
    %v3743 = vpop.permute.xlu0 %3742
    %3744 = vrot.lane.b32.xlu0 %v2385, 120
    %v3745 = vpop.permute.xlu0 %3744
    %v3749 = vsel %vm2571, %v3739, 0
    %3751 = vmatprep.subr.mxu0 0.0
    %3752 = vmatpush1.msra.mxu0 %v3743
    %3753 = vmatprep.subr.mxu0 0.0
    %3754 = vmatpush1.msra.mxu0 %v3745
    %3755 = vmatprep.subr.mxu0 0.0
    %3756 = vmatpush1.msra.mxu0 0.0
    %3757 = vmatprep.subr.mxu0 0.0
    %3758 = vmatpush1.msra.mxu0 0.0
    %3759 = vmatprep.subr.mxu0 0.0
    %3760 = vmatpush1.msra.mxu0 0.0
    %3761 = vmatprep.subr.mxu0 0.0
    %3762 = vmatpush1.msra.mxu0 0.0
    %3763 = vmatprep.subr.mxu0 0.0
    %3764 = vmatpush1.msra.mxu0 0.0
    %3765 = vmatprep.subr.mxu0 0.0
    %3766 = vmatpush1.msra.mxu0 0.0
    %3767 = vmatprep.subr.mxu0 0.0
    %3768 = vmatpush1.msra.mxu0 0.0
    %3769 = vmatprep.subr.mxu0 0.0
    %3770 = vmatpush1.msra.mxu0 0.0
    %3771 = vmatprep.subr.mxu0 0.0
    %3772 = vmatpush1.msra.mxu0 0.0
    %3773 = vmatprep.subr.mxu0 0.0
    %3774 = vmatpush1.msra.mxu0 0.0
    %3775 = vmatprep.subr.mxu0 0.0
    %3776 = vmatpush1.msra.mxu0 0.0
    %3777 = vmatprep.subr.mxu0 0.0
    %3778 = vmatpush1.msra.mxu0 0.0
    %3779 = vmatprep.subr.mxu0 0.0
    %3780 = vmatpush1.msra.mxu0 0.0
    %3781 = vmatprep.subr.mxu0 0.0
    %3782 = vmatpush1.msra.mxu0 0.0
    %3783 = vmatprep.subr.mxu0 0.0
    %3784 = vmatpush1.msra.mxu0 0.0
    %3785 = vmatprep.subr.mxu0 0.0
    %3786 = vmatpush1.msra.mxu0 0.0
    %3787 = vmatprep.subr.mxu0 0.0
    %3788 = vmatpush1.msra.mxu0 0.0
    %3789 = vmatprep.subr.mxu0 0.0
    %3790 = vmatpush1.msra.mxu0 0.0
    %3791 = vmatprep.subr.mxu0 0.0
    %3792 = vmatpush1.msra.mxu0 0.0
    %3793 = vmatprep.subr.mxu0 0.0
    %3794 = vmatpush1.msra.mxu0 0.0
    %3795 = vmatprep.subr.mxu0 0.0
    %3796 = vmatpush1.msra.mxu0 0.0
    %3797 = vmatprep.subr.mxu0 0.0
    %3798 = vmatpush1.msra.mxu0 0.0
    %3799 = vmatprep.subr.mxu0 0.0
    %3800 = vmatpush1.msra.mxu0 0.0
    %3801 = vmatprep.subr.mxu0 0.0
    %3802 = vmatpush1.msra.mxu0 0.0
    %3803 = vmatprep.subr.mxu0 0.0
    %3804 = vmatpush1.msra.mxu0 0.0
    %3805 = vmatprep.subr.mxu0 0.0
    %3806 = vmatpush1.msra.mxu0 0.0
    %3807 = vmatprep.subr.mxu0 0.0
    %3808 = vmatpush1.msra.mxu0 0.0
    %3809 = vmatprep.subr.mxu0 0.0
    %3810 = vmatpush1.msra.mxu0 0.0
    %3811 = vmatprep.subr.mxu0 0.0
    %3812 = vmatpush1.msra.mxu0 0.0
    %3813 = vmatprep.subr.mxu0 0.0
    %3814 = vmatpush1.msra.mxu0 0.0
    %3815 = vmatprep.mubr.f32.mxu0 0.0
    %3816 = vmatmul.mubr.f32.gmra.mrb[0].mxu0 %v3749
    %v3817 = vpop.f32.mrb[0].mxu0
    %v3818 = vadd.f32 0.0, %v3817
    %v3819 = vpop.f32.mrb[0].mxu0
    %3820 = vdwg.mxu0
    %v3822 = vsel %vm337, %v3818, 0
    %3824 = vmatprep.subr.mxu0 0.0
    %3825 = vmatpush1.msra.mxu0 %v143
    %3826 = vmatprep.subr.mxu0 0.0
    %3827 = vmatpush1.msra.mxu0 0.0
    %3828 = vmatprep.subr.mxu0 0.0
    %3829 = vmatpush1.msra.mxu0 0.0
    %3830 = vmatprep.subr.mxu0 0.0
    %3831 = vmatpush1.msra.mxu0 0.0
    %3832 = vmatprep.subr.mxu0 0.0
    %3833 = vmatpush1.msra.mxu0 0.0
    %3834 = vmatprep.subr.mxu0 0.0
    %3835 = vmatpush1.msra.mxu0 0.0
    %3836 = vmatprep.subr.mxu0 0.0
    %3837 = vmatpush1.msra.mxu0 0.0
    %3838 = vmatprep.subr.mxu0 0.0
    %3839 = vmatpush1.msra.mxu0 0.0
    %3840 = vmatprep.subr.mxu0 0.0
    %3841 = vmatpush1.msra.mxu0 0.0
    %3842 = vmatprep.subr.mxu0 0.0
    %3843 = vmatpush1.msra.mxu0 0.0
    %3844 = vmatprep.subr.mxu0 0.0
    %3845 = vmatpush1.msra.mxu0 0.0
    %3846 = vmatprep.subr.mxu0 0.0
    %3847 = vmatpush1.msra.mxu0 0.0
    %3848 = vmatprep.subr.mxu0 0.0
    %3849 = vmatpush1.msra.mxu0 0.0
    %3850 = vmatprep.subr.mxu0 0.0
    %3851 = vmatpush1.msra.mxu0 0.0
    %3852 = vmatprep.subr.mxu0 0.0
    %3853 = vmatpush1.msra.mxu0 0.0
    %3854 = vmatprep.subr.mxu0 0.0
    %3855 = vmatpush1.msra.mxu0 0.0
    %3856 = vmatprep.subr.mxu0 0.0
    %3857 = vmatpush1.msra.mxu0 0.0
    %3858 = vmatprep.subr.mxu0 0.0
    %3859 = vmatpush1.msra.mxu0 0.0
    %3860 = vmatprep.subr.mxu0 0.0
    %3861 = vmatpush1.msra.mxu0 0.0
    %3862 = vmatprep.subr.mxu0 0.0
    %3863 = vmatpush1.msra.mxu0 0.0
    %3864 = vmatprep.subr.mxu0 0.0
    %3865 = vmatpush1.msra.mxu0 0.0
    %3866 = vmatprep.subr.mxu0 0.0
    %3867 = vmatpush1.msra.mxu0 0.0
    %3868 = vmatprep.subr.mxu0 0.0
    %3869 = vmatpush1.msra.mxu0 0.0
    %3870 = vmatprep.subr.mxu0 0.0
    %3871 = vmatpush1.msra.mxu0 0.0
    %3872 = vmatprep.subr.mxu0 0.0
    %3873 = vmatpush1.msra.mxu0 0.0
    %3874 = vmatprep.subr.mxu0 0.0
    %3875 = vmatpush1.msra.mxu0 0.0
    %3876 = vmatprep.subr.mxu0 0.0
    %3877 = vmatpush1.msra.mxu0 0.0
    %3878 = vmatprep.subr.mxu0 0.0
    %3879 = vmatpush1.msra.mxu0 0.0
    %3880 = vmatprep.subr.mxu0 0.0
    %3881 = vmatpush1.msra.mxu0 0.0
    %3882 = vmatprep.subr.mxu0 0.0
    %3883 = vmatpush1.msra.mxu0 0.0
    %3884 = vmatprep.subr.mxu0 0.0
    %3885 = vmatpush1.msra.mxu0 0.0
    %3886 = vmatprep.subr.mxu0 0.0
    %3887 = vmatpush1.msra.mxu0 0.0
    %3888 = vmatprep.mubr.f32.mxu0 0.0
    %3889 = vmatmul.mubr.f32.gmra.mrb[0].mxu0 %v3822
    %v3890 = vpop.f32.mrb[0].mxu0
    %v3891 = vadd.f32 0.0, %v3890
    %v3892 = vpop.f32.mrb[0].mxu0
    %3893 = vdwg.mxu0
    %v3895 = vsel %vm337, %v3643, 0
    %3897 = vmatprep.subr.mxu0 0.0
    %3898 = vmatpush1.msra.mxu0 %v142
    %3899 = vmatprep.subr.mxu0 0.0
    %3900 = vmatpush1.msra.mxu0 0.0
    %3901 = vmatprep.subr.mxu0 0.0
    %3902 = vmatpush1.msra.mxu0 0.0
    %3903 = vmatprep.subr.mxu0 0.0
    %3904 = vmatpush1.msra.mxu0 0.0
    %3905 = vmatprep.subr.mxu0 0.0
    %3906 = vmatpush1.msra.mxu0 0.0
    %3907 = vmatprep.subr.mxu0 0.0
    %3908 = vmatpush1.msra.mxu0 0.0
    %3909 = vmatprep.subr.mxu0 0.0
    %3910 = vmatpush1.msra.mxu0 0.0
    %3911 = vmatprep.subr.mxu0 0.0
    %3912 = vmatpush1.msra.mxu0 0.0
    %3913 = vmatprep.subr.mxu0 0.0
    %3914 = vmatpush1.msra.mxu0 0.0
    %3915 = vmatprep.subr.mxu0 0.0
    %3916 = vmatpush1.msra.mxu0 0.0
    %3917 = vmatprep.subr.mxu0 0.0
    %3918 = vmatpush1.msra.mxu0 0.0
    %3919 = vmatprep.subr.mxu0 0.0
    %3920 = vmatpush1.msra.mxu0 0.0
    %3921 = vmatprep.subr.mxu0 0.0
    %3922 = vmatpush1.msra.mxu0 0.0
    %3923 = vmatprep.subr.mxu0 0.0
    %3924 = vmatpush1.msra.mxu0 0.0
    %3925 = vmatprep.subr.mxu0 0.0
    %3926 = vmatpush1.msra.mxu0 0.0
    %3927 = vmatprep.subr.mxu0 0.0
    %3928 = vmatpush1.msra.mxu0 0.0
    %3929 = vmatprep.subr.mxu0 0.0
    %3930 = vmatpush1.msra.mxu0 0.0
    %3931 = vmatprep.subr.mxu0 0.0
    %3932 = vmatpush1.msra.mxu0 0.0
    %3933 = vmatprep.subr.mxu0 0.0
    %3934 = vmatpush1.msra.mxu0 0.0
    %3935 = vmatprep.subr.mxu0 0.0
    %3936 = vmatpush1.msra.mxu0 0.0
    %3937 = vmatprep.subr.mxu0 0.0
    %3938 = vmatpush1.msra.mxu0 0.0
    %3939 = vmatprep.subr.mxu0 0.0
    %3940 = vmatpush1.msra.mxu0 0.0
    %3941 = vmatprep.subr.mxu0 0.0
    %3942 = vmatpush1.msra.mxu0 0.0
    %3943 = vmatprep.subr.mxu0 0.0
    %3944 = vmatpush1.msra.mxu0 0.0
    %3945 = vmatprep.subr.mxu0 0.0
    %3946 = vmatpush1.msra.mxu0 0.0
    %3947 = vmatprep.subr.mxu0 0.0
    %3948 = vmatpush1.msra.mxu0 0.0
    %3949 = vmatprep.subr.mxu0 0.0
    %3950 = vmatpush1.msra.mxu0 0.0
    %3951 = vmatprep.subr.mxu0 0.0
    %3952 = vmatpush1.msra.mxu0 0.0
    %3953 = vmatprep.subr.mxu0 0.0
    %3954 = vmatpush1.msra.mxu0 0.0
    %3955 = vmatprep.subr.mxu0 0.0
    %3956 = vmatpush1.msra.mxu0 0.0
    %3957 = vmatprep.subr.mxu0 0.0
    %3958 = vmatpush1.msra.mxu0 0.0
    %3959 = vmatprep.subr.mxu0 0.0
    %3960 = vmatpush1.msra.mxu0 0.0
    %3961 = vmatprep.mubr.f32.mxu0 0.0
    %3962 = vmatmul.mubr.f32.gmra.mrb[0].mxu0 %v3895
    %v3963 = vpop.f32.mrb[0].mxu0
    %v3964 = vadd.f32 %v3891, %v3963
    %v3965 = vpop.f32.mrb[0].mxu0
    %3966 = vdwg.mxu0
    %3967 = vrot.lane.b32.xlu0 %v2290, 112
    %v3968 = vpop.permute.xlu0 %3967
    %3969 = vrot.lane.b32.xlu0 %v2477, 112
    %v3970 = vpop.permute.xlu0 %3969
    %3971 = vrot.lane.b32.xlu0 %v2482, 112
    %v3972 = vpop.permute.xlu0 %3971
    %v3973 = vsel %vm337, %v3968, 0
    %v3975 = vsel %vm337, %v3970, 0
    %v3977 = vsel %vm337, %v3972, 0
    %3979 = vmatprep.subr.mxu0 0.0
    %3980 = vmatpush1.xpose.msra.mxu0 %v3975
    %3981 = vmatprep.subr.mxu0 0.0
    %3982 = vmatpush1.xpose.msra.mxu0 %v3977
    %3983 = vmatprep.subr.mxu0 0.0
    %3984 = vmatpush1.xpose.msra.mxu0 0.0
    %3985 = vmatprep.subr.mxu0 0.0
    %3986 = vmatpush1.xpose.msra.mxu0 0.0
    %3987 = vmatprep.subr.mxu0 0.0
    %3988 = vmatpush1.xpose.msra.mxu0 0.0
    %3989 = vmatprep.subr.mxu0 0.0
    %3990 = vmatpush1.xpose.msra.mxu0 0.0
    %3991 = vmatprep.subr.mxu0 0.0
    %3992 = vmatpush1.xpose.msra.mxu0 0.0
    %3993 = vmatprep.subr.mxu0 0.0
    %3994 = vmatpush1.xpose.msra.mxu0 0.0
    %3995 = vmatprep.subr.mxu0 0.0
    %3996 = vmatpush1.xpose.msra.mxu0 0.0
    %3997 = vmatprep.subr.mxu0 0.0
    %3998 = vmatpush1.xpose.msra.mxu0 0.0
    %3999 = vmatprep.subr.mxu0 0.0
    %4000 = vmatpush1.xpose.msra.mxu0 0.0
    %4001 = vmatprep.subr.mxu0 0.0
    %4002 = vmatpush1.xpose.msra.mxu0 0.0
    %4003 = vmatprep.subr.mxu0 0.0
    %4004 = vmatpush1.xpose.msra.mxu0 0.0
    %4005 = vmatprep.subr.mxu0 0.0
    %4006 = vmatpush1.xpose.msra.mxu0 0.0
    %4007 = vmatprep.subr.mxu0 0.0
    %4008 = vmatpush1.xpose.msra.mxu0 0.0
    %4009 = vmatprep.subr.mxu0 0.0
    %4010 = vmatpush1.xpose.msra.mxu0 0.0
    %4011 = vmatprep.subr.mxu0 0.0
    %4012 = vmatpush1.xpose.msra.mxu0 0.0
    %4013 = vmatprep.subr.mxu0 0.0
    %4014 = vmatpush1.xpose.msra.mxu0 0.0
    %4015 = vmatprep.subr.mxu0 0.0
    %4016 = vmatpush1.xpose.msra.mxu0 0.0
    %4017 = vmatprep.subr.mxu0 0.0
    %4018 = vmatpush1.xpose.msra.mxu0 0.0
    %4019 = vmatprep.subr.mxu0 0.0
    %4020 = vmatpush1.xpose.msra.mxu0 0.0
    %4021 = vmatprep.subr.mxu0 0.0
    %4022 = vmatpush1.xpose.msra.mxu0 0.0
    %4023 = vmatprep.subr.mxu0 0.0
    %4024 = vmatpush1.xpose.msra.mxu0 0.0
    %4025 = vmatprep.subr.mxu0 0.0
    %4026 = vmatpush1.xpose.msra.mxu0 0.0
    %4027 = vmatprep.subr.mxu0 0.0
    %4028 = vmatpush1.xpose.msra.mxu0 0.0
    %4029 = vmatprep.subr.mxu0 0.0
    %4030 = vmatpush1.xpose.msra.mxu0 0.0
    %4031 = vmatprep.subr.mxu0 0.0
    %4032 = vmatpush1.xpose.msra.mxu0 0.0
    %4033 = vmatprep.subr.mxu0 0.0
    %4034 = vmatpush1.xpose.msra.mxu0 0.0
    %4035 = vmatprep.subr.mxu0 0.0
    %4036 = vmatpush1.xpose.msra.mxu0 0.0
    %4037 = vmatprep.subr.mxu0 0.0
    %4038 = vmatpush1.xpose.msra.mxu0 0.0
    %4039 = vmatprep.subr.mxu0 0.0
    %4040 = vmatpush1.xpose.msra.mxu0 0.0
    %4041 = vmatprep.subr.mxu0 0.0
    %4042 = vmatpush1.xpose.msra.mxu0 0.0
    %4043 = vmatprep.mubr.f32.mxu0 0.0
    %4044 = vmatmul.mubr.f32.gmra.mrb[0].mxu0 %v3973
    %v4045 = vpop.f32.mrb[0].mxu0
    %v4046 = vadd.f32 %v3480, %v4045
    %v4047 = vpop.f32.mrb[0].mxu0
    %4048 = vdwg.mxu0
    %v4049 = vmul.f32 %v4046, 0.17677669
    %v4050 = vsel %vm2571, %v4049, -inf
    %4051 = vmax.xlane.f32.xlu0 %v4050
    %v4052 = vpop.xlane.xlu0 %4051
    %v4053 = vsub.f32 %v4049, %v4052
    %v4054 = vmul.f32 %v4053, 1.442695
    %v4055 = vpow.pop %v4054
    %v4056 = vsel %vm2571, %v4055, 0.0
    %4057 = vadd.xlane.f32.xlu0 %v4056
    %v4058 = vpop.xlane.xlu0 %4057
    %v4059 = vrcp.pop %v4058
    %v4060 = vmul.f32 %v4055, %v4059
    %4061 = vrot.lane.b32.xlu0 %v2380, 112
    %v4062 = vpop.permute.xlu0 %4061
    %4063 = vrot.lane.b32.xlu0 %v2385, 112
    %v4064 = vpop.permute.xlu0 %4063
    %v4068 = vsel %vm2571, %v4060, 0
    %4070 = vmatprep.subr.mxu0 0.0
    %4071 = vmatpush1.msra.mxu0 %v4062
    %4072 = vmatprep.subr.mxu0 0.0
    %4073 = vmatpush1.msra.mxu0 %v4064
    %4074 = vmatprep.subr.mxu0 0.0
    %4075 = vmatpush1.msra.mxu0 0.0
    %4076 = vmatprep.subr.mxu0 0.0
    %4077 = vmatpush1.msra.mxu0 0.0
    %4078 = vmatprep.subr.mxu0 0.0
    %4079 = vmatpush1.msra.mxu0 0.0
    %4080 = vmatprep.subr.mxu0 0.0
    %4081 = vmatpush1.msra.mxu0 0.0
    %4082 = vmatprep.subr.mxu0 0.0
    %4083 = vmatpush1.msra.mxu0 0.0
    %4084 = vmatprep.subr.mxu0 0.0
    %4085 = vmatpush1.msra.mxu0 0.0
    %4086 = vmatprep.subr.mxu0 0.0
    %4087 = vmatpush1.msra.mxu0 0.0
    %4088 = vmatprep.subr.mxu0 0.0
    %4089 = vmatpush1.msra.mxu0 0.0
    %4090 = vmatprep.subr.mxu0 0.0
    %4091 = vmatpush1.msra.mxu0 0.0
    %4092 = vmatprep.subr.mxu0 0.0
    %4093 = vmatpush1.msra.mxu0 0.0
    %4094 = vmatprep.subr.mxu0 0.0
    %4095 = vmatpush1.msra.mxu0 0.0
    %4096 = vmatprep.subr.mxu0 0.0
    %4097 = vmatpush1.msra.mxu0 0.0
    %4098 = vmatprep.subr.mxu0 0.0
    %4099 = vmatpush1.msra.mxu0 0.0
    %4100 = vmatprep.subr.mxu0 0.0
    %4101 = vmatpush1.msra.mxu0 0.0
    %4102 = vmatprep.subr.mxu0 0.0
    %4103 = vmatpush1.msra.mxu0 0.0
    %4104 = vmatprep.subr.mxu0 0.0
    %4105 = vmatpush1.msra.mxu0 0.0
    %4106 = vmatprep.subr.mxu0 0.0
    %4107 = vmatpush1.msra.mxu0 0.0
    %4108 = vmatprep.subr.mxu0 0.0
    %4109 = vmatpush1.msra.mxu0 0.0
    %4110 = vmatprep.subr.mxu0 0.0
    %4111 = vmatpush1.msra.mxu0 0.0
    %4112 = vmatprep.subr.mxu0 0.0
    %4113 = vmatpush1.msra.mxu0 0.0
    %4114 = vmatprep.subr.mxu0 0.0
    %4115 = vmatpush1.msra.mxu0 0.0
    %4116 = vmatprep.subr.mxu0 0.0
    %4117 = vmatpush1.msra.mxu0 0.0
    %4118 = vmatprep.subr.mxu0 0.0
    %4119 = vmatpush1.msra.mxu0 0.0
    %4120 = vmatprep.subr.mxu0 0.0
    %4121 = vmatpush1.msra.mxu0 0.0
    %4122 = vmatprep.subr.mxu0 0.0
    %4123 = vmatpush1.msra.mxu0 0.0
    %4124 = vmatprep.subr.mxu0 0.0
    %4125 = vmatpush1.msra.mxu0 0.0
    %4126 = vmatprep.subr.mxu0 0.0
    %4127 = vmatpush1.msra.mxu0 0.0
    %4128 = vmatprep.subr.mxu0 0.0
    %4129 = vmatpush1.msra.mxu0 0.0
    %4130 = vmatprep.subr.mxu0 0.0
    %4131 = vmatpush1.msra.mxu0 0.0
    %4132 = vmatprep.subr.mxu0 0.0
    %4133 = vmatpush1.msra.mxu0 0.0
    %4134 = vmatprep.mubr.f32.mxu0 0.0
    %4135 = vmatmul.mubr.f32.gmra.mrb[0].mxu0 %v4068
    %v4136 = vpop.f32.mrb[0].mxu0
    %v4137 = vadd.f32 0.0, %v4136
    %v4138 = vpop.f32.mrb[0].mxu0
    %4139 = vdwg.mxu0
    %v4141 = vsel %vm337, %v4137, 0
    %4143 = vmatprep.subr.mxu0 0.0
    %4144 = vmatpush1.msra.mxu0 %v144
    %4145 = vmatprep.subr.mxu0 0.0
    %4146 = vmatpush1.msra.mxu0 0.0
    %4147 = vmatprep.subr.mxu0 0.0
    %4148 = vmatpush1.msra.mxu0 0.0
    %4149 = vmatprep.subr.mxu0 0.0
    %4150 = vmatpush1.msra.mxu0 0.0
    %4151 = vmatprep.subr.mxu0 0.0
    %4152 = vmatpush1.msra.mxu0 0.0
    %4153 = vmatprep.subr.mxu0 0.0
    %4154 = vmatpush1.msra.mxu0 0.0
    %4155 = vmatprep.subr.mxu0 0.0
    %4156 = vmatpush1.msra.mxu0 0.0
    %4157 = vmatprep.subr.mxu0 0.0
    %4158 = vmatpush1.msra.mxu0 0.0
    %4159 = vmatprep.subr.mxu0 0.0
    %4160 = vmatpush1.msra.mxu0 0.0
    %4161 = vmatprep.subr.mxu0 0.0
    %4162 = vmatpush1.msra.mxu0 0.0
    %4163 = vmatprep.subr.mxu0 0.0
    %4164 = vmatpush1.msra.mxu0 0.0
    %4165 = vmatprep.subr.mxu0 0.0
    %4166 = vmatpush1.msra.mxu0 0.0
    %4167 = vmatprep.subr.mxu0 0.0
    %4168 = vmatpush1.msra.mxu0 0.0
    %4169 = vmatprep.subr.mxu0 0.0
    %4170 = vmatpush1.msra.mxu0 0.0
    %4171 = vmatprep.subr.mxu0 0.0
    %4172 = vmatpush1.msra.mxu0 0.0
    %4173 = vmatprep.subr.mxu0 0.0
    %4174 = vmatpush1.msra.mxu0 0.0
    %4175 = vmatprep.subr.mxu0 0.0
    %4176 = vmatpush1.msra.mxu0 0.0
    %4177 = vmatprep.subr.mxu0 0.0
    %4178 = vmatpush1.msra.mxu0 0.0
    %4179 = vmatprep.subr.mxu0 0.0
    %4180 = vmatpush1.msra.mxu0 0.0
    %4181 = vmatprep.subr.mxu0 0.0
    %4182 = vmatpush1.msra.mxu0 0.0
    %4183 = vmatprep.subr.mxu0 0.0
    %4184 = vmatpush1.msra.mxu0 0.0
    %4185 = vmatprep.subr.mxu0 0.0
    %4186 = vmatpush1.msra.mxu0 0.0
    %4187 = vmatprep.subr.mxu0 0.0
    %4188 = vmatpush1.msra.mxu0 0.0
    %4189 = vmatprep.subr.mxu0 0.0
    %4190 = vmatpush1.msra.mxu0 0.0
    %4191 = vmatprep.subr.mxu0 0.0
    %4192 = vmatpush1.msra.mxu0 0.0
    %4193 = vmatprep.subr.mxu0 0.0
    %4194 = vmatpush1.msra.mxu0 0.0
    %4195 = vmatprep.subr.mxu0 0.0
    %4196 = vmatpush1.msra.mxu0 0.0
    %4197 = vmatprep.subr.mxu0 0.0
    %4198 = vmatpush1.msra.mxu0 0.0
    %4199 = vmatprep.subr.mxu0 0.0
    %4200 = vmatpush1.msra.mxu0 0.0
    %4201 = vmatprep.subr.mxu0 0.0
    %4202 = vmatpush1.msra.mxu0 0.0
    %4203 = vmatprep.subr.mxu0 0.0
    %4204 = vmatpush1.msra.mxu0 0.0
    %4205 = vmatprep.subr.mxu0 0.0
    %4206 = vmatpush1.msra.mxu0 0.0
    %4207 = vmatprep.mubr.f32.mxu0 0.0
    %4208 = vmatmul.mubr.f32.gmra.mrb[0].mxu0 %v4141
    %v4209 = vpop.f32.mrb[0].mxu0
    %v4210 = vadd.f32 0.0, %v4209
    %v4211 = vpop.f32.mrb[0].mxu0
    %4212 = vdwg.mxu0
    %v4213 = vadd.f32 %v3964, %v4210
    %4214 = vrot.lane.b32.xlu0 %v2290, 104
    %v4215 = vpop.permute.xlu0 %4214
    %4216 = vrot.lane.b32.xlu0 %v2477, 104
    %v4217 = vpop.permute.xlu0 %4216
    %4218 = vrot.lane.b32.xlu0 %v2482, 104
    %v4219 = vpop.permute.xlu0 %4218
    %v4220 = vsel %vm337, %v4215, 0
    %v4222 = vsel %vm337, %v4217, 0
    %v4224 = vsel %vm337, %v4219, 0
    %4226 = vmatprep.subr.mxu0 0.0
    %4227 = vmatpush1.xpose.msra.mxu0 %v4222
    %4228 = vmatprep.subr.mxu0 0.0
    %4229 = vmatpush1.xpose.msra.mxu0 %v4224
    %4230 = vmatprep.subr.mxu0 0.0
    %4231 = vmatpush1.xpose.msra.mxu0 0.0
    %4232 = vmatprep.subr.mxu0 0.0
    %4233 = vmatpush1.xpose.msra.mxu0 0.0
    %4234 = vmatprep.subr.mxu0 0.0
    %4235 = vmatpush1.xpose.msra.mxu0 0.0
    %4236 = vmatprep.subr.mxu0 0.0
    %4237 = vmatpush1.xpose.msra.mxu0 0.0
    %4238 = vmatprep.subr.mxu0 0.0
    %4239 = vmatpush1.xpose.msra.mxu0 0.0
    %4240 = vmatprep.subr.mxu0 0.0
    %4241 = vmatpush1.xpose.msra.mxu0 0.0
    %4242 = vmatprep.subr.mxu0 0.0
    %4243 = vmatpush1.xpose.msra.mxu0 0.0
    %4244 = vmatprep.subr.mxu0 0.0
    %4245 = vmatpush1.xpose.msra.mxu0 0.0
    %4246 = vmatprep.subr.mxu0 0.0
    %4247 = vmatpush1.xpose.msra.mxu0 0.0
    %4248 = vmatprep.subr.mxu0 0.0
    %4249 = vmatpush1.xpose.msra.mxu0 0.0
    %4250 = vmatprep.subr.mxu0 0.0
    %4251 = vmatpush1.xpose.msra.mxu0 0.0
    %4252 = vmatprep.subr.mxu0 0.0
    %4253 = vmatpush1.xpose.msra.mxu0 0.0
    %4254 = vmatprep.subr.mxu0 0.0
    %4255 = vmatpush1.xpose.msra.mxu0 0.0
    %4256 = vmatprep.subr.mxu0 0.0
    %4257 = vmatpush1.xpose.msra.mxu0 0.0
    %4258 = vmatprep.subr.mxu0 0.0
    %4259 = vmatpush1.xpose.msra.mxu0 0.0
    %4260 = vmatprep.subr.mxu0 0.0
    %4261 = vmatpush1.xpose.msra.mxu0 0.0
    %4262 = vmatprep.subr.mxu0 0.0
    %4263 = vmatpush1.xpose.msra.mxu0 0.0
    %4264 = vmatprep.subr.mxu0 0.0
    %4265 = vmatpush1.xpose.msra.mxu0 0.0
    %4266 = vmatprep.subr.mxu0 0.0
    %4267 = vmatpush1.xpose.msra.mxu0 0.0
    %4268 = vmatprep.subr.mxu0 0.0
    %4269 = vmatpush1.xpose.msra.mxu0 0.0
    %4270 = vmatprep.subr.mxu0 0.0
    %4271 = vmatpush1.xpose.msra.mxu0 0.0
    %4272 = vmatprep.subr.mxu0 0.0
    %4273 = vmatpush1.xpose.msra.mxu0 0.0
    %4274 = vmatprep.subr.mxu0 0.0
    %4275 = vmatpush1.xpose.msra.mxu0 0.0
    %4276 = vmatprep.subr.mxu0 0.0
    %4277 = vmatpush1.xpose.msra.mxu0 0.0
    %4278 = vmatprep.subr.mxu0 0.0
    %4279 = vmatpush1.xpose.msra.mxu0 0.0
    %4280 = vmatprep.subr.mxu0 0.0
    %4281 = vmatpush1.xpose.msra.mxu0 0.0
    %4282 = vmatprep.subr.mxu0 0.0
    %4283 = vmatpush1.xpose.msra.mxu0 0.0
    %4284 = vmatprep.subr.mxu0 0.0
    %4285 = vmatpush1.xpose.msra.mxu0 0.0
    %4286 = vmatprep.subr.mxu0 0.0
    %4287 = vmatpush1.xpose.msra.mxu0 0.0
    %4288 = vmatprep.subr.mxu0 0.0
    %4289 = vmatpush1.xpose.msra.mxu0 0.0
    %4290 = vmatprep.mubr.f32.mxu0 0.0
    %4291 = vmatmul.mubr.f32.gmra.mrb[0].mxu0 %v4220
    %v4292 = vpop.f32.mrb[0].mxu0
    %v4293 = vadd.f32 %v3480, %v4292
    %v4294 = vpop.f32.mrb[0].mxu0
    %4295 = vdwg.mxu0
    %v4296 = vmul.f32 %v4293, 0.17677669
    %v4297 = vsel %vm2571, %v4296, -inf
    %4298 = vmax.xlane.f32.xlu0 %v4297
    %v4299 = vpop.xlane.xlu0 %4298
    %v4300 = vsub.f32 %v4296, %v4299
    %v4301 = vmul.f32 %v4300, 1.442695
    %v4302 = vpow.pop %v4301
    %v4303 = vsel %vm2571, %v4302, 0.0
    %4304 = vadd.xlane.f32.xlu0 %v4303
    %v4305 = vpop.xlane.xlu0 %4304
    %v4306 = vrcp.pop %v4305
    %v4307 = vmul.f32 %v4302, %v4306
    %4308 = vrot.lane.b32.xlu0 %v2380, 104
    %v4309 = vpop.permute.xlu0 %4308
    %4310 = vrot.lane.b32.xlu0 %v2385, 104
    %v4311 = vpop.permute.xlu0 %4310
    %v4315 = vsel %vm2571, %v4307, 0
    %4317 = vmatprep.subr.mxu0 0.0
    %4318 = vmatpush1.msra.mxu0 %v4309
    %4319 = vmatprep.subr.mxu0 0.0
    %4320 = vmatpush1.msra.mxu0 %v4311
    %4321 = vmatprep.subr.mxu0 0.0
    %4322 = vmatpush1.msra.mxu0 0.0
    %4323 = vmatprep.subr.mxu0 0.0
    %4324 = vmatpush1.msra.mxu0 0.0
    %4325 = vmatprep.subr.mxu0 0.0
    %4326 = vmatpush1.msra.mxu0 0.0
    %4327 = vmatprep.subr.mxu0 0.0
    %4328 = vmatpush1.msra.mxu0 0.0
    %4329 = vmatprep.subr.mxu0 0.0
    %4330 = vmatpush1.msra.mxu0 0.0
    %4331 = vmatprep.subr.mxu0 0.0
    %4332 = vmatpush1.msra.mxu0 0.0
    %4333 = vmatprep.subr.mxu0 0.0
    %4334 = vmatpush1.msra.mxu0 0.0
    %4335 = vmatprep.subr.mxu0 0.0
    %4336 = vmatpush1.msra.mxu0 0.0
    %4337 = vmatprep.subr.mxu0 0.0
    %4338 = vmatpush1.msra.mxu0 0.0
    %4339 = vmatprep.subr.mxu0 0.0
    %4340 = vmatpush1.msra.mxu0 0.0
    %4341 = vmatprep.subr.mxu0 0.0
    %4342 = vmatpush1.msra.mxu0 0.0
    %4343 = vmatprep.subr.mxu0 0.0
    %4344 = vmatpush1.msra.mxu0 0.0
    %4345 = vmatprep.subr.mxu0 0.0
    %4346 = vmatpush1.msra.mxu0 0.0
    %4347 = vmatprep.subr.mxu0 0.0
    %4348 = vmatpush1.msra.mxu0 0.0
    %4349 = vmatprep.subr.mxu0 0.0
    %4350 = vmatpush1.msra.mxu0 0.0
    %4351 = vmatprep.subr.mxu0 0.0
    %4352 = vmatpush1.msra.mxu0 0.0
    %4353 = vmatprep.subr.mxu0 0.0
    %4354 = vmatpush1.msra.mxu0 0.0
    %4355 = vmatprep.subr.mxu0 0.0
    %4356 = vmatpush1.msra.mxu0 0.0
    %4357 = vmatprep.subr.mxu0 0.0
    %4358 = vmatpush1.msra.mxu0 0.0
    %4359 = vmatprep.subr.mxu0 0.0
    %4360 = vmatpush1.msra.mxu0 0.0
    %4361 = vmatprep.subr.mxu0 0.0
    %4362 = vmatpush1.msra.mxu0 0.0
    %4363 = vmatprep.subr.mxu0 0.0
    %4364 = vmatpush1.msra.mxu0 0.0
    %4365 = vmatprep.subr.mxu0 0.0
    %4366 = vmatpush1.msra.mxu0 0.0
    %4367 = vmatprep.subr.mxu0 0.0
    %4368 = vmatpush1.msra.mxu0 0.0
    %4369 = vmatprep.subr.mxu0 0.0
    %4370 = vmatpush1.msra.mxu0 0.0
    %4371 = vmatprep.subr.mxu0 0.0
    %4372 = vmatpush1.msra.mxu0 0.0
    %4373 = vmatprep.subr.mxu0 0.0
    %4374 = vmatpush1.msra.mxu0 0.0
    %4375 = vmatprep.subr.mxu0 0.0
    %4376 = vmatpush1.msra.mxu0 0.0
    %4377 = vmatprep.subr.mxu0 0.0
    %4378 = vmatpush1.msra.mxu0 0.0
    %4379 = vmatprep.subr.mxu0 0.0
    %4380 = vmatpush1.msra.mxu0 0.0
    %4381 = vmatprep.mubr.f32.mxu0 0.0
    %4382 = vmatmul.mubr.f32.gmra.mrb[0].mxu0 %v4315
    %v4383 = vpop.f32.mrb[0].mxu0
    %v4384 = vadd.f32 0.0, %v4383
    %v4385 = vpop.f32.mrb[0].mxu0
    %4386 = vdwg.mxu0
    %v4388 = vsel %vm337, %v4384, 0
    %4390 = vmatprep.subr.mxu0 0.0
    %4391 = vmatpush1.msra.mxu0 %v145
    %4392 = vmatprep.subr.mxu0 0.0
    %4393 = vmatpush1.msra.mxu0 0.0
    %4394 = vmatprep.subr.mxu0 0.0
    %4395 = vmatpush1.msra.mxu0 0.0
    %4396 = vmatprep.subr.mxu0 0.0
    %4397 = vmatpush1.msra.mxu0 0.0
    %4398 = vmatprep.subr.mxu0 0.0
    %4399 = vmatpush1.msra.mxu0 0.0
    %4400 = vmatprep.subr.mxu0 0.0
    %4401 = vmatpush1.msra.mxu0 0.0
    %4402 = vmatprep.subr.mxu0 0.0
    %4403 = vmatpush1.msra.mxu0 0.0
    %4404 = vmatprep.subr.mxu0 0.0
    %4405 = vmatpush1.msra.mxu0 0.0
    %4406 = vmatprep.subr.mxu0 0.0
    %4407 = vmatpush1.msra.mxu0 0.0
    %4408 = vmatprep.subr.mxu0 0.0
    %4409 = vmatpush1.msra.mxu0 0.0
    %4410 = vmatprep.subr.mxu0 0.0
    %4411 = vmatpush1.msra.mxu0 0.0
    %4412 = vmatprep.subr.mxu0 0.0
    %4413 = vmatpush1.msra.mxu0 0.0
    %4414 = vmatprep.subr.mxu0 0.0
    %4415 = vmatpush1.msra.mxu0 0.0
    %4416 = vmatprep.subr.mxu0 0.0
    %4417 = vmatpush1.msra.mxu0 0.0
    %4418 = vmatprep.subr.mxu0 0.0
    %4419 = vmatpush1.msra.mxu0 0.0
    %4420 = vmatprep.subr.mxu0 0.0
    %4421 = vmatpush1.msra.mxu0 0.0
    %4422 = vmatprep.subr.mxu0 0.0
    %4423 = vmatpush1.msra.mxu0 0.0
    %4424 = vmatprep.subr.mxu0 0.0
    %4425 = vmatpush1.msra.mxu0 0.0
    %4426 = vmatprep.subr.mxu0 0.0
    %4427 = vmatpush1.msra.mxu0 0.0
    %4428 = vmatprep.subr.mxu0 0.0
    %4429 = vmatpush1.msra.mxu0 0.0
    %4430 = vmatprep.subr.mxu0 0.0
    %4431 = vmatpush1.msra.mxu0 0.0
    %4432 = vmatprep.subr.mxu0 0.0
    %4433 = vmatpush1.msra.mxu0 0.0
    %4434 = vmatprep.subr.mxu0 0.0
    %4435 = vmatpush1.msra.mxu0 0.0
    %4436 = vmatprep.subr.mxu0 0.0
    %4437 = vmatpush1.msra.mxu0 0.0
    %4438 = vmatprep.subr.mxu0 0.0
    %4439 = vmatpush1.msra.mxu0 0.0
    %4440 = vmatprep.subr.mxu0 0.0
    %4441 = vmatpush1.msra.mxu0 0.0
    %4442 = vmatprep.subr.mxu0 0.0
    %4443 = vmatpush1.msra.mxu0 0.0
    %4444 = vmatprep.subr.mxu0 0.0
    %4445 = vmatpush1.msra.mxu0 0.0
    %4446 = vmatprep.subr.mxu0 0.0
    %4447 = vmatpush1.msra.mxu0 0.0
    %4448 = vmatprep.subr.mxu0 0.0
    %4449 = vmatpush1.msra.mxu0 0.0
    %4450 = vmatprep.subr.mxu0 0.0
    %4451 = vmatpush1.msra.mxu0 0.0
    %4452 = vmatprep.subr.mxu0 0.0
    %4453 = vmatpush1.msra.mxu0 0.0
    %4454 = vmatprep.mubr.f32.mxu0 0.0
    %4455 = vmatmul.mubr.f32.gmra.mrb[0].mxu0 %v4388
    %v4456 = vpop.f32.mrb[0].mxu0
    %v4457 = vadd.f32 0.0, %v4456
    %v4458 = vpop.f32.mrb[0].mxu0
    %4459 = vdwg.mxu0
    %v4460 = vadd.f32 %v4213, %v4457
    %v4461 = vadd.f32 %v4460, %v3474
    %v4462 = vadd.f32 %v3475, %v2289
    %v4463 = vadd.f32 %v4461, %v2290
    %v4464 = vsel %vm180, %v4462, 0.0
    %4465 = vadd.xlane.f32.xlu0 %v4464
    %v4466 = vpop.xlane.xlu0 %4465
    %v4467 = vsel %vm180, %v4463, 0.0
    %4468 = vadd.xlane.f32.xlu0 %v4467
    %v4469 = vpop.xlane.xlu0 %4468
    %v4470 = vmul.f32 %v4466, %v2258
    %v4471 = vmul.f32 %v4469, %v2258
    %v4472 = vsub.f32 %v4462, %v4470
    %v4473 = vsub.f32 %v4463, %v4471
    %v4474 = vmul.f32 %v4472, %v4472
    %v4475 = vmul.f32 %v4473, %v4473
    %v4476 = vsel %vm180, %v4474, 0.0
    %4477 = vadd.xlane.f32.xlu0 %v4476
    %v4478 = vpop.xlane.xlu0 %4477
    %v4479 = vsel %vm180, %v4475, 0.0
    %4480 = vadd.xlane.f32.xlu0 %v4479
    %v4481 = vpop.xlane.xlu0 %4480
    %v4482 = vmul.f32 %v4478, %v2258
    %v4483 = vmul.f32 %v4481, %v2258
    %v4484 = vadd.f32 %v4482, 1e-05
    %v4485 = vadd.f32 %v4483, 1e-05
    %v4486 = vrsqrt.pop %v4484
    %v4487 = vrsqrt.pop %v4485
    %v4488 = vmul.f32 %v4472, %v4486
    %v4489 = vmul.f32 %v4473, %v4487
    %v4490 = vlaneseq
    %v4491 = vshrl.u32 %v4490, 7
    %v4492 = vsub.s32 4, %v4491
    %v4493 = vrot.slane %v115, %v4492
    %v4494 = vmul.f32 %v4488, %v4493
    %v4495 = vmul.f32 %v4489, %v4493
    %v4496 = vlaneseq
    %v4497 = vshrl.u32 %v4496, 7
    %v4498 = vsub.s32 5, %v4497
    %v4499 = vrot.slane %v115, %v4498
    %v4500 = vadd.f32 %v4494, %v4499
    %v4501 = vadd.f32 %v4495, %v4499
    %v4503 = vlaneseq
    %v4504 = vshrl.u32 %v4503, 7
    %v4505 = vsub.s32 0, %v4504
    %v4506 = vrot.slane %v155, %v4505
    %v4509 = vsel %vm180, %v4500, 0
    %v4512 = vsel %vm180, %v4501, 0
    %4514 = vmatprep.subr.mxu0 0.0
    %4515 = vmatpush1.msra.mxu0 %v146
    %4516 = vmatprep.subr.mxu0 0.0
    %4517 = vmatpush1.msra.mxu0 %v147
    %4518 = vmatprep.subr.mxu0 0.0
    %4519 = vmatpush1.msra.mxu0 %v148
    %4520 = vmatprep.subr.mxu0 0.0
    %4521 = vmatpush1.msra.mxu0 %v149
    %4522 = vmatprep.subr.mxu0 0.0
    %4523 = vmatpush1.msra.mxu0 0.0
    %4524 = vmatprep.subr.mxu0 0.0
    %4525 = vmatpush1.msra.mxu0 0.0
    %4526 = vmatprep.subr.mxu0 0.0
    %4527 = vmatpush1.msra.mxu0 0.0
    %4528 = vmatprep.subr.mxu0 0.0
    %4529 = vmatpush1.msra.mxu0 0.0
    %4530 = vmatprep.subr.mxu0 0.0
    %4531 = vmatpush1.msra.mxu0 0.0
    %4532 = vmatprep.subr.mxu0 0.0
    %4533 = vmatpush1.msra.mxu0 0.0
    %4534 = vmatprep.subr.mxu0 0.0
    %4535 = vmatpush1.msra.mxu0 0.0
    %4536 = vmatprep.subr.mxu0 0.0
    %4537 = vmatpush1.msra.mxu0 0.0
    %4538 = vmatprep.subr.mxu0 0.0
    %4539 = vmatpush1.msra.mxu0 0.0
    %4540 = vmatprep.subr.mxu0 0.0
    %4541 = vmatpush1.msra.mxu0 0.0
    %4542 = vmatprep.subr.mxu0 0.0
    %4543 = vmatpush1.msra.mxu0 0.0
    %4544 = vmatprep.subr.mxu0 0.0
    %4545 = vmatpush1.msra.mxu0 0.0
    %4546 = vmatprep.subr.mxu0 0.0
    %4547 = vmatpush1.msra.mxu0 0.0
    %4548 = vmatprep.subr.mxu0 0.0
    %4549 = vmatpush1.msra.mxu0 0.0
    %4550 = vmatprep.subr.mxu0 0.0
    %4551 = vmatpush1.msra.mxu0 0.0
    %4552 = vmatprep.subr.mxu0 0.0
    %4553 = vmatpush1.msra.mxu0 0.0
    %4554 = vmatprep.subr.mxu0 0.0
    %4555 = vmatpush1.msra.mxu0 0.0
    %4556 = vmatprep.subr.mxu0 0.0
    %4557 = vmatpush1.msra.mxu0 0.0
    %4558 = vmatprep.subr.mxu0 0.0
    %4559 = vmatpush1.msra.mxu0 0.0
    %4560 = vmatprep.subr.mxu0 0.0
    %4561 = vmatpush1.msra.mxu0 0.0
    %4562 = vmatprep.subr.mxu0 0.0
    %4563 = vmatpush1.msra.mxu0 0.0
    %4564 = vmatprep.subr.mxu0 0.0
    %4565 = vmatpush1.msra.mxu0 0.0
    %4566 = vmatprep.subr.mxu0 0.0
    %4567 = vmatpush1.msra.mxu0 0.0
    %4568 = vmatprep.subr.mxu0 0.0
    %4569 = vmatpush1.msra.mxu0 0.0
    %4570 = vmatprep.subr.mxu0 0.0
    %4571 = vmatpush1.msra.mxu0 0.0
    %4572 = vmatprep.subr.mxu0 0.0
    %4573 = vmatpush1.msra.mxu0 0.0
    %4574 = vmatprep.subr.mxu0 0.0
    %4575 = vmatpush1.msra.mxu0 0.0
    %4576 = vmatprep.subr.mxu0 0.0
    %4577 = vmatpush1.msra.mxu0 0.0
    %4578 = vmatprep.mubr.f32.mxu0 0.0
    %4579 = vmatmul.mubr.f32.gmra.mrb[0].mxu0 %v4509
    %v4580 = vpop.f32.mrb[0].mxu0
    %v4581 = vadd.f32 %v4506, %v4580
    %v4582 = vpop.f32.mrb[0].mxu0
    %4583 = vmatprep.mubr.f32.mxu0 0.0
    %4584 = vmatmul.mubr.f32.gmra.mrb[0].mxu0 %v4512
    %v4585 = vpop.f32.mrb[0].mxu0
    %v4586 = vadd.f32 %v4506, %v4585
    %v4587 = vpop.f32.mrb[0].mxu0
    %4588 = vdwg.mxu0
    %v4589 = vmax.f32 %v4581, 0.0
    %v4590 = vmax.f32 %v4586, 0.0
    %v4591 = vlaneseq
    %v4592 = vshrl.u32 %v4591, 7
    %v4593 = vsub.s32 6, %v4592
    %v4594 = vrot.slane %v115, %v4593
    %4595 = vmatprep.subr.mxu0 0.0
    %4596 = vmatpush1.xpose.msra.mxu0 %v151
    %4597 = vmatprep.subr.mxu0 0.0
    %4598 = vmatpush1.xpose.msra.mxu0 %v152
    %4599 = vmatprep.subr.mxu0 0.0
    %4600 = vmatpush1.xpose.msra.mxu0 %v153
    %4601 = vmatprep.subr.mxu0 0.0
    %4602 = vmatpush1.xpose.msra.mxu0 %v154
    %4603 = vmatprep.subr.mxu0 0.0
    %4604 = vmatpush1.xpose.msra.mxu0 0.0
    %4605 = vmatprep.subr.mxu0 0.0
    %4606 = vmatpush1.xpose.msra.mxu0 0.0
    %4607 = vmatprep.subr.mxu0 0.0
    %4608 = vmatpush1.xpose.msra.mxu0 0.0
    %4609 = vmatprep.subr.mxu0 0.0
    %4610 = vmatpush1.xpose.msra.mxu0 0.0
    %4611 = vmatprep.subr.mxu0 0.0
    %4612 = vmatpush1.xpose.msra.mxu0 0.0
    %4613 = vmatprep.subr.mxu0 0.0
    %4614 = vmatpush1.xpose.msra.mxu0 0.0
    %4615 = vmatprep.subr.mxu0 0.0
    %4616 = vmatpush1.xpose.msra.mxu0 0.0
    %4617 = vmatprep.subr.mxu0 0.0
    %4618 = vmatpush1.xpose.msra.mxu0 0.0
    %4619 = vmatprep.subr.mxu0 0.0
    %4620 = vmatpush1.xpose.msra.mxu0 0.0
    %4621 = vmatprep.subr.mxu0 0.0
    %4622 = vmatpush1.xpose.msra.mxu0 0.0
    %4623 = vmatprep.subr.mxu0 0.0
    %4624 = vmatpush1.xpose.msra.mxu0 0.0
    %4625 = vmatprep.subr.mxu0 0.0
    %4626 = vmatpush1.xpose.msra.mxu0 0.0
    %4627 = vmatprep.subr.mxu0 0.0
    %4628 = vmatpush1.xpose.msra.mxu0 0.0
    %4629 = vmatprep.subr.mxu0 0.0
    %4630 = vmatpush1.xpose.msra.mxu0 0.0
    %4631 = vmatprep.subr.mxu0 0.0
    %4632 = vmatpush1.xpose.msra.mxu0 0.0
    %4633 = vmatprep.subr.mxu0 0.0
    %4634 = vmatpush1.xpose.msra.mxu0 0.0
    %4635 = vmatprep.subr.mxu0 0.0
    %4636 = vmatpush1.xpose.msra.mxu0 0.0
    %4637 = vmatprep.subr.mxu0 0.0
    %4638 = vmatpush1.xpose.msra.mxu0 0.0
    %4639 = vmatprep.subr.mxu0 0.0
    %4640 = vmatpush1.xpose.msra.mxu0 0.0
    %4641 = vmatprep.subr.mxu0 0.0
    %4642 = vmatpush1.xpose.msra.mxu0 0.0
    %4643 = vmatprep.subr.mxu0 0.0
    %4644 = vmatpush1.xpose.msra.mxu0 0.0
    %4645 = vmatprep.subr.mxu0 0.0
    %4646 = vmatpush1.xpose.msra.mxu0 0.0
    %4647 = vmatprep.subr.mxu0 0.0
    %4648 = vmatpush1.xpose.msra.mxu0 0.0
    %4649 = vmatprep.subr.mxu0 0.0
    %4650 = vmatpush1.xpose.msra.mxu0 0.0
    %4651 = vmatprep.subr.mxu0 0.0
    %4652 = vmatpush1.xpose.msra.mxu0 0.0
    %4653 = vmatprep.subr.mxu0 0.0
    %4654 = vmatpush1.xpose.msra.mxu0 0.0
    %4655 = vmatprep.subr.mxu0 0.0
    %4656 = vmatpush1.xpose.msra.mxu0 0.0
    %4657 = vmatprep.subr.mxu0 0.0
    %4658 = vmatpush1.xpose.msra.mxu0 0.0
    %4659 = vmatprep.mubr.f32.mxu0 0.0
    %4660 = vmatmul.mubr.f32.gmra.mrb[0].mxu0 %v4589
    %v4661 = vpop.f32.mrb[0].mxu0
    %v4662 = vadd.f32 %v4594, %v4661
    %v4663 = vpop.f32.mrb[0].mxu0
    %4664 = vmatprep.mubr.f32.mxu0 0.0
    %4665 = vmatmul.mubr.f32.gmra.mrb[0].mxu0 %v4590
    %v4666 = vpop.f32.mrb[0].mxu0
    %v4667 = vadd.f32 %v4594, %v4666
    %v4668 = vpop.f32.mrb[0].mxu0
    %4669 = vdwg.mxu0
    %v4670 = vadd.f32 %v4662, %v4500
    %v4671 = vadd.f32 %v4667, %v4501
    %v4672 = vsel %vm180, %v4670, 0.0
    %4673 = vadd.xlane.f32.xlu0 %v4672
    %v4674 = vpop.xlane.xlu0 %4673
    %v4675 = vsel %vm180, %v4671, 0.0
    %4676 = vadd.xlane.f32.xlu0 %v4675
    %v4677 = vpop.xlane.xlu0 %4676
    %v4678 = vmul.f32 %v4674, %v2258
    %v4679 = vmul.f32 %v4677, %v2258
    %v4680 = vsub.f32 %v4670, %v4678
    %v4681 = vsub.f32 %v4671, %v4679
    %v4682 = vmul.f32 %v4680, %v4680
    %v4683 = vmul.f32 %v4681, %v4681
    %v4684 = vsel %vm180, %v4682, 0.0
    %4685 = vadd.xlane.f32.xlu0 %v4684
    %v4686 = vpop.xlane.xlu0 %4685
    %v4687 = vsel %vm180, %v4683, 0.0
    %4688 = vadd.xlane.f32.xlu0 %v4687
    %v4689 = vpop.xlane.xlu0 %4688
    %v4690 = vmul.f32 %v4686, %v2258
    %v4691 = vmul.f32 %v4689, %v2258
    %v4692 = vadd.f32 %v4690, 1e-05
    %v4693 = vadd.f32 %v4691, 1e-05
    %v4694 = vrsqrt.pop %v4692
    %v4695 = vrsqrt.pop %v4693
    %v4696 = vmul.f32 %v4680, %v4694
    %v4697 = vmul.f32 %v4681, %v4695
    %v4698 = vlaneseq
    %v4699 = vshrl.u32 %v4698, 7
    %v4700 = vsub.s32 7, %v4699
    %v4701 = vrot.slane %v115, %v4700
    %v4702 = vmul.f32 %v4696, %v4701
    %v4703 = vmul.f32 %v4697, %v4701
    %v4704 = vlaneseq
    %v4705 = vshrl.u32 %v4704, 7
    %v4706 = vsub.s32 0, %v4705
    %v4707 = vrot.slane %v116, %v4706
    %v4708 = vadd.f32 %v4702, %v4707
    %v4709 = vadd.f32 %v4703, %v4707
    %4710 = vst.msk [vmem:[#allocation13] sm:$0xff] %vm180, %v4708
    %4711 = vst.msk [vmem:[#allocation13 + $0x8] sm:$0xff] %vm180, %v4709
    // Predicated region
    $region62: #{tpu_custom_call.1} parent=1 // pred_check
      _
    $region63: #{tpu_custom_call.1} parent=1 // pred_check_branch
      %4713 = sbr.rel (0) target = $region65
    $region64: #{tpu_custom_call.1} parent=1 // pred_region
      %s4715 = ssub.s32 256, 256
      %4716 = vsyncadd [#allocation4], %s4715
      %s4717 = sshll.u32 [#allocation13], 4
      %s4718 = int_to_ptr.vmem [resolvable:$true] %s4717
      %4723 = dma.vmem_to_hbm [thread:$0]  %s4718, 256, %s9, [#allocation4], 128, 128, 8
    $region65: #{tpu_custom_call.1} parent=1 // pred_fallthru
      _
    // Predicated region
    $region66: #{tpu_custom_call.1} parent=1 // pred_check
      _
    $region67: #{tpu_custom_call.1} parent=1 // pred_check_branch
      %4725 = sbr.rel (0) target = $region69
    $region68: #{tpu_custom_call.1} parent=1 // pred_region
      %4726 = dma.done [#allocation4], 256
    $region69: #{tpu_custom_call.1} parent=1 // pred_fallthru
      _
    %4727 = vsyncpa [#allocation3], 1
    %4728 = vsyncpa [#allocation6], 1
    %4729 = vsyncpa [#allocation9], 1
    %4730 = vsyncpa [#allocation12], 1
    %4731 = vsyncpa [#allocation4], 1

</llo_original>
